<compile_context>
chip_gen: v7x
topology: tpu7x:2x2x1
jax: 0.10.0
libtpu: 0.0.40
codegen_flags: <defaults>
</compile_context>

<pallas_src>
import functools
import math

import jax
import jax.numpy as jnp
from jax import lax
from jax.experimental import pallas as pl
from jax.experimental.pallas import tpu as pltpu


def actor_kernel(dims,
                 x_ref,       # (L*Bp, 3*Cin) im2col rows, time-major: row = t*Bp + b
                 wstk_ref,    # (5, P0, P1) packed weights (zero-padded to a common shape)
                 bias_ref,    # (8, BW)     packed bias rows (zero-padded)
                 temp_ref,    # (1, 1)      SMEM temperature
                 head_ref,    # (Bp, 3*A+2) fused [probs | logits | logp | entropy | value]
                 attnw_ref,   # (Bp*L, L)   attention-weight slab (row = b*L + q)
                 xg_scr,      # (L*Bp, 3*H1) fused GRU gate inputs (VMEM scratch)
                 hs_scr):     # (L*Bp, H1)   GRU hidden states, time-major (VMEM scratch)
    Bp, L, Cin, C0, H1, H2, A = dims

    def mm(a, b):
        return jnp.dot(a, b, preferred_element_type=jnp.float32)

    # ---- unpack fused weights / biases (static slices, one-shot) ----
    cw   = wstk_ref[0][:3 * Cin, :C0]              # conv im2col weight (3*Cin, C0)
    wih  = wstk_ref[1][:C0, :3 * H1]               # GRU W_ih, lanes r|z|n
    whh  = wstk_ref[2][:H1, :3 * H1]               # GRU W_hh, lanes r|z|n
    wqkv = wstk_ref[3][:H1, :3 * H1]               # attention in-proj, lanes q|k|v
    wsm  = wstk_ref[4]
    wo   = wsm[:H1, :H1]                           # attention out-proj
    wfc  = wsm[:H1, H1:H1 + H2]                    # output_layers Linear
    whdv = wsm[:H2, H1 + H2:H1 + H2 + A + 1]       # fused policy|value head

    bias = bias_ref[...]
    cb   = bias[0:1, :C0]
    b_ih = bias[1:2, :3 * H1]
    b_hh = bias[2:3, :3 * H1]
    bqkv = bias[3:4, :3 * H1]
    bo   = bias[4:5, :H1]
    bfc  = bias[5:6, :H2]
    bhdv = bias[6:7, :A + 1]

    # ---- Conv1d(k=3, pad=1) + ReLU: ONE im2col matmul over all (t, b) rows ----
    conv = jnp.maximum(mm(x_ref[...], cw) + cb, 0.0)                  # (L*Bp, C0)

    # ---- GRU input projections fused across the 3 gates: one matmul, one store ----
    xg_scr[...] = mm(conv, wih) + b_ih                                # (L*Bp, 3*H1)

    # hoist the bias broadcast out of the unrolled recurrence (no CSE for broadcasts)
    b_hh_full = jnp.broadcast_to(b_hh, (Bp, 3 * H1))

    # ---- GRU recurrence: ONE fused (Bp,H1)@(H1,3*H1) MXU push per step.
    #      PyTorch semantics: r,z,n gates, n = tanh(x_n + r*(W_hn h + b_hn)).
    def gru_step(t, h):
        row = pl.multiple_of(t * Bp, Bp)                              # sublane-aligned (Bp=8)
        xg = xg_scr[pl.ds(row, Bp), :]                                # (Bp, 3*H1) aligned tile
        hh = mm(h, whh) + b_hh_full                                   # (Bp, 3*H1)
        r = jax.nn.sigmoid(xg[:, :H1] + hh[:, :H1])
        z = jax.nn.sigmoid(xg[:, H1:2 * H1] + hh[:, H1:2 * H1])
        n = jnp.tanh(xg[:, 2 * H1:3 * H1] + r * hh[:, 2 * H1:3 * H1])
        h_new = (1.0 - z) * n + z * h
        hs_scr[pl.ds(row, Bp), :] = h_new                             # aligned (Bp, H1) store
        return h_new

    # unroll=True is right at L=8; switch to partial unroll if L grows past ~32.
    lax.fori_loop(0, L, gru_step, jnp.zeros((Bp, H1), jnp.float32), unroll=True)

    # ---- Single-head self-attention; q|k|v projected ONCE over all L*Bp rows ----
    qkv_tm = mm(hs_scr[...], wqkv) + bqkv                             # (L*Bp, 3*H1) time-major
    # one explicit (L,Bp)->(Bp,L) relayout instead of per-batch stride-B gathers
    qkv = jnp.transpose(qkv_tm.reshape(L, Bp, 3 * H1), (1, 0, 2))     # (Bp, L, 3*H1)
    q = qkv[:, :, :H1]
    k = qkv[:, :, H1:2 * H1]
    v = qkv[:, :, 2 * H1:3 * H1]

    scores = jnp.einsum('bqd,bkd->bqk', q, k,
                        preferred_element_type=jnp.float32) * (1.0 / math.sqrt(float(H1)))
    m1 = scores.max(axis=-1, keepdims=True)
    e1 = jnp.exp(scores - m1)
    s1 = e1.sum(axis=-1, keepdims=True)
    w_attn = e1 / s1                                # exact division: returned rows sum to 1
    attnw_ref[...] = w_attn.reshape(Bp * L, L)

    attended = jnp.einsum('bqk,bkd->bqd', w_attn, v,
                          preferred_element_type=jnp.float32)         # (Bp, L, H1)
    ctx = attended[:, L - 1, :]                                       # attended[:, -1, :]

    feat = mm(ctx, wo) + bo                                           # MHA out-proj
    feat = jnp.maximum(mm(feat, wfc) + bfc, 0.0)                      # output_layers
    hv = mm(feat, whdv) + bhdv                                        # fused policy|value head
    logits = hv[:, :A]
    value = hv[:, A:A + 1]

    # ---- temperature-clamped softmax, stable log-probs, entropy ----
    temp = jnp.maximum(temp_ref[0, 0], 0.1)
    scaled = logits / temp
    m2 = scaled.max(axis=-1, keepdims=True)
    e2 = jnp.exp(scaled - m2)
    s2 = e2.sum(axis=-1, keepdims=True)
    probs = e2 / s2
    logp = (scaled - m2) - jnp.log(s2)
    entropy = -(probs * logp).sum(axis=-1, keepdims=True)

    # one fused lane-packed output store instead of five lane-sparse ones
    head_ref[...] = jnp.concatenate([probs, logits, logp, entropy, value], axis=1)


def init_params(key, input_dim, hidden_dims, action_dim, temperature_init=1.0):
    C0, H1, H2 = hidden_dims
    ks = jax.random.split(key, 16)

    def w(k, shape, scale=0.1):
        return jax.random.normal(k, shape, jnp.float32) * scale

    return dict(
        conv_w=w(ks[0], (C0, input_dim, 3)), conv_b=w(ks[1], (C0,)),
        w_ih=w(ks[2], (3 * H1, C0)), b_ih=w(ks[3], (3 * H1,)),
        w_hh=w(ks[4], (3 * H1, H1)), b_hh=w(ks[5], (3 * H1,)),
        in_proj_w=w(ks[6], (3 * H1, H1)), in_proj_b=w(ks[7], (3 * H1,)),
        out_proj_w=w(ks[8], (H1, H1)), out_proj_b=w(ks[9], (H1,)),
        fc_w=w(ks[10], (H2, H1)), fc_b=w(ks[11], (H2,)),
        head_w=w(ks[12], (action_dim, H2)), head_b=w(ks[13], (action_dim,)),
        val_w=w(ks[14], (1, H2)), val_b=w(ks[15], (1,)),
        temperature=jnp.float32(temperature_init),
    )


def strategic_actor_forward(state_ncw, params, *, deterministic=True, key=None):
    """state_ncw: (batch, input_dim, seq) float32 — same layout as the PyTorch module."""
    B, Cin, L = state_ncw.shape
    C0 = params['conv_w'].shape[0]
    H1 = params['w_hh'].shape[1]
    H2 = params['fc_w'].shape[0]
    A = params['head_w'].shape[0]
    Bp = ((B + 7) // 8) * 8       # pad batch to a full sublane group (aligned GRU tiles)

    x = jnp.transpose(state_ncw.astype(jnp.float32), (0, 2, 1))       # (B, L, Cin)
    x = jnp.pad(x, ((0, Bp - B), (0, 0), (0, 0)))                     # zero batch padding

    # im2col for Conv1d(k=3, pad=1), done for free in the XLA wrapper:
    # rows are time-major (row index = t*Bp + b) so the GRU reads contiguous aligned blocks.
    zrow = jnp.zeros((Bp, 1, Cin), jnp.float32)
    x_prev = jnp.concatenate([zrow, x[:, :L - 1, :]], axis=1)
    x_next = jnp.concatenate([x[:, 1:, :], zrow], axis=1)
    x_cat = jnp.concatenate([x_prev, x, x_next], axis=-1)             # (Bp, L, 3*Cin)
    x2d = jnp.transpose(x_cat, (1, 0, 2)).reshape(L * Bp, 3 * Cin)

    # ---- pack ALL weight matrices into one (5, P0, P1) stack: single input DMA ----
    conv_w = params['conv_w']                                         # (C0, Cin, 3)
    cw = jnp.concatenate([conv_w[:, :, 0].T, conv_w[:, :, 1].T, conv_w[:, :, 2].T],
                         axis=0)                                      # (3*Cin, C0)
    wih = params['w_ih'].T                                            # (C0, 3*H1), lanes r|z|n
    whh = params['w_hh'].T                                            # (H1, 3*H1), lanes r|z|n
    wqkv = params['in_proj_w'].T                                      # (H1, 3*H1), lanes q|k|v

    wo = params['out_proj_w'].T                                       # (H1, H1)
    wfc = params['fc_w'].T                                            # (H1, H2)
    whdv = jnp.concatenate([params['head_w'].T, params['val_w'].T], axis=1)   # (H2, A+1)
    R = max(H1, H2)

    def rpad(a):
        return jnp.pad(a.astype(jnp.float32), ((0, R - a.shape[0]), (0, 0)))
    wsmall = jnp.concatenate([rpad(wo), rpad(wfc), rpad(whdv)], axis=1)       # (R, H1+H2+A+1)

    P0 = max(3 * Cin, C0, H1, H2)
    P1 = max(C0, 3 * H1, H1 + H2 + A + 1)

    def wpad(a):
        a = a.astype(jnp.float32)
        return jnp.pad(a, ((0, P0 - a.shape[0]), (0, P1 - a.shape[1])))
    wstk = jnp.stack([wpad(cw), wpad(wih), wpad(whh), wpad(wqkv), wpad(wsmall)], axis=0)

    # ---- pack all biases into one (8, BW) slab: single input DMA ----
    BW = max(C0, 3 * H1, H1, H2, A + 1)

    def brow(v):
        v = jnp.ravel(v).astype(jnp.float32)
        return jnp.pad(v, (0, BW - v.shape[0]))
    bias = jnp.stack([
        brow(params['conv_b']),
        brow(params['b_ih']),
        brow(params['b_hh']),
        brow(params['in_proj_b']),
        brow(params['out_proj_b']),
        brow(params['fc_b']),
        brow(jnp.concatenate([params['head_b'], params['val_b']])),
        jnp.zeros((BW,), jnp.float32),
    ], axis=0)                                                        # (8, BW)

    temp = params['temperature'].reshape(1, 1).astype(jnp.float32)

    dims = (Bp, L, Cin, C0, H1, H2, A)
    kern = functools.partial(actor_kernel, dims)

    vmem = pl.BlockSpec(memory_space=pltpu.MemorySpace.VMEM)
    smem = pl.BlockSpec(memory_space=pltpu.MemorySpace.SMEM)

    out_shape = (
        jax.ShapeDtypeStruct((Bp, 3 * A + 2), jnp.float32),           # fused head outputs
        jax.ShapeDtypeStruct((Bp * L, L), jnp.float32),               # attention weights slab
    )

    # TODO(synk): at realistic batch sizes, add a batch grid with
    # dimension_semantics=("parallel",) (v7x dual-TC), keep weights on constant
    # index_maps, and re-derive tile sizes against v7x's 64 MiB VMEM; unnecessary
    # at Bp=8, L=8.
    head_out, attn2d = pl.pallas_call(
        kern,
        out_shape=out_shape,
        in_specs=[vmem, vmem, vmem, smem],
        out_specs=(vmem, vmem),
        scratch_shapes=[pltpu.VMEM((L * Bp, 3 * H1), jnp.float32),    # fused gate inputs
                        pltpu.VMEM((L * Bp, H1), jnp.float32)],       # hidden states
    )(x2d, wstk, bias, temp)

    probs   = head_out[:B, 0 * A:1 * A]
    logits  = head_out[:B, 1 * A:2 * A]
    logp    = head_out[:B, 2 * A:3 * A]
    entropy = head_out[:B, 3 * A]
    value   = head_out[:B, 3 * A + 1]
    attn_w  = attn2d.reshape(Bp, L, L)[:B]

    # Action selection (Categorical) — cheap glue, kept in plain JAX.
    if deterministic:
        action = jnp.argmax(probs, axis=-1)
    else:
        if key is None:
            key = jax.random.PRNGKey(0)
        action = jax.random.categorical(key, logp, axis=-1)
    log_prob = jnp.take_along_axis(logp, action[:, None], axis=-1)[:, 0]

    return {
        'action': action,
        'action_probs': probs,
        'log_prob': log_prob,
        'entropy': entropy,
        'logits': logits,
        'attention_weights': attn_w,
        'value': value,
    }


if __name__ == "__main__":
    key = jax.random.PRNGKey(0)
    pkey, xkey = jax.random.split(key)

    B, input_dim, seq = 2, 8, 8
    hidden_dims = [32, 32, 16]
    action_dim = 3

    params = init_params(pkey, input_dim, hidden_dims, action_dim)
    state = jax.random.normal(xkey, (B, input_dim, seq), jnp.float32)

    out = strategic_actor_forward(state, params, deterministic=True)
    out = jax.block_until_ready(out)

    # light sanity checks
    assert out['action_probs'].shape == (B, action_dim)
    assert bool(jnp.all(jnp.isfinite(out['action_probs'])))
    assert bool(jnp.all(jnp.abs(out['action_probs'].sum(-1) - 1.0) < 1e-4))
    assert out['attention_weights'].shape == (B, seq, seq)
    assert bool(jnp.all(jnp.abs(out['attention_weights'].sum(-1) - 1.0) < 1e-4))
    assert out['value'].shape == (B,)
    assert out['entropy'].shape == (B,)
    assert bool(jnp.all(jnp.isfinite(out['log_prob'])))
    assert bool(jnp.all(jnp.isfinite(out['logits'])))

    print("KERNEL_OK")
</pallas_src>

<mosaic_0001>
module attributes {stable_mosaic.version = 11 : i64} {
  func.func @actor_kernel(%arg0: memref<64x24xf32, #tpu.memory_space<vmem>>, %arg1: memref<5x32x96xf32, #tpu.memory_space<vmem>>, %arg2: memref<8x96xf32, #tpu.memory_space<vmem>>, %arg3: memref<1x1xf32, #tpu.memory_space<smem>>, %arg4: memref<8x11xf32, #tpu.memory_space<vmem>>, %arg5: memref<64x8xf32, #tpu.memory_space<vmem>>, %arg6: memref<64x96xf32, #tpu.memory_space<vmem>>, %arg7: memref<64x32xf32, #tpu.memory_space<vmem>>) attributes {dimension_semantics = [], scalar_prefetch = 0 : i64, scratch_operands = 2 : i64, tpu.core_type = #tpu.core_type<tc>} {
    %c0 = arith.constant 0 : index
    %c0_0 = arith.constant 0 : index
    %c0_1 = arith.constant 0 : index
    %0 = vector.load %arg1[%c0, %c0_0, %c0_1] : memref<5x32x96xf32, #tpu.memory_space<vmem>>, vector<1x32x96xf32>
    %1 = vector.shape_cast %0 : vector<1x32x96xf32> to vector<32x96xf32>
    %2 = vector.extract_strided_slice %1 {offsets = [0, 0], sizes = [24, 32], strides = [1, 1]} : vector<32x96xf32> to vector<24x32xf32>
    %c1 = arith.constant 1 : index
    %c0_2 = arith.constant 0 : index
    %c0_3 = arith.constant 0 : index
    %3 = vector.load %arg1[%c1, %c0_2, %c0_3] : memref<5x32x96xf32, #tpu.memory_space<vmem>>, vector<1x32x96xf32>
    %4 = vector.shape_cast %3 : vector<1x32x96xf32> to vector<32x96xf32>
    %c2 = arith.constant 2 : index
    %c0_4 = arith.constant 0 : index
    %c0_5 = arith.constant 0 : index
    %5 = vector.load %arg1[%c2, %c0_4, %c0_5] : memref<5x32x96xf32, #tpu.memory_space<vmem>>, vector<1x32x96xf32>
    %6 = vector.shape_cast %5 : vector<1x32x96xf32> to vector<32x96xf32>
    %c3 = arith.constant 3 : index
    %c0_6 = arith.constant 0 : index
    %c0_7 = arith.constant 0 : index
    %7 = vector.load %arg1[%c3, %c0_6, %c0_7] : memref<5x32x96xf32, #tpu.memory_space<vmem>>, vector<1x32x96xf32>
    %8 = vector.shape_cast %7 : vector<1x32x96xf32> to vector<32x96xf32>
    %c4 = arith.constant 4 : index
    %c0_8 = arith.constant 0 : index
    %c0_9 = arith.constant 0 : index
    %9 = vector.load %arg1[%c4, %c0_8, %c0_9] : memref<5x32x96xf32, #tpu.memory_space<vmem>>, vector<1x32x96xf32>
    %10 = vector.shape_cast %9 : vector<1x32x96xf32> to vector<32x96xf32>
    %11 = vector.extract_strided_slice %10 {offsets = [0, 0], sizes = [32, 32], strides = [1, 1]} : vector<32x96xf32> to vector<32x32xf32>
    %12 = vector.extract_strided_slice %10 {offsets = [0, 32], sizes = [32, 16], strides = [1, 1]} : vector<32x96xf32> to vector<32x16xf32>
    %13 = vector.extract_strided_slice %10 {offsets = [0, 48], sizes = [16, 4], strides = [1, 1]} : vector<32x96xf32> to vector<16x4xf32>
    %c0_10 = arith.constant 0 : index
    %c0_11 = arith.constant 0 : index
    %14 = vector.load %arg2[%c0_10, %c0_11] : memref<8x96xf32, #tpu.memory_space<vmem>>, vector<8x96xf32>
    %15 = vector.extract_strided_slice %14 {offsets = [0, 0], sizes = [1, 32], strides = [1, 1]} : vector<8x96xf32> to vector<1x32xf32>
    %16 = vector.extract_strided_slice %14 {offsets = [1, 0], sizes = [1, 96], strides = [1, 1]} : vector<8x96xf32> to vector<1x96xf32>
    %17 = vector.extract_strided_slice %14 {offsets = [2, 0], sizes = [1, 96], strides = [1, 1]} : vector<8x96xf32> to vector<1x96xf32>
    %18 = vector.extract_strided_slice %14 {offsets = [3, 0], sizes = [1, 96], strides = [1, 1]} : vector<8x96xf32> to vector<1x96xf32>
    %19 = vector.extract_strided_slice %14 {offsets = [4, 0], sizes = [1, 32], strides = [1, 1]} : vector<8x96xf32> to vector<1x32xf32>
    %20 = vector.extract_strided_slice %14 {offsets = [5, 0], sizes = [1, 16], strides = [1, 1]} : vector<8x96xf32> to vector<1x16xf32>
    %21 = vector.extract_strided_slice %14 {offsets = [6, 0], sizes = [1, 4], strides = [1, 1]} : vector<8x96xf32> to vector<1x4xf32>
    %c0_12 = arith.constant 0 : index
    %c0_13 = arith.constant 0 : index
    %22 = vector.load %arg0[%c0_12, %c0_13] : memref<64x24xf32, #tpu.memory_space<vmem>>, vector<64x24xf32>
    %cst = arith.constant dense<0.000000e+00> : vector<64x32xf32>
    %23 = tpu.matmul %22, %2, %cst {dimension_numbers = #tpu.dot_dimension_numbers<[1], [0], [0], [1], [0, 0, 1, 1], [], []>} : vector<64x24xf32>, vector<24x32xf32>, vector<64x32xf32> -> vector<64x32xf32>
    %24 = vector.broadcast %15 : vector<1x32xf32> to vector<64x32xf32>
    %25 = arith.addf %23, %24 : vector<64x32xf32>
    %cst_14 = arith.constant 0.000000e+00 : f32
    %26 = vector.broadcast %cst_14 : f32 to vector<64x32xf32>
    %27 = arith.maximumf %25, %26 : vector<64x32xf32>
    %cst_15 = arith.constant dense<0.000000e+00> : vector<64x96xf32>
    %28 = tpu.matmul %27, %4, %cst_15 {dimension_numbers = #tpu.dot_dimension_numbers<[1], [0], [0], [1], [0, 0, 1, 1], [], []>} : vector<64x32xf32>, vector<32x96xf32>, vector<64x96xf32> -> vector<64x96xf32>
    %29 = vector.broadcast %16 : vector<1x96xf32> to vector<64x96xf32>
    %30 = arith.addf %28, %29 : vector<64x96xf32>
    %c0_16 = arith.constant 0 : index
    %c0_17 = arith.constant 0 : index
    %31 = vector.load %arg6[%c0_16, %c0_17] : memref<64x96xf32, #tpu.memory_space<vmem>>, vector<64x96xf32>
    tpu.vector_store %arg6[%c0_16, %c0_17], %30 {strides = array<i32>} : memref<64x96xf32, #tpu.memory_space<vmem>>, vector<64x96xf32>,
    %32 = vector.shape_cast %17 : vector<1x96xf32> to vector<1x96xf32>
    %33 = vector.broadcast %32 : vector<1x96xf32> to vector<8x96xf32>
    %cst_18 = arith.constant 0.000000e+00 : f32
    %34 = vector.broadcast %cst_18 : f32 to vector<8x32xf32>
    %c0_i32 = arith.constant 0 : i32
    %c8_i32 = arith.constant 8 : i32
    %35 = arith.muli %c0_i32, %c8_i32 : i32
    %36 = tpu.assume_multiple %35, 8 : i32
    %37 = arith.index_cast %36 : i32 to index
    %c0_19 = arith.constant 0 : index
    %38 = vector.load %arg6[%37, %c0_19] : memref<64x96xf32, #tpu.memory_space<vmem>>, vector<8x96xf32>
    %cst_20 = arith.constant dense<0.000000e+00> : vector<8x96xf32>
    %39 = tpu.matmul %34, %6, %cst_20 {dimension_numbers = #tpu.dot_dimension_numbers<[1], [0], [0], [1], [0, 0, 1, 1], [], []>} : vector<8x32xf32>, vector<32x96xf32>, vector<8x96xf32> -> vector<8x96xf32>
    %40 = arith.addf %39, %33 : vector<8x96xf32>
    %41 = vector.extract_strided_slice %38 {offsets = [0, 0], sizes = [8, 32], strides = [1, 1]} : vector<8x96xf32> to vector<8x32xf32>
    %42 = vector.extract_strided_slice %40 {offsets = [0, 0], sizes = [8, 32], strides = [1, 1]} : vector<8x96xf32> to vector<8x32xf32>
    %43 = arith.addf %41, %42 : vector<8x32xf32>
    %44 = arith.negf %43 : vector<8x32xf32>
    %45 = math.exp %44 : vector<8x32xf32>
    %cst_21 = arith.constant 1.000000e+00 : f32
    %46 = vector.broadcast %cst_21 : f32 to vector<8x32xf32>
    %47 = arith.addf %46, %45 : vector<8x32xf32>
    %48 = arith.divf %46, %47 : vector<8x32xf32>
    %49 = vector.extract_strided_slice %38 {offsets = [0, 32], sizes = [8, 32], strides = [1, 1]} : vector<8x96xf32> to vector<8x32xf32>
    %50 = vector.extract_strided_slice %40 {offsets = [0, 32], sizes = [8, 32], strides = [1, 1]} : vector<8x96xf32> to vector<8x32xf32>
    %51 = arith.addf %49, %50 : vector<8x32xf32>
    %52 = arith.negf %51 : vector<8x32xf32>
    %53 = math.exp %52 : vector<8x32xf32>
    %cst_22 = arith.constant 1.000000e+00 : f32
    %54 = vector.broadcast %cst_22 : f32 to vector<8x32xf32>
    %55 = arith.addf %54, %53 : vector<8x32xf32>
    %56 = arith.divf %54, %55 : vector<8x32xf32>
    %57 = vector.extract_strided_slice %38 {offsets = [0, 64], sizes = [8, 32], strides = [1, 1]} : vector<8x96xf32> to vector<8x32xf32>
    %58 = vector.extract_strided_slice %40 {offsets = [0, 64], sizes = [8, 32], strides = [1, 1]} : vector<8x96xf32> to vector<8x32xf32>
    %59 = arith.mulf %48, %58 : vector<8x32xf32>
    %60 = arith.addf %57, %59 : vector<8x32xf32>
    %61 = math.tanh %60 : vector<8x32xf32>
    %cst_23 = arith.constant 1.000000e+00 : f32
    %62 = vector.broadcast %cst_23 : f32 to vector<8x32xf32>
    %63 = arith.subf %62, %56 : vector<8x32xf32>
    %64 = arith.mulf %63, %61 : vector<8x32xf32>
    %65 = arith.mulf %56, %34 : vector<8x32xf32>
    %66 = arith.addf %64, %65 : vector<8x32xf32>
    %67 = arith.index_cast %36 : i32 to index
    %c0_24 = arith.constant 0 : index
    %68 = vector.load %arg7[%67, %c0_24] : memref<64x32xf32, #tpu.memory_space<vmem>>, vector<8x32xf32>
    tpu.vector_store %arg7[%67, %c0_24], %66 {strides = array<i32>} : memref<64x32xf32, #tpu.memory_space<vmem>>, vector<8x32xf32>,
    %c1_i32 = arith.constant 1 : i32
    %c8_i32_25 = arith.constant 8 : i32
    %69 = arith.muli %c1_i32, %c8_i32_25 : i32
    %70 = tpu.assume_multiple %69, 8 : i32
    %71 = arith.index_cast %70 : i32 to index
    %c0_26 = arith.constant 0 : index
    %72 = vector.load %arg6[%71, %c0_26] : memref<64x96xf32, #tpu.memory_space<vmem>>, vector<8x96xf32>
    %cst_27 = arith.constant dense<0.000000e+00> : vector<8x96xf32>
    %73 = tpu.matmul %66, %6, %cst_27 {dimension_numbers = #tpu.dot_dimension_numbers<[1], [0], [0], [1], [0, 0, 1, 1], [], []>} : vector<8x32xf32>, vector<32x96xf32>, vector<8x96xf32> -> vector<8x96xf32>
    %74 = arith.addf %73, %33 : vector<8x96xf32>
    %75 = vector.extract_strided_slice %72 {offsets = [0, 0], sizes = [8, 32], strides = [1, 1]} : vector<8x96xf32> to vector<8x32xf32>
    %76 = vector.extract_strided_slice %74 {offsets = [0, 0], sizes = [8, 32], strides = [1, 1]} : vector<8x96xf32> to vector<8x32xf32>
    %77 = arith.addf %75, %76 : vector<8x32xf32>
    %78 = arith.negf %77 : vector<8x32xf32>
    %79 = math.exp %78 : vector<8x32xf32>
    %cst_28 = arith.constant 1.000000e+00 : f32
    %80 = vector.broadcast %cst_28 : f32 to vector<8x32xf32>
    %81 = arith.addf %80, %79 : vector<8x32xf32>
    %82 = arith.divf %80, %81 : vector<8x32xf32>
    %83 = vector.extract_strided_slice %72 {offsets = [0, 32], sizes = [8, 32], strides = [1, 1]} : vector<8x96xf32> to vector<8x32xf32>
    %84 = vector.extract_strided_slice %74 {offsets = [0, 32], sizes = [8, 32], strides = [1, 1]} : vector<8x96xf32> to vector<8x32xf32>
    %85 = arith.addf %83, %84 : vector<8x32xf32>
    %86 = arith.negf %85 : vector<8x32xf32>
    %87 = math.exp %86 : vector<8x32xf32>
    %cst_29 = arith.constant 1.000000e+00 : f32
    %88 = vector.broadcast %cst_29 : f32 to vector<8x32xf32>
    %89 = arith.addf %88, %87 : vector<8x32xf32>
    %90 = arith.divf %88, %89 : vector<8x32xf32>
    %91 = vector.extract_strided_slice %72 {offsets = [0, 64], sizes = [8, 32], strides = [1, 1]} : vector<8x96xf32> to vector<8x32xf32>
    %92 = vector.extract_strided_slice %74 {offsets = [0, 64], sizes = [8, 32], strides = [1, 1]} : vector<8x96xf32> to vector<8x32xf32>
    %93 = arith.mulf %82, %92 : vector<8x32xf32>
    %94 = arith.addf %91, %93 : vector<8x32xf32>
    %95 = math.tanh %94 : vector<8x32xf32>
    %cst_30 = arith.constant 1.000000e+00 : f32
    %96 = vector.broadcast %cst_30 : f32 to vector<8x32xf32>
    %97 = arith.subf %96, %90 : vector<8x32xf32>
    %98 = arith.mulf %97, %95 : vector<8x32xf32>
    %99 = arith.mulf %90, %66 : vector<8x32xf32>
    %100 = arith.addf %98, %99 : vector<8x32xf32>
    %101 = arith.index_cast %70 : i32 to index
    %c0_31 = arith.constant 0 : index
    %102 = vector.load %arg7[%101, %c0_31] : memref<64x32xf32, #tpu.memory_space<vmem>>, vector<8x32xf32>
    tpu.vector_store %arg7[%101, %c0_31], %100 {strides = array<i32>} : memref<64x32xf32, #tpu.memory_space<vmem>>, vector<8x32xf32>,
    %c2_i32 = arith.constant 2 : i32
    %c8_i32_32 = arith.constant 8 : i32
    %103 = arith.muli %c2_i32, %c8_i32_32 : i32
    %104 = tpu.assume_multiple %103, 8 : i32
    %105 = arith.index_cast %104 : i32 to index
    %c0_33 = arith.constant 0 : index
    %106 = vector.load %arg6[%105, %c0_33] : memref<64x96xf32, #tpu.memory_space<vmem>>, vector<8x96xf32>
    %cst_34 = arith.constant dense<0.000000e+00> : vector<8x96xf32>
    %107 = tpu.matmul %100, %6, %cst_34 {dimension_numbers = #tpu.dot_dimension_numbers<[1], [0], [0], [1], [0, 0, 1, 1], [], []>} : vector<8x32xf32>, vector<32x96xf32>, vector<8x96xf32> -> vector<8x96xf32>
    %108 = arith.addf %107, %33 : vector<8x96xf32>
    %109 = vector.extract_strided_slice %106 {offsets = [0, 0], sizes = [8, 32], strides = [1, 1]} : vector<8x96xf32> to vector<8x32xf32>
    %110 = vector.extract_strided_slice %108 {offsets = [0, 0], sizes = [8, 32], strides = [1, 1]} : vector<8x96xf32> to vector<8x32xf32>
    %111 = arith.addf %109, %110 : vector<8x32xf32>
    %112 = arith.negf %111 : vector<8x32xf32>
    %113 = math.exp %112 : vector<8x32xf32>
    %cst_35 = arith.constant 1.000000e+00 : f32
    %114 = vector.broadcast %cst_35 : f32 to vector<8x32xf32>
    %115 = arith.addf %114, %113 : vector<8x32xf32>
    %116 = arith.divf %114, %115 : vector<8x32xf32>
    %117 = vector.extract_strided_slice %106 {offsets = [0, 32], sizes = [8, 32], strides = [1, 1]} : vector<8x96xf32> to vector<8x32xf32>
    %118 = vector.extract_strided_slice %108 {offsets = [0, 32], sizes = [8, 32], strides = [1, 1]} : vector<8x96xf32> to vector<8x32xf32>
    %119 = arith.addf %117, %118 : vector<8x32xf32>
    %120 = arith.negf %119 : vector<8x32xf32>
    %121 = math.exp %120 : vector<8x32xf32>
    %cst_36 = arith.constant 1.000000e+00 : f32
    %122 = vector.broadcast %cst_36 : f32 to vector<8x32xf32>
    %123 = arith.addf %122, %121 : vector<8x32xf32>
    %124 = arith.divf %122, %123 : vector<8x32xf32>
    %125 = vector.extract_strided_slice %106 {offsets = [0, 64], sizes = [8, 32], strides = [1, 1]} : vector<8x96xf32> to vector<8x32xf32>
    %126 = vector.extract_strided_slice %108 {offsets = [0, 64], sizes = [8, 32], strides = [1, 1]} : vector<8x96xf32> to vector<8x32xf32>
    %127 = arith.mulf %116, %126 : vector<8x32xf32>
    %128 = arith.addf %125, %127 : vector<8x32xf32>
    %129 = math.tanh %128 : vector<8x32xf32>
    %cst_37 = arith.constant 1.000000e+00 : f32
    %130 = vector.broadcast %cst_37 : f32 to vector<8x32xf32>
    %131 = arith.subf %130, %124 : vector<8x32xf32>
    %132 = arith.mulf %131, %129 : vector<8x32xf32>
    %133 = arith.mulf %124, %100 : vector<8x32xf32>
    %134 = arith.addf %132, %133 : vector<8x32xf32>
    %135 = arith.index_cast %104 : i32 to index
    %c0_38 = arith.constant 0 : index
    %136 = vector.load %arg7[%135, %c0_38] : memref<64x32xf32, #tpu.memory_space<vmem>>, vector<8x32xf32>
    tpu.vector_store %arg7[%135, %c0_38], %134 {strides = array<i32>} : memref<64x32xf32, #tpu.memory_space<vmem>>, vector<8x32xf32>,
    %c3_i32 = arith.constant 3 : i32
    %c8_i32_39 = arith.constant 8 : i32
    %137 = arith.muli %c3_i32, %c8_i32_39 : i32
    %138 = tpu.assume_multiple %137, 8 : i32
    %139 = arith.index_cast %138 : i32 to index
    %c0_40 = arith.constant 0 : index
    %140 = vector.load %arg6[%139, %c0_40] : memref<64x96xf32, #tpu.memory_space<vmem>>, vector<8x96xf32>
    %cst_41 = arith.constant dense<0.000000e+00> : vector<8x96xf32>
    %141 = tpu.matmul %134, %6, %cst_41 {dimension_numbers = #tpu.dot_dimension_numbers<[1], [0], [0], [1], [0, 0, 1, 1], [], []>} : vector<8x32xf32>, vector<32x96xf32>, vector<8x96xf32> -> vector<8x96xf32>
    %142 = arith.addf %141, %33 : vector<8x96xf32>
    %143 = vector.extract_strided_slice %140 {offsets = [0, 0], sizes = [8, 32], strides = [1, 1]} : vector<8x96xf32> to vector<8x32xf32>
    %144 = vector.extract_strided_slice %142 {offsets = [0, 0], sizes = [8, 32], strides = [1, 1]} : vector<8x96xf32> to vector<8x32xf32>
    %145 = arith.addf %143, %144 : vector<8x32xf32>
    %146 = arith.negf %145 : vector<8x32xf32>
    %147 = math.exp %146 : vector<8x32xf32>
    %cst_42 = arith.constant 1.000000e+00 : f32
    %148 = vector.broadcast %cst_42 : f32 to vector<8x32xf32>
    %149 = arith.addf %148, %147 : vector<8x32xf32>
    %150 = arith.divf %148, %149 : vector<8x32xf32>
    %151 = vector.extract_strided_slice %140 {offsets = [0, 32], sizes = [8, 32], strides = [1, 1]} : vector<8x96xf32> to vector<8x32xf32>
    %152 = vector.extract_strided_slice %142 {offsets = [0, 32], sizes = [8, 32], strides = [1, 1]} : vector<8x96xf32> to vector<8x32xf32>
    %153 = arith.addf %151, %152 : vector<8x32xf32>
    %154 = arith.negf %153 : vector<8x32xf32>
    %155 = math.exp %154 : vector<8x32xf32>
    %cst_43 = arith.constant 1.000000e+00 : f32
    %156 = vector.broadcast %cst_43 : f32 to vector<8x32xf32>
    %157 = arith.addf %156, %155 : vector<8x32xf32>
    %158 = arith.divf %156, %157 : vector<8x32xf32>
    %159 = vector.extract_strided_slice %140 {offsets = [0, 64], sizes = [8, 32], strides = [1, 1]} : vector<8x96xf32> to vector<8x32xf32>
    %160 = vector.extract_strided_slice %142 {offsets = [0, 64], sizes = [8, 32], strides = [1, 1]} : vector<8x96xf32> to vector<8x32xf32>
    %161 = arith.mulf %150, %160 : vector<8x32xf32>
    %162 = arith.addf %159, %161 : vector<8x32xf32>
    %163 = math.tanh %162 : vector<8x32xf32>
    %cst_44 = arith.constant 1.000000e+00 : f32
    %164 = vector.broadcast %cst_44 : f32 to vector<8x32xf32>
    %165 = arith.subf %164, %158 : vector<8x32xf32>
    %166 = arith.mulf %165, %163 : vector<8x32xf32>
    %167 = arith.mulf %158, %134 : vector<8x32xf32>
    %168 = arith.addf %166, %167 : vector<8x32xf32>
    %169 = arith.index_cast %138 : i32 to index
    %c0_45 = arith.constant 0 : index
    %170 = vector.load %arg7[%169, %c0_45] : memref<64x32xf32, #tpu.memory_space<vmem>>, vector<8x32xf32>
    tpu.vector_store %arg7[%169, %c0_45], %168 {strides = array<i32>} : memref<64x32xf32, #tpu.memory_space<vmem>>, vector<8x32xf32>,
    %c4_i32 = arith.constant 4 : i32
    %c8_i32_46 = arith.constant 8 : i32
    %171 = arith.muli %c4_i32, %c8_i32_46 : i32
    %172 = tpu.assume_multiple %171, 8 : i32
    %173 = arith.index_cast %172 : i32 to index
    %c0_47 = arith.constant 0 : index
    %174 = vector.load %arg6[%173, %c0_47] : memref<64x96xf32, #tpu.memory_space<vmem>>, vector<8x96xf32>
    %cst_48 = arith.constant dense<0.000000e+00> : vector<8x96xf32>
    %175 = tpu.matmul %168, %6, %cst_48 {dimension_numbers = #tpu.dot_dimension_numbers<[1], [0], [0], [1], [0, 0, 1, 1], [], []>} : vector<8x32xf32>, vector<32x96xf32>, vector<8x96xf32> -> vector<8x96xf32>
    %176 = arith.addf %175, %33 : vector<8x96xf32>
    %177 = vector.extract_strided_slice %174 {offsets = [0, 0], sizes = [8, 32], strides = [1, 1]} : vector<8x96xf32> to vector<8x32xf32>
    %178 = vector.extract_strided_slice %176 {offsets = [0, 0], sizes = [8, 32], strides = [1, 1]} : vector<8x96xf32> to vector<8x32xf32>
    %179 = arith.addf %177, %178 : vector<8x32xf32>
    %180 = arith.negf %179 : vector<8x32xf32>
    %181 = math.exp %180 : vector<8x32xf32>
    %cst_49 = arith.constant 1.000000e+00 : f32
    %182 = vector.broadcast %cst_49 : f32 to vector<8x32xf32>
    %183 = arith.addf %182, %181 : vector<8x32xf32>
    %184 = arith.divf %182, %183 : vector<8x32xf32>
    %185 = vector.extract_strided_slice %174 {offsets = [0, 32], sizes = [8, 32], strides = [1, 1]} : vector<8x96xf32> to vector<8x32xf32>
    %186 = vector.extract_strided_slice %176 {offsets = [0, 32], sizes = [8, 32], strides = [1, 1]} : vector<8x96xf32> to vector<8x32xf32>
    %187 = arith.addf %185, %186 : vector<8x32xf32>
    %188 = arith.negf %187 : vector<8x32xf32>
    %189 = math.exp %188 : vector<8x32xf32>
    %cst_50 = arith.constant 1.000000e+00 : f32
    %190 = vector.broadcast %cst_50 : f32 to vector<8x32xf32>
    %191 = arith.addf %190, %189 : vector<8x32xf32>
    %192 = arith.divf %190, %191 : vector<8x32xf32>
    %193 = vector.extract_strided_slice %174 {offsets = [0, 64], sizes = [8, 32], strides = [1, 1]} : vector<8x96xf32> to vector<8x32xf32>
    %194 = vector.extract_strided_slice %176 {offsets = [0, 64], sizes = [8, 32], strides = [1, 1]} : vector<8x96xf32> to vector<8x32xf32>
    %195 = arith.mulf %184, %194 : vector<8x32xf32>
    %196 = arith.addf %193, %195 : vector<8x32xf32>
    %197 = math.tanh %196 : vector<8x32xf32>
    %cst_51 = arith.constant 1.000000e+00 : f32
    %198 = vector.broadcast %cst_51 : f32 to vector<8x32xf32>
    %199 = arith.subf %198, %192 : vector<8x32xf32>
    %200 = arith.mulf %199, %197 : vector<8x32xf32>
    %201 = arith.mulf %192, %168 : vector<8x32xf32>
    %202 = arith.addf %200, %201 : vector<8x32xf32>
    %203 = arith.index_cast %172 : i32 to index
    %c0_52 = arith.constant 0 : index
    %204 = vector.load %arg7[%203, %c0_52] : memref<64x32xf32, #tpu.memory_space<vmem>>, vector<8x32xf32>
    tpu.vector_store %arg7[%203, %c0_52], %202 {strides = array<i32>} : memref<64x32xf32, #tpu.memory_space<vmem>>, vector<8x32xf32>,
    %c5_i32 = arith.constant 5 : i32
    %c8_i32_53 = arith.constant 8 : i32
    %205 = arith.muli %c5_i32, %c8_i32_53 : i32
    %206 = tpu.assume_multiple %205, 8 : i32
    %207 = arith.index_cast %206 : i32 to index
    %c0_54 = arith.constant 0 : index
    %208 = vector.load %arg6[%207, %c0_54] : memref<64x96xf32, #tpu.memory_space<vmem>>, vector<8x96xf32>
    %cst_55 = arith.constant dense<0.000000e+00> : vector<8x96xf32>
    %209 = tpu.matmul %202, %6, %cst_55 {dimension_numbers = #tpu.dot_dimension_numbers<[1], [0], [0], [1], [0, 0, 1, 1], [], []>} : vector<8x32xf32>, vector<32x96xf32>, vector<8x96xf32> -> vector<8x96xf32>
    %210 = arith.addf %209, %33 : vector<8x96xf32>
    %211 = vector.extract_strided_slice %208 {offsets = [0, 0], sizes = [8, 32], strides = [1, 1]} : vector<8x96xf32> to vector<8x32xf32>
    %212 = vector.extract_strided_slice %210 {offsets = [0, 0], sizes = [8, 32], strides = [1, 1]} : vector<8x96xf32> to vector<8x32xf32>
    %213 = arith.addf %211, %212 : vector<8x32xf32>
    %214 = arith.negf %213 : vector<8x32xf32>
    %215 = math.exp %214 : vector<8x32xf32>
    %cst_56 = arith.constant 1.000000e+00 : f32
    %216 = vector.broadcast %cst_56 : f32 to vector<8x32xf32>
    %217 = arith.addf %216, %215 : vector<8x32xf32>
    %218 = arith.divf %216, %217 : vector<8x32xf32>
    %219 = vector.extract_strided_slice %208 {offsets = [0, 32], sizes = [8, 32], strides = [1, 1]} : vector<8x96xf32> to vector<8x32xf32>
    %220 = vector.extract_strided_slice %210 {offsets = [0, 32], sizes = [8, 32], strides = [1, 1]} : vector<8x96xf32> to vector<8x32xf32>
    %221 = arith.addf %219, %220 : vector<8x32xf32>
    %222 = arith.negf %221 : vector<8x32xf32>
    %223 = math.exp %222 : vector<8x32xf32>
    %cst_57 = arith.constant 1.000000e+00 : f32
    %224 = vector.broadcast %cst_57 : f32 to vector<8x32xf32>
    %225 = arith.addf %224, %223 : vector<8x32xf32>
    %226 = arith.divf %224, %225 : vector<8x32xf32>
    %227 = vector.extract_strided_slice %208 {offsets = [0, 64], sizes = [8, 32], strides = [1, 1]} : vector<8x96xf32> to vector<8x32xf32>
    %228 = vector.extract_strided_slice %210 {offsets = [0, 64], sizes = [8, 32], strides = [1, 1]} : vector<8x96xf32> to vector<8x32xf32>
    %229 = arith.mulf %218, %228 : vector<8x32xf32>
    %230 = arith.addf %227, %229 : vector<8x32xf32>
    %231 = math.tanh %230 : vector<8x32xf32>
    %cst_58 = arith.constant 1.000000e+00 : f32
    %232 = vector.broadcast %cst_58 : f32 to vector<8x32xf32>
    %233 = arith.subf %232, %226 : vector<8x32xf32>
    %234 = arith.mulf %233, %231 : vector<8x32xf32>
    %235 = arith.mulf %226, %202 : vector<8x32xf32>
    %236 = arith.addf %234, %235 : vector<8x32xf32>
    %237 = arith.index_cast %206 : i32 to index
    %c0_59 = arith.constant 0 : index
    %238 = vector.load %arg7[%237, %c0_59] : memref<64x32xf32, #tpu.memory_space<vmem>>, vector<8x32xf32>
    tpu.vector_store %arg7[%237, %c0_59], %236 {strides = array<i32>} : memref<64x32xf32, #tpu.memory_space<vmem>>, vector<8x32xf32>,
    %c6_i32 = arith.constant 6 : i32
    %c8_i32_60 = arith.constant 8 : i32
    %239 = arith.muli %c6_i32, %c8_i32_60 : i32
    %240 = tpu.assume_multiple %239, 8 : i32
    %241 = arith.index_cast %240 : i32 to index
    %c0_61 = arith.constant 0 : index
    %242 = vector.load %arg6[%241, %c0_61] : memref<64x96xf32, #tpu.memory_space<vmem>>, vector<8x96xf32>
    %cst_62 = arith.constant dense<0.000000e+00> : vector<8x96xf32>
    %243 = tpu.matmul %236, %6, %cst_62 {dimension_numbers = #tpu.dot_dimension_numbers<[1], [0], [0], [1], [0, 0, 1, 1], [], []>} : vector<8x32xf32>, vector<32x96xf32>, vector<8x96xf32> -> vector<8x96xf32>
    %244 = arith.addf %243, %33 : vector<8x96xf32>
    %245 = vector.extract_strided_slice %242 {offsets = [0, 0], sizes = [8, 32], strides = [1, 1]} : vector<8x96xf32> to vector<8x32xf32>
    %246 = vector.extract_strided_slice %244 {offsets = [0, 0], sizes = [8, 32], strides = [1, 1]} : vector<8x96xf32> to vector<8x32xf32>
    %247 = arith.addf %245, %246 : vector<8x32xf32>
    %248 = arith.negf %247 : vector<8x32xf32>
    %249 = math.exp %248 : vector<8x32xf32>
    %cst_63 = arith.constant 1.000000e+00 : f32
    %250 = vector.broadcast %cst_63 : f32 to vector<8x32xf32>
    %251 = arith.addf %250, %249 : vector<8x32xf32>
    %252 = arith.divf %250, %251 : vector<8x32xf32>
    %253 = vector.extract_strided_slice %242 {offsets = [0, 32], sizes = [8, 32], strides = [1, 1]} : vector<8x96xf32> to vector<8x32xf32>
    %254 = vector.extract_strided_slice %244 {offsets = [0, 32], sizes = [8, 32], strides = [1, 1]} : vector<8x96xf32> to vector<8x32xf32>
    %255 = arith.addf %253, %254 : vector<8x32xf32>
    %256 = arith.negf %255 : vector<8x32xf32>
    %257 = math.exp %256 : vector<8x32xf32>
    %cst_64 = arith.constant 1.000000e+00 : f32
    %258 = vector.broadcast %cst_64 : f32 to vector<8x32xf32>
    %259 = arith.addf %258, %257 : vector<8x32xf32>
    %260 = arith.divf %258, %259 : vector<8x32xf32>
    %261 = vector.extract_strided_slice %242 {offsets = [0, 64], sizes = [8, 32], strides = [1, 1]} : vector<8x96xf32> to vector<8x32xf32>
    %262 = vector.extract_strided_slice %244 {offsets = [0, 64], sizes = [8, 32], strides = [1, 1]} : vector<8x96xf32> to vector<8x32xf32>
    %263 = arith.mulf %252, %262 : vector<8x32xf32>
    %264 = arith.addf %261, %263 : vector<8x32xf32>
    %265 = math.tanh %264 : vector<8x32xf32>
    %cst_65 = arith.constant 1.000000e+00 : f32
    %266 = vector.broadcast %cst_65 : f32 to vector<8x32xf32>
    %267 = arith.subf %266, %260 : vector<8x32xf32>
    %268 = arith.mulf %267, %265 : vector<8x32xf32>
    %269 = arith.mulf %260, %236 : vector<8x32xf32>
    %270 = arith.addf %268, %269 : vector<8x32xf32>
    %271 = arith.index_cast %240 : i32 to index
    %c0_66 = arith.constant 0 : index
    %272 = vector.load %arg7[%271, %c0_66] : memref<64x32xf32, #tpu.memory_space<vmem>>, vector<8x32xf32>
    tpu.vector_store %arg7[%271, %c0_66], %270 {strides = array<i32>} : memref<64x32xf32, #tpu.memory_space<vmem>>, vector<8x32xf32>,
    %c7_i32 = arith.constant 7 : i32
    %c8_i32_67 = arith.constant 8 : i32
    %273 = arith.muli %c7_i32, %c8_i32_67 : i32
    %274 = tpu.assume_multiple %273, 8 : i32
    %275 = arith.index_cast %274 : i32 to index
    %c0_68 = arith.constant 0 : index
    %276 = vector.load %arg6[%275, %c0_68] : memref<64x96xf32, #tpu.memory_space<vmem>>, vector<8x96xf32>
    %cst_69 = arith.constant dense<0.000000e+00> : vector<8x96xf32>
    %277 = tpu.matmul %270, %6, %cst_69 {dimension_numbers = #tpu.dot_dimension_numbers<[1], [0], [0], [1], [0, 0, 1, 1], [], []>} : vector<8x32xf32>, vector<32x96xf32>, vector<8x96xf32> -> vector<8x96xf32>
    %278 = arith.addf %277, %33 : vector<8x96xf32>
    %279 = vector.extract_strided_slice %276 {offsets = [0, 0], sizes = [8, 32], strides = [1, 1]} : vector<8x96xf32> to vector<8x32xf32>
    %280 = vector.extract_strided_slice %278 {offsets = [0, 0], sizes = [8, 32], strides = [1, 1]} : vector<8x96xf32> to vector<8x32xf32>
    %281 = arith.addf %279, %280 : vector<8x32xf32>
    %282 = arith.negf %281 : vector<8x32xf32>
    %283 = math.exp %282 : vector<8x32xf32>
    %cst_70 = arith.constant 1.000000e+00 : f32
    %284 = vector.broadcast %cst_70 : f32 to vector<8x32xf32>
    %285 = arith.addf %284, %283 : vector<8x32xf32>
    %286 = arith.divf %284, %285 : vector<8x32xf32>
    %287 = vector.extract_strided_slice %276 {offsets = [0, 32], sizes = [8, 32], strides = [1, 1]} : vector<8x96xf32> to vector<8x32xf32>
    %288 = vector.extract_strided_slice %278 {offsets = [0, 32], sizes = [8, 32], strides = [1, 1]} : vector<8x96xf32> to vector<8x32xf32>
    %289 = arith.addf %287, %288 : vector<8x32xf32>
    %290 = arith.negf %289 : vector<8x32xf32>
    %291 = math.exp %290 : vector<8x32xf32>
    %cst_71 = arith.constant 1.000000e+00 : f32
    %292 = vector.broadcast %cst_71 : f32 to vector<8x32xf32>
    %293 = arith.addf %292, %291 : vector<8x32xf32>
    %294 = arith.divf %292, %293 : vector<8x32xf32>
    %295 = vector.extract_strided_slice %276 {offsets = [0, 64], sizes = [8, 32], strides = [1, 1]} : vector<8x96xf32> to vector<8x32xf32>
    %296 = vector.extract_strided_slice %278 {offsets = [0, 64], sizes = [8, 32], strides = [1, 1]} : vector<8x96xf32> to vector<8x32xf32>
    %297 = arith.mulf %286, %296 : vector<8x32xf32>
    %298 = arith.addf %295, %297 : vector<8x32xf32>
    %299 = math.tanh %298 : vector<8x32xf32>
    %cst_72 = arith.constant 1.000000e+00 : f32
    %300 = vector.broadcast %cst_72 : f32 to vector<8x32xf32>
    %301 = arith.subf %300, %294 : vector<8x32xf32>
    %302 = arith.mulf %301, %299 : vector<8x32xf32>
    %303 = arith.mulf %294, %270 : vector<8x32xf32>
    %304 = arith.addf %302, %303 : vector<8x32xf32>
    %305 = arith.index_cast %274 : i32 to index
    %c0_73 = arith.constant 0 : index
    %306 = vector.load %arg7[%305, %c0_73] : memref<64x32xf32, #tpu.memory_space<vmem>>, vector<8x32xf32>
    tpu.vector_store %arg7[%305, %c0_73], %304 {strides = array<i32>} : memref<64x32xf32, #tpu.memory_space<vmem>>, vector<8x32xf32>,
    %c8_i32_74 = arith.constant 8 : i32
    %c0_75 = arith.constant 0 : index
    %c0_76 = arith.constant 0 : index
    %307 = vector.load %arg7[%c0_75, %c0_76] : memref<64x32xf32, #tpu.memory_space<vmem>>, vector<64x32xf32>
    %cst_77 = arith.constant dense<0.000000e+00> : vector<64x96xf32>
    %308 = tpu.matmul %307, %8, %cst_77 {dimension_numbers = #tpu.dot_dimension_numbers<[1], [0], [0], [1], [0, 0, 1, 1], [], []>} : vector<64x32xf32>, vector<32x96xf32>, vector<64x96xf32> -> vector<64x96xf32>
    %309 = vector.broadcast %18 : vector<1x96xf32> to vector<64x96xf32>
    %310 = arith.addf %308, %309 : vector<64x96xf32>
    %311 = vector.shape_cast %310 : vector<64x96xf32> to vector<8x8x96xf32>
    %312 = tpu.transpose %311, [1, 0, 2] : vector<8x8x96xf32> -> vector<8x8x96xf32>
    %313 = vector.extract_strided_slice %312 {offsets = [0, 0, 0], sizes = [8, 8, 32], strides = [1, 1, 1]} : vector<8x8x96xf32> to vector<8x8x32xf32>
    %314 = vector.extract_strided_slice %312 {offsets = [0, 0, 32], sizes = [8, 8, 32], strides = [1, 1, 1]} : vector<8x8x96xf32> to vector<8x8x32xf32>
    %315 = vector.extract_strided_slice %312 {offsets = [0, 0, 64], sizes = [8, 8, 32], strides = [1, 1, 1]} : vector<8x8x96xf32> to vector<8x8x32xf32>
    "tpu.trace_start"() <{level = 10 : i32, message = "bqd,bkd->bqk"}> : () -> ()
    %cst_78 = arith.constant dense<0.000000e+00> : vector<8x8x8xf32>
    %316 = tpu.matmul %313, %314, %cst_78 {dimension_numbers = #tpu.dot_dimension_numbers<[2], [2], [1], [1], [0, 0, 0, 1, 1, 1], [0], [0]>} : vector<8x8x32xf32>, vector<8x8x32xf32>, vector<8x8x8xf32> -> vector<8x8x8xf32>
    "tpu.trace_stop"() : () -> ()
    %cst_79 = arith.constant 0.176776692 : f32
    %317 = vector.broadcast %cst_79 : f32 to vector<8x8x8xf32>
    %318 = arith.mulf %316, %317 : vector<8x8x8xf32>
    %cst_80 = arith.constant dense<0xFF800000> : vector<8x8xf32>
    %319 = vector.multi_reduction <maximumf>, %318, %cst_80 [2] : vector<8x8x8xf32> to vector<8x8xf32>
    %320 = vector.shape_cast %319 : vector<8x8xf32> to vector<8x8x1xf32>
    %321 = vector.broadcast %320 : vector<8x8x1xf32> to vector<8x8x8xf32>
    %322 = arith.subf %318, %321 : vector<8x8x8xf32>
    %323 = math.exp %322 : vector<8x8x8xf32>
    %cst_81 = arith.constant dense<0.000000e+00> : vector<8x8xf32>
    %324 = vector.multi_reduction <add>, %323, %cst_81 [2] : vector<8x8x8xf32> to vector<8x8xf32>
    %325 = vector.shape_cast %324 : vector<8x8xf32> to vector<8x8x1xf32>
    %326 = vector.broadcast %325 : vector<8x8x1xf32> to vector<8x8x8xf32>
    %327 = arith.divf %323, %326 : vector<8x8x8xf32>
    %328 = vector.shape_cast %327 : vector<8x8x8xf32> to vector<64x8xf32>
    %c0_82 = arith.constant 0 : index
    %c0_83 = arith.constant 0 : index
    %329 = vector.load %arg5[%c0_82, %c0_83] : memref<64x8xf32, #tpu.memory_space<vmem>>, vector<64x8xf32>
    tpu.vector_store %arg5[%c0_82, %c0_83], %328 {strides = array<i32>} : memref<64x8xf32, #tpu.memory_space<vmem>>, vector<64x8xf32>,
    "tpu.trace_start"() <{level = 10 : i32, message = "bqk,bkd->bqd"}> : () -> ()
    %cst_84 = arith.constant dense<0.000000e+00> : vector<8x8x32xf32>
    %330 = tpu.matmul %327, %315, %cst_84 {dimension_numbers = #tpu.dot_dimension_numbers<[2], [1], [1], [2], [0, 0, 0, 1, 1, 2], [0], [0]>} : vector<8x8x8xf32>, vector<8x8x32xf32>, vector<8x8x32xf32> -> vector<8x8x32xf32>
    "tpu.trace_stop"() : () -> ()
    %331 = vector.extract_strided_slice %330 {offsets = [0, 7, 0], sizes = [8, 1, 32], strides = [1, 1, 1]} : vector<8x8x32xf32> to vector<8x1x32xf32>
    %332 = vector.shape_cast %331 : vector<8x1x32xf32> to vector<8x32xf32>
    %cst_85 = arith.constant dense<0.000000e+00> : vector<8x32xf32>
    %333 = tpu.matmul %332, %11, %cst_85 {dimension_numbers = #tpu.dot_dimension_numbers<[1], [0], [0], [1], [0, 0, 1, 1], [], []>} : vector<8x32xf32>, vector<32x32xf32>, vector<8x32xf32> -> vector<8x32xf32>
    %334 = vector.broadcast %19 : vector<1x32xf32> to vector<8x32xf32>
    %335 = arith.addf %333, %334 : vector<8x32xf32>
    %cst_86 = arith.constant dense<0.000000e+00> : vector<8x16xf32>
    %336 = tpu.matmul %335, %12, %cst_86 {dimension_numbers = #tpu.dot_dimension_numbers<[1], [0], [0], [1], [0, 0, 1, 1], [], []>} : vector<8x32xf32>, vector<32x16xf32>, vector<8x16xf32> -> vector<8x16xf32>
    %337 = vector.broadcast %20 : vector<1x16xf32> to vector<8x16xf32>
    %338 = arith.addf %336, %337 : vector<8x16xf32>
    %cst_87 = arith.constant 0.000000e+00 : f32
    %339 = vector.broadcast %cst_87 : f32 to vector<8x16xf32>
    %340 = arith.maximumf %338, %339 : vector<8x16xf32>
    %cst_88 = arith.constant dense<0.000000e+00> : vector<8x4xf32>
    %341 = tpu.matmul %340, %13, %cst_88 {dimension_numbers = #tpu.dot_dimension_numbers<[1], [0], [0], [1], [0, 0, 1, 1], [], []>} : vector<8x16xf32>, vector<16x4xf32>, vector<8x4xf32> -> vector<8x4xf32>
    %342 = vector.broadcast %21 : vector<1x4xf32> to vector<8x4xf32>
    %343 = arith.addf %341, %342 : vector<8x4xf32>
    %344 = vector.extract_strided_slice %343 {offsets = [0, 0], sizes = [8, 3], strides = [1, 1]} : vector<8x4xf32> to vector<8x3xf32>
    %345 = vector.extract_strided_slice %343 {offsets = [0, 3], sizes = [8, 1], strides = [1, 1]} : vector<8x4xf32> to vector<8x1xf32>
    %c0_89 = arith.constant 0 : index
    %c0_90 = arith.constant 0 : index
    %346 = memref.load %arg3[%c0_89, %c0_90] : memref<1x1xf32, #tpu.memory_space<smem>>
    %cst_91 = arith.constant 1.000000e-01 : f32
    %347 = arith.maximumf %346, %cst_91 : f32
    %348 = vector.broadcast %347 : f32 to vector<8x3xf32>
    %349 = arith.divf %344, %348 : vector<8x3xf32>
    %cst_92 = arith.constant dense<0xFF800000> : vector<8xf32>
    %350 = vector.multi_reduction <maximumf>, %349, %cst_92 [1] : vector<8x3xf32> to vector<8xf32>
    %351 = vector.shape_cast %350 : vector<8xf32> to vector<8x1xf32>
    %352 = vector.broadcast %351 : vector<8x1xf32> to vector<8x3xf32>
    %353 = arith.subf %349, %352 : vector<8x3xf32>
    %354 = math.exp %353 : vector<8x3xf32>
    %cst_93 = arith.constant dense<0.000000e+00> : vector<8xf32>
    %355 = vector.multi_reduction <add>, %354, %cst_93 [1] : vector<8x3xf32> to vector<8xf32>
    %356 = vector.shape_cast %355 : vector<8xf32> to vector<8x1xf32>
    %357 = vector.broadcast %356 : vector<8x1xf32> to vector<8x3xf32>
    %358 = arith.divf %354, %357 : vector<8x3xf32>
    %359 = vector.broadcast %351 : vector<8x1xf32> to vector<8x3xf32>
    %360 = arith.subf %349, %359 : vector<8x3xf32>
    %361 = math.log %356 : vector<8x1xf32>
    %362 = vector.broadcast %361 : vector<8x1xf32> to vector<8x3xf32>
    %363 = arith.subf %360, %362 : vector<8x3xf32>
    %364 = arith.mulf %358, %363 : vector<8x3xf32>
    %cst_94 = arith.constant dense<0.000000e+00> : vector<8xf32>
    %365 = vector.multi_reduction <add>, %364, %cst_94 [1] : vector<8x3xf32> to vector<8xf32>
    %366 = vector.shape_cast %365 : vector<8xf32> to vector<8x1xf32>
    %cst_95 = arith.constant 0.000000e+00 : f32
    %367 = vector.broadcast %cst_95 : f32 to vector<8x1xf32>
    %368 = arith.subf %367, %366 : vector<8x1xf32>
    %369 = tpu.concatenate %358, %344, %363, %368, %345 in 1 : vector<8x3xf32>, vector<8x3xf32>, vector<8x3xf32>, vector<8x1xf32>, vector<8x1xf32> -> vector<8x11xf32>
    %c0_96 = arith.constant 0 : index
    %c0_97 = arith.constant 0 : index
    %370 = vector.load %arg4[%c0_96, %c0_97] : memref<8x11xf32, #tpu.memory_space<vmem>>, vector<8x11xf32>
    tpu.vector_store %arg4[%c0_96, %c0_97], %369 {strides = array<i32>} : memref<8x11xf32, #tpu.memory_space<vmem>>, vector<8x11xf32>,
    return
  }
}

</mosaic_0001>

<llo_original>
// kernel: tpu_custom_call.1
$region0: #{tpu_custom_call.1}
  #allocation0 [shape = 'u32[]', space=smem, size = 0x4, offset = 0x4, fixed_abs, tag = 'smem constant byte address 0x4 - core index']
  #allocation1 [shape = 'u32[144,128]{1,0:T(1,128)}', space=vmem, size = 0x12000, scoped, tag = 'internal scratch']
  #allocation2 [shape = 'f32[64,96]{1,0:T(8,128)}', space=vmem, size = 0x8000, scoped, tag = 'scratch operand']
  #allocation3 [shape = 'f32[64,32]{1,0:T(8,128)}', space=vmem, size = 0x8000, scoped, tag = 'scratch operand']
  #allocation4 [shape = 'f32[1,1]{1,0:T(1,128)S(6)}', space=smem, size = 0x200, scoped, tag = 'scoped memory for tpu_custom_call.1']
  %s0 = inlined_call_operand.vmem [shape: f32[64,24], index: 0, kind: input, shape index: {}]
  %s1 = inlined_call_operand.hbm [shape: f32[5,32,96], index: 1, kind: input, shape index: {}]
  %s2 = inlined_call_operand.vmem [shape: f32[8,96], index: 2, kind: input, shape index: {}]
  %s3 = inlined_call_operand.<no memory space> [shape: f32[1,1], index: 3, kind: input, shape index: {}]
  %s4 = inlined_call_operand.hbm [shape: f32[8,11], index: 4, kind: output, shape index: {0}]
  %s5 = inlined_call_operand.vmem [shape: f32[64,8], index: 5, kind: output, shape index: {1}]
  %6 = xla_tuple %s4, %s5
  %s7 = sld [smem:[#allocation0]]
  $region38: #{tpu_custom_call.1} parent=0
    _
  %s9 = ssub.s32 1, %s7
  %s10 = scalar_select 0, %s9, %s7
  %11 = sst [smem:[#allocation4]] %s3
  $region1: #{tpu_custom_call.1} parent=0
    #allocation5 [shape = 'u8[81920]{0}', space=vmem, size = 0x14000, scoped, tag = 'input window, operand 1, single buffered']
    #allocation6 [shape = 's32[1]{0}', space=sflag, size = 0x4, scoped, tag = 'scoped memory for tpu_custom_call.1']
    #allocation7 [shape = 's32[1]{0}', space=sflag, size = 0x4, scoped, tag = 'scoped memory for tpu_custom_call.1']
    #allocation8 [shape = 'u8[4096]{0}', space=vmem, size = 0x1000, scoped, tag = 'output window, operand 0, single buffered']
    %12 = vsyncpa [#allocation6], 0
    %13 = vsyncpa [#allocation7], 0
    // Predicated region
    $region2: #{tpu_custom_call.1} parent=1 // pred_check
      _
    $region3: #{tpu_custom_call.1} parent=1 // pred_check_branch
      %15 = sbr.rel (0) target = $region5
    $region4: #{tpu_custom_call.1} parent=1 // pred_region
      _
    $region5: #{tpu_custom_call.1} parent=1 // pred_fallthru
      _
    // Predicated region
    $region6: #{tpu_custom_call.1} parent=1 // pred_check
      _
    $region7: #{tpu_custom_call.1} parent=1 // pred_check_branch
      %17 = sbr.rel (0) target = $region9
    $region8: #{tpu_custom_call.1} parent=1 // pred_region
      %s19 = ssub.s32 2560, 2560
      %20 = vsyncadd [#allocation6], %s19
      %s21 = sshll.u32 [#allocation5], 4
      %s22 = int_to_ptr.vmem [resolvable:$true] %s21
      %27 = dma.hbm_to_vmem [thread:$0]  %s1, 2560, %s22, [#allocation6], 128, 128, 8
    $region9: #{tpu_custom_call.1} parent=1 // pred_fallthru
      _
    // Predicated region
    $region10: #{tpu_custom_call.1} parent=1 // pred_check
      _
    $region11: #{tpu_custom_call.1} parent=1 // pred_check_branch
      %29 = sbr.rel (0) target = $region13
    $region12: #{tpu_custom_call.1} parent=1 // pred_region
      _
    $region13: #{tpu_custom_call.1} parent=1 // pred_fallthru
      _
    // Predicated region
    $region14: #{tpu_custom_call.1} parent=1 // pred_check
      _
    $region15: #{tpu_custom_call.1} parent=1 // pred_check_branch
      %31 = sbr.rel (0) target = $region17
    $region16: #{tpu_custom_call.1} parent=1 // pred_region
      _
    $region17: #{tpu_custom_call.1} parent=1 // pred_fallthru
      _
    // Predicated region
    $region18: #{tpu_custom_call.1} parent=1 // pred_check
      _
    $region19: #{tpu_custom_call.1} parent=1 // pred_check_branch
      %33 = sbr.rel (0) target = $region21
    $region20: #{tpu_custom_call.1} parent=1 // pred_region
      %34 = dma.done [#allocation6], 2560
    $region21: #{tpu_custom_call.1} parent=1 // pred_fallthru
      _
    %v35 = vld [vmem:[#allocation5] sm:$0xff]
    %v36 = vld [vmem:[#allocation5 + $0x8] sm:$0xff]
    %v37 = vld [vmem:[#allocation5 + $0x10] sm:$0xff]
    %s38 = scalar_lea.vmem [#allocation5], 32
    %v39 = vld [vmem:[%s38] sm:$0xff]
    %v40 = vld [vmem:[%s38 + $0x8] sm:$0xff]
    %v41 = vld [vmem:[%s38 + $0x10] sm:$0xff]
    %v42 = vld [vmem:[%s38 + $0x18] sm:$0xff]
    %s43 = scalar_lea.vmem [#allocation5], 64
    %v44 = vld [vmem:[%s43] sm:$0xff]
    %v45 = vld [vmem:[%s43 + $0x8] sm:$0xff]
    %v46 = vld [vmem:[%s43 + $0x10] sm:$0xff]
    %v47 = vld [vmem:[%s43 + $0x18] sm:$0xff]
    %s48 = scalar_lea.vmem [#allocation5], 96
    %v49 = vld [vmem:[%s48] sm:$0xff]
    %v50 = vld [vmem:[%s48 + $0x8] sm:$0xff]
    %v51 = vld [vmem:[%s48 + $0x10] sm:$0xff]
    %v52 = vld [vmem:[%s48 + $0x18] sm:$0xff]
    %s53 = scalar_lea.vmem [#allocation5], 128
    %v54 = vld [vmem:[%s53] sm:$0xff]
    %v55 = vld [vmem:[%s53 + $0x8] sm:$0xff]
    %v56 = vld [vmem:[%s53 + $0x10] sm:$0xff]
    %v57 = vld [vmem:[%s53 + $0x18] sm:$0xff]
    %v58 = vld [vmem:[%s2] sm:$0xff]
    %v59 = vld [vmem:[%s0] sm:$0xff]
    %v60 = vld [vmem:[%s0 + $0x8] sm:$0xff]
    %v61 = vld [vmem:[%s0 + $0x10] sm:$0xff]
    %v62 = vld [vmem:[%s0 + $0x18] sm:$0xff]
    %v63 = vld [vmem:[%s0 + $0x20] sm:$0xff]
    %v64 = vld [vmem:[%s0 + $0x28] sm:$0xff]
    %v65 = vld [vmem:[%s0 + $0x30] sm:$0xff]
    %v66 = vld [vmem:[%s0 + $0x38] sm:$0xff]
    %v67 = vlaneseq
    %v68 = vshrl.u32 %v67, 7
    %v69 = vsub.s32 0, %v68
    %v70 = vrot.slane %v58, %v69
    %vm71 = vcmask 195584
    %v73 = vsel %vm71, %v59, 0
    %v76 = vsel %vm71, %v60, 0
    %v79 = vsel %vm71, %v61, 0
    %v82 = vsel %vm71, %v62, 0
    %v85 = vsel %vm71, %v63, 0
    %v88 = vsel %vm71, %v64, 0
    %v91 = vsel %vm71, %v65, 0
    %v94 = vsel %vm71, %v66, 0
    %96 = vmatprep.subr.mxu0 0.0
    %97 = vmatpush1.msra.mxu0 %v35
    %98 = vmatprep.subr.mxu0 0.0
    %99 = vmatpush1.msra.mxu0 %v36
    %100 = vmatprep.subr.mxu0 0.0
    %101 = vmatpush1.msra.mxu0 %v37
    %102 = vmatprep.subr.mxu0 0.0
    %103 = vmatpush1.msra.mxu0 0.0
    %104 = vmatprep.subr.mxu0 0.0
    %105 = vmatpush1.msra.mxu0 0.0
    %106 = vmatprep.subr.mxu0 0.0
    %107 = vmatpush1.msra.mxu0 0.0
    %108 = vmatprep.subr.mxu0 0.0
    %109 = vmatpush1.msra.mxu0 0.0
    %110 = vmatprep.subr.mxu0 0.0
    %111 = vmatpush1.msra.mxu0 0.0
    %112 = vmatprep.subr.mxu0 0.0
    %113 = vmatpush1.msra.mxu0 0.0
    %114 = vmatprep.subr.mxu0 0.0
    %115 = vmatpush1.msra.mxu0 0.0
    %116 = vmatprep.subr.mxu0 0.0
    %117 = vmatpush1.msra.mxu0 0.0
    %118 = vmatprep.subr.mxu0 0.0
    %119 = vmatpush1.msra.mxu0 0.0
    %120 = vmatprep.subr.mxu0 0.0
    %121 = vmatpush1.msra.mxu0 0.0
    %122 = vmatprep.subr.mxu0 0.0
    %123 = vmatpush1.msra.mxu0 0.0
    %124 = vmatprep.subr.mxu0 0.0
    %125 = vmatpush1.msra.mxu0 0.0
    %126 = vmatprep.subr.mxu0 0.0
    %127 = vmatpush1.msra.mxu0 0.0
    %128 = vmatprep.subr.mxu0 0.0
    %129 = vmatpush1.msra.mxu0 0.0
    %130 = vmatprep.subr.mxu0 0.0
    %131 = vmatpush1.msra.mxu0 0.0
    %132 = vmatprep.subr.mxu0 0.0
    %133 = vmatpush1.msra.mxu0 0.0
    %134 = vmatprep.subr.mxu0 0.0
    %135 = vmatpush1.msra.mxu0 0.0
    %136 = vmatprep.subr.mxu0 0.0
    %137 = vmatpush1.msra.mxu0 0.0
    %138 = vmatprep.subr.mxu0 0.0
    %139 = vmatpush1.msra.mxu0 0.0
    %140 = vmatprep.subr.mxu0 0.0
    %141 = vmatpush1.msra.mxu0 0.0
    %142 = vmatprep.subr.mxu0 0.0
    %143 = vmatpush1.msra.mxu0 0.0
    %144 = vmatprep.subr.mxu0 0.0
    %145 = vmatpush1.msra.mxu0 0.0
    %146 = vmatprep.subr.mxu0 0.0
    %147 = vmatpush1.msra.mxu0 0.0
    %148 = vmatprep.subr.mxu0 0.0
    %149 = vmatpush1.msra.mxu0 0.0
    %150 = vmatprep.subr.mxu0 0.0
    %151 = vmatpush1.msra.mxu0 0.0
    %152 = vmatprep.subr.mxu0 0.0
    %153 = vmatpush1.msra.mxu0 0.0
    %154 = vmatprep.subr.mxu0 0.0
    %155 = vmatpush1.msra.mxu0 0.0
    %156 = vmatprep.subr.mxu0 0.0
    %157 = vmatpush1.msra.mxu0 0.0
    %158 = vmatprep.subr.mxu0 0.0
    %159 = vmatpush1.msra.mxu0 0.0
    %160 = vmatprep.mubr.f32.mxu0 0.0
    %161 = vmatmul.mubr.f32.gmra.mrb[0].mxu0 %v73
    %v162 = vpop.f32.mrb[0].mxu0
    %v163 = vadd.f32 %v70, %v162
    %v164 = vpop.f32.mrb[0].mxu0
    %165 = vmatprep.mubr.f32.mxu0 0.0
    %166 = vmatmul.mubr.f32.gmra.mrb[0].mxu0 %v76
    %v167 = vpop.f32.mrb[0].mxu0
    %v168 = vadd.f32 %v70, %v167
    %v169 = vpop.f32.mrb[0].mxu0
    %170 = vmatprep.mubr.f32.mxu0 0.0
    %171 = vmatmul.mubr.f32.gmra.mrb[0].mxu0 %v79
    %v172 = vpop.f32.mrb[0].mxu0
    %v173 = vadd.f32 %v70, %v172
    %v174 = vpop.f32.mrb[0].mxu0
    %175 = vmatprep.mubr.f32.mxu0 0.0
    %176 = vmatmul.mubr.f32.gmra.mrb[0].mxu0 %v82
    %v177 = vpop.f32.mrb[0].mxu0
    %v178 = vadd.f32 %v70, %v177
    %v179 = vpop.f32.mrb[0].mxu0
    %180 = vmatprep.mubr.f32.mxu0 0.0
    %181 = vmatmul.mubr.f32.gmra.mrb[0].mxu0 %v85
    %v182 = vpop.f32.mrb[0].mxu0
    %v183 = vadd.f32 %v70, %v182
    %v184 = vpop.f32.mrb[0].mxu0
    %185 = vmatprep.mubr.f32.mxu0 0.0
    %186 = vmatmul.mubr.f32.gmra.mrb[0].mxu0 %v88
    %v187 = vpop.f32.mrb[0].mxu0
    %v188 = vadd.f32 %v70, %v187
    %v189 = vpop.f32.mrb[0].mxu0
    %190 = vmatprep.mubr.f32.mxu0 0.0
    %191 = vmatmul.mubr.f32.gmra.mrb[0].mxu0 %v91
    %v192 = vpop.f32.mrb[0].mxu0
    %v193 = vadd.f32 %v70, %v192
    %v194 = vpop.f32.mrb[0].mxu0
    %195 = vmatprep.mubr.f32.mxu0 0.0
    %196 = vmatmul.mubr.f32.gmra.mrb[0].mxu0 %v94
    %v197 = vpop.f32.mrb[0].mxu0
    %v198 = vadd.f32 %v70, %v197
    %v199 = vpop.f32.mrb[0].mxu0
    %200 = vdwg.mxu0
    %v201 = vmax.f32 %v163, 0.0
    %v202 = vmax.f32 %v168, 0.0
    %v203 = vmax.f32 %v173, 0.0
    %v204 = vmax.f32 %v178, 0.0
    %v205 = vmax.f32 %v183, 0.0
    %v206 = vmax.f32 %v188, 0.0
    %v207 = vmax.f32 %v193, 0.0
    %v208 = vmax.f32 %v198, 0.0
    %v209 = vlaneseq
    %v210 = vshrl.u32 %v209, 7
    %v211 = vsub.s32 1, %v210
    %v212 = vrot.slane %v58, %v211
    %vm213 = vcmask 261120
    %v215 = vsel %vm213, %v201, 0
    %v218 = vsel %vm213, %v202, 0
    %v221 = vsel %vm213, %v203, 0
    %v224 = vsel %vm213, %v204, 0
    %v227 = vsel %vm213, %v205, 0
    %v230 = vsel %vm213, %v206, 0
    %v233 = vsel %vm213, %v207, 0
    %v236 = vsel %vm213, %v208, 0
    %238 = vmatprep.subr.mxu0 0.0
    %239 = vmatpush1.msra.mxu0 %v39
    %240 = vmatprep.subr.mxu0 0.0
    %241 = vmatpush1.msra.mxu0 %v40
    %242 = vmatprep.subr.mxu0 0.0
    %243 = vmatpush1.msra.mxu0 %v41
    %244 = vmatprep.subr.mxu0 0.0
    %245 = vmatpush1.msra.mxu0 %v42
    %246 = vmatprep.subr.mxu0 0.0
    %247 = vmatpush1.msra.mxu0 0.0
    %248 = vmatprep.subr.mxu0 0.0
    %249 = vmatpush1.msra.mxu0 0.0
    %250 = vmatprep.subr.mxu0 0.0
    %251 = vmatpush1.msra.mxu0 0.0
    %252 = vmatprep.subr.mxu0 0.0
    %253 = vmatpush1.msra.mxu0 0.0
    %254 = vmatprep.subr.mxu0 0.0
    %255 = vmatpush1.msra.mxu0 0.0
    %256 = vmatprep.subr.mxu0 0.0
    %257 = vmatpush1.msra.mxu0 0.0
    %258 = vmatprep.subr.mxu0 0.0
    %259 = vmatpush1.msra.mxu0 0.0
    %260 = vmatprep.subr.mxu0 0.0
    %261 = vmatpush1.msra.mxu0 0.0
    %262 = vmatprep.subr.mxu0 0.0
    %263 = vmatpush1.msra.mxu0 0.0
    %264 = vmatprep.subr.mxu0 0.0
    %265 = vmatpush1.msra.mxu0 0.0
    %266 = vmatprep.subr.mxu0 0.0
    %267 = vmatpush1.msra.mxu0 0.0
    %268 = vmatprep.subr.mxu0 0.0
    %269 = vmatpush1.msra.mxu0 0.0
    %270 = vmatprep.subr.mxu0 0.0
    %271 = vmatpush1.msra.mxu0 0.0
    %272 = vmatprep.subr.mxu0 0.0
    %273 = vmatpush1.msra.mxu0 0.0
    %274 = vmatprep.subr.mxu0 0.0
    %275 = vmatpush1.msra.mxu0 0.0
    %276 = vmatprep.subr.mxu0 0.0
    %277 = vmatpush1.msra.mxu0 0.0
    %278 = vmatprep.subr.mxu0 0.0
    %279 = vmatpush1.msra.mxu0 0.0
    %280 = vmatprep.subr.mxu0 0.0
    %281 = vmatpush1.msra.mxu0 0.0
    %282 = vmatprep.subr.mxu0 0.0
    %283 = vmatpush1.msra.mxu0 0.0
    %284 = vmatprep.subr.mxu0 0.0
    %285 = vmatpush1.msra.mxu0 0.0
    %286 = vmatprep.subr.mxu0 0.0
    %287 = vmatpush1.msra.mxu0 0.0
    %288 = vmatprep.subr.mxu0 0.0
    %289 = vmatpush1.msra.mxu0 0.0
    %290 = vmatprep.subr.mxu0 0.0
    %291 = vmatpush1.msra.mxu0 0.0
    %292 = vmatprep.subr.mxu0 0.0
    %293 = vmatpush1.msra.mxu0 0.0
    %294 = vmatprep.subr.mxu0 0.0
    %295 = vmatpush1.msra.mxu0 0.0
    %296 = vmatprep.subr.mxu0 0.0
    %297 = vmatpush1.msra.mxu0 0.0
    %298 = vmatprep.subr.mxu0 0.0
    %299 = vmatpush1.msra.mxu0 0.0
    %300 = vmatprep.subr.mxu0 0.0
    %301 = vmatpush1.msra.mxu0 0.0
    %302 = vmatprep.mubr.f32.mxu0 0.0
    %303 = vmatmul.mubr.f32.gmra.mrb[0].mxu0 %v215
    %v304 = vpop.f32.mrb[0].mxu0
    %v305 = vadd.f32 %v212, %v304
    %v306 = vpop.f32.mrb[0].mxu0
    %307 = vmatprep.mubr.f32.mxu0 0.0
    %308 = vmatmul.mubr.f32.gmra.mrb[0].mxu0 %v218
    %v309 = vpop.f32.mrb[0].mxu0
    %v310 = vadd.f32 %v212, %v309
    %v311 = vpop.f32.mrb[0].mxu0
    %312 = vmatprep.mubr.f32.mxu0 0.0
    %313 = vmatmul.mubr.f32.gmra.mrb[0].mxu0 %v221
    %v314 = vpop.f32.mrb[0].mxu0
    %v315 = vadd.f32 %v212, %v314
    %v316 = vpop.f32.mrb[0].mxu0
    %317 = vmatprep.mubr.f32.mxu0 0.0
    %318 = vmatmul.mubr.f32.gmra.mrb[0].mxu0 %v224
    %v319 = vpop.f32.mrb[0].mxu0
    %v320 = vadd.f32 %v212, %v319
    %v321 = vpop.f32.mrb[0].mxu0
    %322 = vmatprep.mubr.f32.mxu0 0.0
    %323 = vmatmul.mubr.f32.gmra.mrb[0].mxu0 %v227
    %v324 = vpop.f32.mrb[0].mxu0
    %v325 = vadd.f32 %v212, %v324
    %v326 = vpop.f32.mrb[0].mxu0
    %327 = vmatprep.mubr.f32.mxu0 0.0
    %328 = vmatmul.mubr.f32.gmra.mrb[0].mxu0 %v230
    %v329 = vpop.f32.mrb[0].mxu0
    %v330 = vadd.f32 %v212, %v329
    %v331 = vpop.f32.mrb[0].mxu0
    %332 = vmatprep.mubr.f32.mxu0 0.0
    %333 = vmatmul.mubr.f32.gmra.mrb[0].mxu0 %v233
    %v334 = vpop.f32.mrb[0].mxu0
    %v335 = vadd.f32 %v212, %v334
    %v336 = vpop.f32.mrb[0].mxu0
    %337 = vmatprep.mubr.f32.mxu0 0.0
    %338 = vmatmul.mubr.f32.gmra.mrb[0].mxu0 %v236
    %v339 = vpop.f32.mrb[0].mxu0
    %v340 = vadd.f32 %v212, %v339
    %v341 = vpop.f32.mrb[0].mxu0
    %342 = vdwg.mxu0
    %vm343 = vcmask 785408
    %344 = vst.msk [vmem:[#allocation2] sm:$0xff] %vm343, %v305
    %345 = vst.msk [vmem:[#allocation2 + $0x8] sm:$0xff] %vm343, %v310
    %346 = vst.msk [vmem:[#allocation2 + $0x10] sm:$0xff] %vm343, %v315
    %347 = vst.msk [vmem:[#allocation2 + $0x18] sm:$0xff] %vm343, %v320
    %348 = vst.msk [vmem:[#allocation2 + $0x20] sm:$0xff] %vm343, %v325
    %349 = vst.msk [vmem:[#allocation2 + $0x28] sm:$0xff] %vm343, %v330
    %350 = vst.msk [vmem:[#allocation2 + $0x30] sm:$0xff] %vm343, %v335
    %351 = vst.msk [vmem:[#allocation2 + $0x38] sm:$0xff] %vm343, %v340
    %v352 = vlaneseq
    %v353 = vshrl.u32 %v352, 7
    %v354 = vsub.s32 2, %v353
    %v355 = vrot.slane %v58, %v354
    %v356 = vld [vmem:[#allocation2] sm:$0xff]
    %v358 = vsel %vm213, 0.0, 0
    %360 = vmatprep.subr.mxu0 0.0
    %361 = vmatpush1.msra.mxu0 %v44
    %362 = vmatprep.subr.mxu0 0.0
    %363 = vmatpush1.msra.mxu0 %v45
    %364 = vmatprep.subr.mxu0 0.0
    %365 = vmatpush1.msra.mxu0 %v46
    %366 = vmatprep.subr.mxu0 0.0
    %367 = vmatpush1.msra.mxu0 %v47
    %368 = vmatprep.subr.mxu0 0.0
    %369 = vmatpush1.msra.mxu0 0.0
    %370 = vmatprep.subr.mxu0 0.0
    %371 = vmatpush1.msra.mxu0 0.0
    %372 = vmatprep.subr.mxu0 0.0
    %373 = vmatpush1.msra.mxu0 0.0
    %374 = vmatprep.subr.mxu0 0.0
    %375 = vmatpush1.msra.mxu0 0.0
    %376 = vmatprep.subr.mxu0 0.0
    %377 = vmatpush1.msra.mxu0 0.0
    %378 = vmatprep.subr.mxu0 0.0
    %379 = vmatpush1.msra.mxu0 0.0
    %380 = vmatprep.subr.mxu0 0.0
    %381 = vmatpush1.msra.mxu0 0.0
    %382 = vmatprep.subr.mxu0 0.0
    %383 = vmatpush1.msra.mxu0 0.0
    %384 = vmatprep.subr.mxu0 0.0
    %385 = vmatpush1.msra.mxu0 0.0
    %386 = vmatprep.subr.mxu0 0.0
    %387 = vmatpush1.msra.mxu0 0.0
    %388 = vmatprep.subr.mxu0 0.0
    %389 = vmatpush1.msra.mxu0 0.0
    %390 = vmatprep.subr.mxu0 0.0
    %391 = vmatpush1.msra.mxu0 0.0
    %392 = vmatprep.subr.mxu0 0.0
    %393 = vmatpush1.msra.mxu0 0.0
    %394 = vmatprep.subr.mxu0 0.0
    %395 = vmatpush1.msra.mxu0 0.0
    %396 = vmatprep.subr.mxu0 0.0
    %397 = vmatpush1.msra.mxu0 0.0
    %398 = vmatprep.subr.mxu0 0.0
    %399 = vmatpush1.msra.mxu0 0.0
    %400 = vmatprep.subr.mxu0 0.0
    %401 = vmatpush1.msra.mxu0 0.0
    %402 = vmatprep.subr.mxu0 0.0
    %403 = vmatpush1.msra.mxu0 0.0
    %404 = vmatprep.subr.mxu0 0.0
    %405 = vmatpush1.msra.mxu0 0.0
    %406 = vmatprep.subr.mxu0 0.0
    %407 = vmatpush1.msra.mxu0 0.0
    %408 = vmatprep.subr.mxu0 0.0
    %409 = vmatpush1.msra.mxu0 0.0
    %410 = vmatprep.subr.mxu0 0.0
    %411 = vmatpush1.msra.mxu0 0.0
    %412 = vmatprep.subr.mxu0 0.0
    %413 = vmatpush1.msra.mxu0 0.0
    %414 = vmatprep.subr.mxu0 0.0
    %415 = vmatpush1.msra.mxu0 0.0
    %416 = vmatprep.subr.mxu0 0.0
    %417 = vmatpush1.msra.mxu0 0.0
    %418 = vmatprep.subr.mxu0 0.0
    %419 = vmatpush1.msra.mxu0 0.0
    %420 = vmatprep.subr.mxu0 0.0
    %421 = vmatpush1.msra.mxu0 0.0
    %422 = vmatprep.subr.mxu0 0.0
    %423 = vmatpush1.msra.mxu0 0.0
    %424 = vmatprep.mubr.f32.mxu0 0.0
    %425 = vmatmul.mubr.f32.gmra.mrb[0].mxu0 %v358
    %v426 = vpop.f32.mrb[0].mxu0
    %v427 = vadd.f32 %v355, %v426
    %v428 = vpop.f32.mrb[0].mxu0
    %429 = vdwg.mxu0
    %v430 = vadd.f32 %v356, %v427
    %v431 = vxor.u32 %v430, 2147483648
    %v432 = vmul.f32 %v431, 1.442695
    %v433 = vpow.pop %v432
    %v434 = vadd.f32 %v433, 1.0
    %v435 = vrcp.pop %v434
    %v436 = vmul.f32 1.0, %v435
    %438 = vrot.lane.b32.xlu0 %v427, 64
    %v439 = vpop.permute.xlu0 %438
    %v441 = vmul.f32 %v436, %v439
    %443 = vrot.lane.b32.xlu0 %v441, 64
    %v444 = vpop.permute.xlu0 %443
    %v446 = vadd.f32 %v356, %v444
    %v447 = vtanh.pop %v446
    %v448 = vsub.f32 1.0, %v436
    %450 = vrot.lane.b32.xlu0 %v447, 96
    %v451 = vpop.permute.xlu0 %450
    %v453 = vmul.f32 %v448, %v451
    %v454 = vmul.f32 %v436, 0.0
    %v455 = vadd.f32 %v453, %v454
    %457 = vrot.lane.b32.xlu0 %v455, 96
    %v458 = vpop.permute.xlu0 %457
    %460 = vst.msk [vmem:[#allocation3] sm:$0xff] %vm213, %v458
    %s461 = scalar_lea.vmem [#allocation2], 8
    %v462 = vld [vmem:[%s461] sm:$0xff]
    %v463 = vsel %vm213, %v458, 0
    %465 = vmatprep.subr.mxu0 0.0
    %466 = vmatpush1.msra.mxu0 %v44
    %467 = vmatprep.subr.mxu0 0.0
    %468 = vmatpush1.msra.mxu0 %v45
    %469 = vmatprep.subr.mxu0 0.0
    %470 = vmatpush1.msra.mxu0 %v46
    %471 = vmatprep.subr.mxu0 0.0
    %472 = vmatpush1.msra.mxu0 %v47
    %473 = vmatprep.subr.mxu0 0.0
    %474 = vmatpush1.msra.mxu0 0.0
    %475 = vmatprep.subr.mxu0 0.0
    %476 = vmatpush1.msra.mxu0 0.0
    %477 = vmatprep.subr.mxu0 0.0
    %478 = vmatpush1.msra.mxu0 0.0
    %479 = vmatprep.subr.mxu0 0.0
    %480 = vmatpush1.msra.mxu0 0.0
    %481 = vmatprep.subr.mxu0 0.0
    %482 = vmatpush1.msra.mxu0 0.0
    %483 = vmatprep.subr.mxu0 0.0
    %484 = vmatpush1.msra.mxu0 0.0
    %485 = vmatprep.subr.mxu0 0.0
    %486 = vmatpush1.msra.mxu0 0.0
    %487 = vmatprep.subr.mxu0 0.0
    %488 = vmatpush1.msra.mxu0 0.0
    %489 = vmatprep.subr.mxu0 0.0
    %490 = vmatpush1.msra.mxu0 0.0
    %491 = vmatprep.subr.mxu0 0.0
    %492 = vmatpush1.msra.mxu0 0.0
    %493 = vmatprep.subr.mxu0 0.0
    %494 = vmatpush1.msra.mxu0 0.0
    %495 = vmatprep.subr.mxu0 0.0
    %496 = vmatpush1.msra.mxu0 0.0
    %497 = vmatprep.subr.mxu0 0.0
    %498 = vmatpush1.msra.mxu0 0.0
    %499 = vmatprep.subr.mxu0 0.0
    %500 = vmatpush1.msra.mxu0 0.0
    %501 = vmatprep.subr.mxu0 0.0
    %502 = vmatpush1.msra.mxu0 0.0
    %503 = vmatprep.subr.mxu0 0.0
    %504 = vmatpush1.msra.mxu0 0.0
    %505 = vmatprep.subr.mxu0 0.0
    %506 = vmatpush1.msra.mxu0 0.0
    %507 = vmatprep.subr.mxu0 0.0
    %508 = vmatpush1.msra.mxu0 0.0
    %509 = vmatprep.subr.mxu0 0.0
    %510 = vmatpush1.msra.mxu0 0.0
    %511 = vmatprep.subr.mxu0 0.0
    %512 = vmatpush1.msra.mxu0 0.0
    %513 = vmatprep.subr.mxu0 0.0
    %514 = vmatpush1.msra.mxu0 0.0
    %515 = vmatprep.subr.mxu0 0.0
    %516 = vmatpush1.msra.mxu0 0.0
    %517 = vmatprep.subr.mxu0 0.0
    %518 = vmatpush1.msra.mxu0 0.0
    %519 = vmatprep.subr.mxu0 0.0
    %520 = vmatpush1.msra.mxu0 0.0
    %521 = vmatprep.subr.mxu0 0.0
    %522 = vmatpush1.msra.mxu0 0.0
    %523 = vmatprep.subr.mxu0 0.0
    %524 = vmatpush1.msra.mxu0 0.0
    %525 = vmatprep.subr.mxu0 0.0
    %526 = vmatpush1.msra.mxu0 0.0
    %527 = vmatprep.subr.mxu0 0.0
    %528 = vmatpush1.msra.mxu0 0.0
    %529 = vmatprep.mubr.f32.mxu0 0.0
    %530 = vmatmul.mubr.f32.gmra.mrb[0].mxu0 %v463
    %v531 = vpop.f32.mrb[0].mxu0
    %v532 = vadd.f32 %v355, %v531
    %v533 = vpop.f32.mrb[0].mxu0
    %534 = vdwg.mxu0
    %v535 = vadd.f32 %v462, %v532
    %v536 = vxor.u32 %v535, 2147483648
    %v537 = vmul.f32 %v536, 1.442695
    %v538 = vpow.pop %v537
    %v539 = vadd.f32 %v538, 1.0
    %v540 = vrcp.pop %v539
    %v541 = vmul.f32 1.0, %v540
    %543 = vrot.lane.b32.xlu0 %v532, 64
    %v544 = vpop.permute.xlu0 %543
    %v546 = vmul.f32 %v541, %v544
    %548 = vrot.lane.b32.xlu0 %v546, 64
    %v549 = vpop.permute.xlu0 %548
    %v551 = vadd.f32 %v462, %v549
    %v552 = vtanh.pop %v551
    %v553 = vsub.f32 1.0, %v541
    %555 = vrot.lane.b32.xlu0 %v552, 96
    %v556 = vpop.permute.xlu0 %555
    %v558 = vmul.f32 %v553, %v556
    %v559 = vmul.f32 %v541, %v455
    %v560 = vadd.f32 %v558, %v559
    %562 = vrot.lane.b32.xlu0 %v560, 96
    %v563 = vpop.permute.xlu0 %562
    %s565 = scalar_lea.vmem [#allocation3], 8
    %566 = vst.msk [vmem:[%s565] sm:$0xff] %vm213, %v563
    %s567 = scalar_lea.vmem [#allocation2], 16
    %v568 = vld [vmem:[%s567] sm:$0xff]
    %v569 = vsel %vm213, %v563, 0
    %571 = vmatprep.subr.mxu0 0.0
    %572 = vmatpush1.msra.mxu0 %v44
    %573 = vmatprep.subr.mxu0 0.0
    %574 = vmatpush1.msra.mxu0 %v45
    %575 = vmatprep.subr.mxu0 0.0
    %576 = vmatpush1.msra.mxu0 %v46
    %577 = vmatprep.subr.mxu0 0.0
    %578 = vmatpush1.msra.mxu0 %v47
    %579 = vmatprep.subr.mxu0 0.0
    %580 = vmatpush1.msra.mxu0 0.0
    %581 = vmatprep.subr.mxu0 0.0
    %582 = vmatpush1.msra.mxu0 0.0
    %583 = vmatprep.subr.mxu0 0.0
    %584 = vmatpush1.msra.mxu0 0.0
    %585 = vmatprep.subr.mxu0 0.0
    %586 = vmatpush1.msra.mxu0 0.0
    %587 = vmatprep.subr.mxu0 0.0
    %588 = vmatpush1.msra.mxu0 0.0
    %589 = vmatprep.subr.mxu0 0.0
    %590 = vmatpush1.msra.mxu0 0.0
    %591 = vmatprep.subr.mxu0 0.0
    %592 = vmatpush1.msra.mxu0 0.0
    %593 = vmatprep.subr.mxu0 0.0
    %594 = vmatpush1.msra.mxu0 0.0
    %595 = vmatprep.subr.mxu0 0.0
    %596 = vmatpush1.msra.mxu0 0.0
    %597 = vmatprep.subr.mxu0 0.0
    %598 = vmatpush1.msra.mxu0 0.0
    %599 = vmatprep.subr.mxu0 0.0
    %600 = vmatpush1.msra.mxu0 0.0
    %601 = vmatprep.subr.mxu0 0.0
    %602 = vmatpush1.msra.mxu0 0.0
    %603 = vmatprep.subr.mxu0 0.0
    %604 = vmatpush1.msra.mxu0 0.0
    %605 = vmatprep.subr.mxu0 0.0
    %606 = vmatpush1.msra.mxu0 0.0
    %607 = vmatprep.subr.mxu0 0.0
    %608 = vmatpush1.msra.mxu0 0.0
    %609 = vmatprep.subr.mxu0 0.0
    %610 = vmatpush1.msra.mxu0 0.0
    %611 = vmatprep.subr.mxu0 0.0
    %612 = vmatpush1.msra.mxu0 0.0
    %613 = vmatprep.subr.mxu0 0.0
    %614 = vmatpush1.msra.mxu0 0.0
    %615 = vmatprep.subr.mxu0 0.0
    %616 = vmatpush1.msra.mxu0 0.0
    %617 = vmatprep.subr.mxu0 0.0
    %618 = vmatpush1.msra.mxu0 0.0
    %619 = vmatprep.subr.mxu0 0.0
    %620 = vmatpush1.msra.mxu0 0.0
    %621 = vmatprep.subr.mxu0 0.0
    %622 = vmatpush1.msra.mxu0 0.0
    %623 = vmatprep.subr.mxu0 0.0
    %624 = vmatpush1.msra.mxu0 0.0
    %625 = vmatprep.subr.mxu0 0.0
    %626 = vmatpush1.msra.mxu0 0.0
    %627 = vmatprep.subr.mxu0 0.0
    %628 = vmatpush1.msra.mxu0 0.0
    %629 = vmatprep.subr.mxu0 0.0
    %630 = vmatpush1.msra.mxu0 0.0
    %631 = vmatprep.subr.mxu0 0.0
    %632 = vmatpush1.msra.mxu0 0.0
    %633 = vmatprep.subr.mxu0 0.0
    %634 = vmatpush1.msra.mxu0 0.0
    %635 = vmatprep.mubr.f32.mxu0 0.0
    %636 = vmatmul.mubr.f32.gmra.mrb[0].mxu0 %v569
    %v637 = vpop.f32.mrb[0].mxu0
    %v638 = vadd.f32 %v355, %v637
    %v639 = vpop.f32.mrb[0].mxu0
    %640 = vdwg.mxu0
    %v641 = vadd.f32 %v568, %v638
    %v642 = vxor.u32 %v641, 2147483648
    %v643 = vmul.f32 %v642, 1.442695
    %v644 = vpow.pop %v643
    %v645 = vadd.f32 %v644, 1.0
    %v646 = vrcp.pop %v645
    %v647 = vmul.f32 1.0, %v646
    %649 = vrot.lane.b32.xlu0 %v638, 64
    %v650 = vpop.permute.xlu0 %649
    %v652 = vmul.f32 %v647, %v650
    %654 = vrot.lane.b32.xlu0 %v652, 64
    %v655 = vpop.permute.xlu0 %654
    %v657 = vadd.f32 %v568, %v655
    %v658 = vtanh.pop %v657
    %v659 = vsub.f32 1.0, %v647
    %661 = vrot.lane.b32.xlu0 %v658, 96
    %v662 = vpop.permute.xlu0 %661
    %v664 = vmul.f32 %v659, %v662
    %v665 = vmul.f32 %v647, %v560
    %v666 = vadd.f32 %v664, %v665
    %668 = vrot.lane.b32.xlu0 %v666, 96
    %v669 = vpop.permute.xlu0 %668
    %s671 = scalar_lea.vmem [#allocation3], 16
    %672 = vst.msk [vmem:[%s671] sm:$0xff] %vm213, %v669
    %s673 = scalar_lea.vmem [#allocation2], 24
    %v674 = vld [vmem:[%s673] sm:$0xff]
    %v675 = vsel %vm213, %v669, 0
    %677 = vmatprep.subr.mxu0 0.0
    %678 = vmatpush1.msra.mxu0 %v44
    %679 = vmatprep.subr.mxu0 0.0
    %680 = vmatpush1.msra.mxu0 %v45
    %681 = vmatprep.subr.mxu0 0.0
    %682 = vmatpush1.msra.mxu0 %v46
    %683 = vmatprep.subr.mxu0 0.0
    %684 = vmatpush1.msra.mxu0 %v47
    %685 = vmatprep.subr.mxu0 0.0
    %686 = vmatpush1.msra.mxu0 0.0
    %687 = vmatprep.subr.mxu0 0.0
    %688 = vmatpush1.msra.mxu0 0.0
    %689 = vmatprep.subr.mxu0 0.0
    %690 = vmatpush1.msra.mxu0 0.0
    %691 = vmatprep.subr.mxu0 0.0
    %692 = vmatpush1.msra.mxu0 0.0
    %693 = vmatprep.subr.mxu0 0.0
    %694 = vmatpush1.msra.mxu0 0.0
    %695 = vmatprep.subr.mxu0 0.0
    %696 = vmatpush1.msra.mxu0 0.0
    %697 = vmatprep.subr.mxu0 0.0
    %698 = vmatpush1.msra.mxu0 0.0
    %699 = vmatprep.subr.mxu0 0.0
    %700 = vmatpush1.msra.mxu0 0.0
    %701 = vmatprep.subr.mxu0 0.0
    %702 = vmatpush1.msra.mxu0 0.0
    %703 = vmatprep.subr.mxu0 0.0
    %704 = vmatpush1.msra.mxu0 0.0
    %705 = vmatprep.subr.mxu0 0.0
    %706 = vmatpush1.msra.mxu0 0.0
    %707 = vmatprep.subr.mxu0 0.0
    %708 = vmatpush1.msra.mxu0 0.0
    %709 = vmatprep.subr.mxu0 0.0
    %710 = vmatpush1.msra.mxu0 0.0
    %711 = vmatprep.subr.mxu0 0.0
    %712 = vmatpush1.msra.mxu0 0.0
    %713 = vmatprep.subr.mxu0 0.0
    %714 = vmatpush1.msra.mxu0 0.0
    %715 = vmatprep.subr.mxu0 0.0
    %716 = vmatpush1.msra.mxu0 0.0
    %717 = vmatprep.subr.mxu0 0.0
    %718 = vmatpush1.msra.mxu0 0.0
    %719 = vmatprep.subr.mxu0 0.0
    %720 = vmatpush1.msra.mxu0 0.0
    %721 = vmatprep.subr.mxu0 0.0
    %722 = vmatpush1.msra.mxu0 0.0
    %723 = vmatprep.subr.mxu0 0.0
    %724 = vmatpush1.msra.mxu0 0.0
    %725 = vmatprep.subr.mxu0 0.0
    %726 = vmatpush1.msra.mxu0 0.0
    %727 = vmatprep.subr.mxu0 0.0
    %728 = vmatpush1.msra.mxu0 0.0
    %729 = vmatprep.subr.mxu0 0.0
    %730 = vmatpush1.msra.mxu0 0.0
    %731 = vmatprep.subr.mxu0 0.0
    %732 = vmatpush1.msra.mxu0 0.0
    %733 = vmatprep.subr.mxu0 0.0
    %734 = vmatpush1.msra.mxu0 0.0
    %735 = vmatprep.subr.mxu0 0.0
    %736 = vmatpush1.msra.mxu0 0.0
    %737 = vmatprep.subr.mxu0 0.0
    %738 = vmatpush1.msra.mxu0 0.0
    %739 = vmatprep.subr.mxu0 0.0
    %740 = vmatpush1.msra.mxu0 0.0
    %741 = vmatprep.mubr.f32.mxu0 0.0
    %742 = vmatmul.mubr.f32.gmra.mrb[0].mxu0 %v675
    %v743 = vpop.f32.mrb[0].mxu0
    %v744 = vadd.f32 %v355, %v743
    %v745 = vpop.f32.mrb[0].mxu0
    %746 = vdwg.mxu0
    %v747 = vadd.f32 %v674, %v744
    %v748 = vxor.u32 %v747, 2147483648
    %v749 = vmul.f32 %v748, 1.442695
    %v750 = vpow.pop %v749
    %v751 = vadd.f32 %v750, 1.0
    %v752 = vrcp.pop %v751
    %v753 = vmul.f32 1.0, %v752
    %755 = vrot.lane.b32.xlu0 %v744, 64
    %v756 = vpop.permute.xlu0 %755
    %v758 = vmul.f32 %v753, %v756
    %760 = vrot.lane.b32.xlu0 %v758, 64
    %v761 = vpop.permute.xlu0 %760
    %v763 = vadd.f32 %v674, %v761
    %v764 = vtanh.pop %v763
    %v765 = vsub.f32 1.0, %v753
    %767 = vrot.lane.b32.xlu0 %v764, 96
    %v768 = vpop.permute.xlu0 %767
    %v770 = vmul.f32 %v765, %v768
    %v771 = vmul.f32 %v753, %v666
    %v772 = vadd.f32 %v770, %v771
    %774 = vrot.lane.b32.xlu0 %v772, 96
    %v775 = vpop.permute.xlu0 %774
    %s777 = scalar_lea.vmem [#allocation3], 24
    %778 = vst.msk [vmem:[%s777] sm:$0xff] %vm213, %v775
    %s779 = scalar_lea.vmem [#allocation2], 32
    %v780 = vld [vmem:[%s779] sm:$0xff]
    %v781 = vsel %vm213, %v775, 0
    %783 = vmatprep.subr.mxu0 0.0
    %784 = vmatpush1.msra.mxu0 %v44
    %785 = vmatprep.subr.mxu0 0.0
    %786 = vmatpush1.msra.mxu0 %v45
    %787 = vmatprep.subr.mxu0 0.0
    %788 = vmatpush1.msra.mxu0 %v46
    %789 = vmatprep.subr.mxu0 0.0
    %790 = vmatpush1.msra.mxu0 %v47
    %791 = vmatprep.subr.mxu0 0.0
    %792 = vmatpush1.msra.mxu0 0.0
    %793 = vmatprep.subr.mxu0 0.0
    %794 = vmatpush1.msra.mxu0 0.0
    %795 = vmatprep.subr.mxu0 0.0
    %796 = vmatpush1.msra.mxu0 0.0
    %797 = vmatprep.subr.mxu0 0.0
    %798 = vmatpush1.msra.mxu0 0.0
    %799 = vmatprep.subr.mxu0 0.0
    %800 = vmatpush1.msra.mxu0 0.0
    %801 = vmatprep.subr.mxu0 0.0
    %802 = vmatpush1.msra.mxu0 0.0
    %803 = vmatprep.subr.mxu0 0.0
    %804 = vmatpush1.msra.mxu0 0.0
    %805 = vmatprep.subr.mxu0 0.0
    %806 = vmatpush1.msra.mxu0 0.0
    %807 = vmatprep.subr.mxu0 0.0
    %808 = vmatpush1.msra.mxu0 0.0
    %809 = vmatprep.subr.mxu0 0.0
    %810 = vmatpush1.msra.mxu0 0.0
    %811 = vmatprep.subr.mxu0 0.0
    %812 = vmatpush1.msra.mxu0 0.0
    %813 = vmatprep.subr.mxu0 0.0
    %814 = vmatpush1.msra.mxu0 0.0
    %815 = vmatprep.subr.mxu0 0.0
    %816 = vmatpush1.msra.mxu0 0.0
    %817 = vmatprep.subr.mxu0 0.0
    %818 = vmatpush1.msra.mxu0 0.0
    %819 = vmatprep.subr.mxu0 0.0
    %820 = vmatpush1.msra.mxu0 0.0
    %821 = vmatprep.subr.mxu0 0.0
    %822 = vmatpush1.msra.mxu0 0.0
    %823 = vmatprep.subr.mxu0 0.0
    %824 = vmatpush1.msra.mxu0 0.0
    %825 = vmatprep.subr.mxu0 0.0
    %826 = vmatpush1.msra.mxu0 0.0
    %827 = vmatprep.subr.mxu0 0.0
    %828 = vmatpush1.msra.mxu0 0.0
    %829 = vmatprep.subr.mxu0 0.0
    %830 = vmatpush1.msra.mxu0 0.0
    %831 = vmatprep.subr.mxu0 0.0
    %832 = vmatpush1.msra.mxu0 0.0
    %833 = vmatprep.subr.mxu0 0.0
    %834 = vmatpush1.msra.mxu0 0.0
    %835 = vmatprep.subr.mxu0 0.0
    %836 = vmatpush1.msra.mxu0 0.0
    %837 = vmatprep.subr.mxu0 0.0
    %838 = vmatpush1.msra.mxu0 0.0
    %839 = vmatprep.subr.mxu0 0.0
    %840 = vmatpush1.msra.mxu0 0.0
    %841 = vmatprep.subr.mxu0 0.0
    %842 = vmatpush1.msra.mxu0 0.0
    %843 = vmatprep.subr.mxu0 0.0
    %844 = vmatpush1.msra.mxu0 0.0
    %845 = vmatprep.subr.mxu0 0.0
    %846 = vmatpush1.msra.mxu0 0.0
    %847 = vmatprep.mubr.f32.mxu0 0.0
    %848 = vmatmul.mubr.f32.gmra.mrb[0].mxu0 %v781
    %v849 = vpop.f32.mrb[0].mxu0
    %v850 = vadd.f32 %v355, %v849
    %v851 = vpop.f32.mrb[0].mxu0
    %852 = vdwg.mxu0
    %v853 = vadd.f32 %v780, %v850
    %v854 = vxor.u32 %v853, 2147483648
    %v855 = vmul.f32 %v854, 1.442695
    %v856 = vpow.pop %v855
    %v857 = vadd.f32 %v856, 1.0
    %v858 = vrcp.pop %v857
    %v859 = vmul.f32 1.0, %v858
    %861 = vrot.lane.b32.xlu0 %v850, 64
    %v862 = vpop.permute.xlu0 %861
    %v864 = vmul.f32 %v859, %v862
    %866 = vrot.lane.b32.xlu0 %v864, 64
    %v867 = vpop.permute.xlu0 %866
    %v869 = vadd.f32 %v780, %v867
    %v870 = vtanh.pop %v869
    %v871 = vsub.f32 1.0, %v859
    %873 = vrot.lane.b32.xlu0 %v870, 96
    %v874 = vpop.permute.xlu0 %873
    %v876 = vmul.f32 %v871, %v874
    %v877 = vmul.f32 %v859, %v772
    %v878 = vadd.f32 %v876, %v877
    %880 = vrot.lane.b32.xlu0 %v878, 96
    %v881 = vpop.permute.xlu0 %880
    %s883 = scalar_lea.vmem [#allocation3], 32
    %884 = vst.msk [vmem:[%s883] sm:$0xff] %vm213, %v881
    %s885 = scalar_lea.vmem [#allocation2], 40
    %v886 = vld [vmem:[%s885] sm:$0xff]
    %v887 = vsel %vm213, %v881, 0
    %889 = vmatprep.subr.mxu0 0.0
    %890 = vmatpush1.msra.mxu0 %v44
    %891 = vmatprep.subr.mxu0 0.0
    %892 = vmatpush1.msra.mxu0 %v45
    %893 = vmatprep.subr.mxu0 0.0
    %894 = vmatpush1.msra.mxu0 %v46
    %895 = vmatprep.subr.mxu0 0.0
    %896 = vmatpush1.msra.mxu0 %v47
    %897 = vmatprep.subr.mxu0 0.0
    %898 = vmatpush1.msra.mxu0 0.0
    %899 = vmatprep.subr.mxu0 0.0
    %900 = vmatpush1.msra.mxu0 0.0
    %901 = vmatprep.subr.mxu0 0.0
    %902 = vmatpush1.msra.mxu0 0.0
    %903 = vmatprep.subr.mxu0 0.0
    %904 = vmatpush1.msra.mxu0 0.0
    %905 = vmatprep.subr.mxu0 0.0
    %906 = vmatpush1.msra.mxu0 0.0
    %907 = vmatprep.subr.mxu0 0.0
    %908 = vmatpush1.msra.mxu0 0.0
    %909 = vmatprep.subr.mxu0 0.0
    %910 = vmatpush1.msra.mxu0 0.0
    %911 = vmatprep.subr.mxu0 0.0
    %912 = vmatpush1.msra.mxu0 0.0
    %913 = vmatprep.subr.mxu0 0.0
    %914 = vmatpush1.msra.mxu0 0.0
    %915 = vmatprep.subr.mxu0 0.0
    %916 = vmatpush1.msra.mxu0 0.0
    %917 = vmatprep.subr.mxu0 0.0
    %918 = vmatpush1.msra.mxu0 0.0
    %919 = vmatprep.subr.mxu0 0.0
    %920 = vmatpush1.msra.mxu0 0.0
    %921 = vmatprep.subr.mxu0 0.0
    %922 = vmatpush1.msra.mxu0 0.0
    %923 = vmatprep.subr.mxu0 0.0
    %924 = vmatpush1.msra.mxu0 0.0
    %925 = vmatprep.subr.mxu0 0.0
    %926 = vmatpush1.msra.mxu0 0.0
    %927 = vmatprep.subr.mxu0 0.0
    %928 = vmatpush1.msra.mxu0 0.0
    %929 = vmatprep.subr.mxu0 0.0
    %930 = vmatpush1.msra.mxu0 0.0
    %931 = vmatprep.subr.mxu0 0.0
    %932 = vmatpush1.msra.mxu0 0.0
    %933 = vmatprep.subr.mxu0 0.0
    %934 = vmatpush1.msra.mxu0 0.0
    %935 = vmatprep.subr.mxu0 0.0
    %936 = vmatpush1.msra.mxu0 0.0
    %937 = vmatprep.subr.mxu0 0.0
    %938 = vmatpush1.msra.mxu0 0.0
    %939 = vmatprep.subr.mxu0 0.0
    %940 = vmatpush1.msra.mxu0 0.0
    %941 = vmatprep.subr.mxu0 0.0
    %942 = vmatpush1.msra.mxu0 0.0
    %943 = vmatprep.subr.mxu0 0.0
    %944 = vmatpush1.msra.mxu0 0.0
    %945 = vmatprep.subr.mxu0 0.0
    %946 = vmatpush1.msra.mxu0 0.0
    %947 = vmatprep.subr.mxu0 0.0
    %948 = vmatpush1.msra.mxu0 0.0
    %949 = vmatprep.subr.mxu0 0.0
    %950 = vmatpush1.msra.mxu0 0.0
    %951 = vmatprep.subr.mxu0 0.0
    %952 = vmatpush1.msra.mxu0 0.0
    %953 = vmatprep.mubr.f32.mxu0 0.0
    %954 = vmatmul.mubr.f32.gmra.mrb[0].mxu0 %v887
    %v955 = vpop.f32.mrb[0].mxu0
    %v956 = vadd.f32 %v355, %v955
    %v957 = vpop.f32.mrb[0].mxu0
    %958 = vdwg.mxu0
    %v959 = vadd.f32 %v886, %v956
    %v960 = vxor.u32 %v959, 2147483648
    %v961 = vmul.f32 %v960, 1.442695
    %v962 = vpow.pop %v961
    %v963 = vadd.f32 %v962, 1.0
    %v964 = vrcp.pop %v963
    %v965 = vmul.f32 1.0, %v964
    %967 = vrot.lane.b32.xlu0 %v956, 64
    %v968 = vpop.permute.xlu0 %967
    %v970 = vmul.f32 %v965, %v968
    %972 = vrot.lane.b32.xlu0 %v970, 64
    %v973 = vpop.permute.xlu0 %972
    %v975 = vadd.f32 %v886, %v973
    %v976 = vtanh.pop %v975
    %v977 = vsub.f32 1.0, %v965
    %979 = vrot.lane.b32.xlu0 %v976, 96
    %v980 = vpop.permute.xlu0 %979
    %v982 = vmul.f32 %v977, %v980
    %v983 = vmul.f32 %v965, %v878
    %v984 = vadd.f32 %v982, %v983
    %986 = vrot.lane.b32.xlu0 %v984, 96
    %v987 = vpop.permute.xlu0 %986
    %s989 = scalar_lea.vmem [#allocation3], 40
    %990 = vst.msk [vmem:[%s989] sm:$0xff] %vm213, %v987
    %s991 = scalar_lea.vmem [#allocation2], 48
    %v992 = vld [vmem:[%s991] sm:$0xff]
    %v993 = vsel %vm213, %v987, 0
    %995 = vmatprep.subr.mxu0 0.0
    %996 = vmatpush1.msra.mxu0 %v44
    %997 = vmatprep.subr.mxu0 0.0
    %998 = vmatpush1.msra.mxu0 %v45
    %999 = vmatprep.subr.mxu0 0.0
    %1000 = vmatpush1.msra.mxu0 %v46
    %1001 = vmatprep.subr.mxu0 0.0
    %1002 = vmatpush1.msra.mxu0 %v47
    %1003 = vmatprep.subr.mxu0 0.0
    %1004 = vmatpush1.msra.mxu0 0.0
    %1005 = vmatprep.subr.mxu0 0.0
    %1006 = vmatpush1.msra.mxu0 0.0
    %1007 = vmatprep.subr.mxu0 0.0
    %1008 = vmatpush1.msra.mxu0 0.0
    %1009 = vmatprep.subr.mxu0 0.0
    %1010 = vmatpush1.msra.mxu0 0.0
    %1011 = vmatprep.subr.mxu0 0.0
    %1012 = vmatpush1.msra.mxu0 0.0
    %1013 = vmatprep.subr.mxu0 0.0
    %1014 = vmatpush1.msra.mxu0 0.0
    %1015 = vmatprep.subr.mxu0 0.0
    %1016 = vmatpush1.msra.mxu0 0.0
    %1017 = vmatprep.subr.mxu0 0.0
    %1018 = vmatpush1.msra.mxu0 0.0
    %1019 = vmatprep.subr.mxu0 0.0
    %1020 = vmatpush1.msra.mxu0 0.0
    %1021 = vmatprep.subr.mxu0 0.0
    %1022 = vmatpush1.msra.mxu0 0.0
    %1023 = vmatprep.subr.mxu0 0.0
    %1024 = vmatpush1.msra.mxu0 0.0
    %1025 = vmatprep.subr.mxu0 0.0
    %1026 = vmatpush1.msra.mxu0 0.0
    %1027 = vmatprep.subr.mxu0 0.0
    %1028 = vmatpush1.msra.mxu0 0.0
    %1029 = vmatprep.subr.mxu0 0.0
    %1030 = vmatpush1.msra.mxu0 0.0
    %1031 = vmatprep.subr.mxu0 0.0
    %1032 = vmatpush1.msra.mxu0 0.0
    %1033 = vmatprep.subr.mxu0 0.0
    %1034 = vmatpush1.msra.mxu0 0.0
    %1035 = vmatprep.subr.mxu0 0.0
    %1036 = vmatpush1.msra.mxu0 0.0
    %1037 = vmatprep.subr.mxu0 0.0
    %1038 = vmatpush1.msra.mxu0 0.0
    %1039 = vmatprep.subr.mxu0 0.0
    %1040 = vmatpush1.msra.mxu0 0.0
    %1041 = vmatprep.subr.mxu0 0.0
    %1042 = vmatpush1.msra.mxu0 0.0
    %1043 = vmatprep.subr.mxu0 0.0
    %1044 = vmatpush1.msra.mxu0 0.0
    %1045 = vmatprep.subr.mxu0 0.0
    %1046 = vmatpush1.msra.mxu0 0.0
    %1047 = vmatprep.subr.mxu0 0.0
    %1048 = vmatpush1.msra.mxu0 0.0
    %1049 = vmatprep.subr.mxu0 0.0
    %1050 = vmatpush1.msra.mxu0 0.0
    %1051 = vmatprep.subr.mxu0 0.0
    %1052 = vmatpush1.msra.mxu0 0.0
    %1053 = vmatprep.subr.mxu0 0.0
    %1054 = vmatpush1.msra.mxu0 0.0
    %1055 = vmatprep.subr.mxu0 0.0
    %1056 = vmatpush1.msra.mxu0 0.0
    %1057 = vmatprep.subr.mxu0 0.0
    %1058 = vmatpush1.msra.mxu0 0.0
    %1059 = vmatprep.mubr.f32.mxu0 0.0
    %1060 = vmatmul.mubr.f32.gmra.mrb[0].mxu0 %v993
    %v1061 = vpop.f32.mrb[0].mxu0
    %v1062 = vadd.f32 %v355, %v1061
    %v1063 = vpop.f32.mrb[0].mxu0
    %1064 = vdwg.mxu0
    %v1065 = vadd.f32 %v992, %v1062
    %v1066 = vxor.u32 %v1065, 2147483648
    %v1067 = vmul.f32 %v1066, 1.442695
    %v1068 = vpow.pop %v1067
    %v1069 = vadd.f32 %v1068, 1.0
    %v1070 = vrcp.pop %v1069
    %v1071 = vmul.f32 1.0, %v1070
    %1073 = vrot.lane.b32.xlu0 %v1062, 64
    %v1074 = vpop.permute.xlu0 %1073
    %v1076 = vmul.f32 %v1071, %v1074
    %1078 = vrot.lane.b32.xlu0 %v1076, 64
    %v1079 = vpop.permute.xlu0 %1078
    %v1081 = vadd.f32 %v992, %v1079
    %v1082 = vtanh.pop %v1081
    %v1083 = vsub.f32 1.0, %v1071
    %1085 = vrot.lane.b32.xlu0 %v1082, 96
    %v1086 = vpop.permute.xlu0 %1085
    %v1088 = vmul.f32 %v1083, %v1086
    %v1089 = vmul.f32 %v1071, %v984
    %v1090 = vadd.f32 %v1088, %v1089
    %1092 = vrot.lane.b32.xlu0 %v1090, 96
    %v1093 = vpop.permute.xlu0 %1092
    %s1095 = scalar_lea.vmem [#allocation3], 48
    %1096 = vst.msk [vmem:[%s1095] sm:$0xff] %vm213, %v1093
    %s1097 = scalar_lea.vmem [#allocation2], 56
    %v1098 = vld [vmem:[%s1097] sm:$0xff]
    %v1099 = vsel %vm213, %v1093, 0
    %1101 = vmatprep.subr.mxu0 0.0
    %1102 = vmatpush1.msra.mxu0 %v44
    %1103 = vmatprep.subr.mxu0 0.0
    %1104 = vmatpush1.msra.mxu0 %v45
    %1105 = vmatprep.subr.mxu0 0.0
    %1106 = vmatpush1.msra.mxu0 %v46
    %1107 = vmatprep.subr.mxu0 0.0
    %1108 = vmatpush1.msra.mxu0 %v47
    %1109 = vmatprep.subr.mxu0 0.0
    %1110 = vmatpush1.msra.mxu0 0.0
    %1111 = vmatprep.subr.mxu0 0.0
    %1112 = vmatpush1.msra.mxu0 0.0
    %1113 = vmatprep.subr.mxu0 0.0
    %1114 = vmatpush1.msra.mxu0 0.0
    %1115 = vmatprep.subr.mxu0 0.0
    %1116 = vmatpush1.msra.mxu0 0.0
    %1117 = vmatprep.subr.mxu0 0.0
    %1118 = vmatpush1.msra.mxu0 0.0
    %1119 = vmatprep.subr.mxu0 0.0
    %1120 = vmatpush1.msra.mxu0 0.0
    %1121 = vmatprep.subr.mxu0 0.0
    %1122 = vmatpush1.msra.mxu0 0.0
    %1123 = vmatprep.subr.mxu0 0.0
    %1124 = vmatpush1.msra.mxu0 0.0
    %1125 = vmatprep.subr.mxu0 0.0
    %1126 = vmatpush1.msra.mxu0 0.0
    %1127 = vmatprep.subr.mxu0 0.0
    %1128 = vmatpush1.msra.mxu0 0.0
    %1129 = vmatprep.subr.mxu0 0.0
    %1130 = vmatpush1.msra.mxu0 0.0
    %1131 = vmatprep.subr.mxu0 0.0
    %1132 = vmatpush1.msra.mxu0 0.0
    %1133 = vmatprep.subr.mxu0 0.0
    %1134 = vmatpush1.msra.mxu0 0.0
    %1135 = vmatprep.subr.mxu0 0.0
    %1136 = vmatpush1.msra.mxu0 0.0
    %1137 = vmatprep.subr.mxu0 0.0
    %1138 = vmatpush1.msra.mxu0 0.0
    %1139 = vmatprep.subr.mxu0 0.0
    %1140 = vmatpush1.msra.mxu0 0.0
    %1141 = vmatprep.subr.mxu0 0.0
    %1142 = vmatpush1.msra.mxu0 0.0
    %1143 = vmatprep.subr.mxu0 0.0
    %1144 = vmatpush1.msra.mxu0 0.0
    %1145 = vmatprep.subr.mxu0 0.0
    %1146 = vmatpush1.msra.mxu0 0.0
    %1147 = vmatprep.subr.mxu0 0.0
    %1148 = vmatpush1.msra.mxu0 0.0
    %1149 = vmatprep.subr.mxu0 0.0
    %1150 = vmatpush1.msra.mxu0 0.0
    %1151 = vmatprep.subr.mxu0 0.0
    %1152 = vmatpush1.msra.mxu0 0.0
    %1153 = vmatprep.subr.mxu0 0.0
    %1154 = vmatpush1.msra.mxu0 0.0
    %1155 = vmatprep.subr.mxu0 0.0
    %1156 = vmatpush1.msra.mxu0 0.0
    %1157 = vmatprep.subr.mxu0 0.0
    %1158 = vmatpush1.msra.mxu0 0.0
    %1159 = vmatprep.subr.mxu0 0.0
    %1160 = vmatpush1.msra.mxu0 0.0
    %1161 = vmatprep.subr.mxu0 0.0
    %1162 = vmatpush1.msra.mxu0 0.0
    %1163 = vmatprep.subr.mxu0 0.0
    %1164 = vmatpush1.msra.mxu0 0.0
    %1165 = vmatprep.mubr.f32.mxu0 0.0
    %1166 = vmatmul.mubr.f32.gmra.mrb[0].mxu0 %v1099
    %v1167 = vpop.f32.mrb[0].mxu0
    %v1168 = vadd.f32 %v355, %v1167
    %v1169 = vpop.f32.mrb[0].mxu0
    %1170 = vdwg.mxu0
    %v1171 = vadd.f32 %v1098, %v1168
    %v1172 = vxor.u32 %v1171, 2147483648
    %v1173 = vmul.f32 %v1172, 1.442695
    %v1174 = vpow.pop %v1173
    %v1175 = vadd.f32 %v1174, 1.0
    %v1176 = vrcp.pop %v1175
    %v1177 = vmul.f32 1.0, %v1176
    %1179 = vrot.lane.b32.xlu0 %v1168, 64
    %v1180 = vpop.permute.xlu0 %1179
    %v1182 = vmul.f32 %v1177, %v1180
    %1184 = vrot.lane.b32.xlu0 %v1182, 64
    %v1185 = vpop.permute.xlu0 %1184
    %v1187 = vadd.f32 %v1098, %v1185
    %v1188 = vtanh.pop %v1187
    %v1189 = vsub.f32 1.0, %v1177
    %1191 = vrot.lane.b32.xlu0 %v1188, 96
    %v1192 = vpop.permute.xlu0 %1191
    %v1194 = vmul.f32 %v1189, %v1192
    %v1195 = vmul.f32 %v1177, %v1090
    %v1196 = vadd.f32 %v1194, %v1195
    %1198 = vrot.lane.b32.xlu0 %v1196, 96
    %v1199 = vpop.permute.xlu0 %1198
    %s1201 = scalar_lea.vmem [#allocation3], 56
    %1202 = vst.msk [vmem:[%s1201] sm:$0xff] %vm213, %v1199
    %v1203 = vld [vmem:[#allocation3] sm:$0xff]
    %v1204 = vld [vmem:[#allocation3 + $0x8] sm:$0xff]
    %v1205 = vld [vmem:[#allocation3 + $0x10] sm:$0xff]
    %v1206 = vld [vmem:[#allocation3 + $0x18] sm:$0xff]
    %v1207 = vld [vmem:[#allocation3 + $0x20] sm:$0xff]
    %v1208 = vld [vmem:[#allocation3 + $0x28] sm:$0xff]
    %v1209 = vld [vmem:[#allocation3 + $0x30] sm:$0xff]
    %v1210 = vld [vmem:[#allocation3 + $0x38] sm:$0xff]
    %v1211 = vlaneseq
    %v1212 = vshrl.u32 %v1211, 7
    %v1213 = vsub.s32 3, %v1212
    %v1214 = vrot.slane %v58, %v1213
    %v1216 = vsel %vm213, %v1203, 0
    %v1219 = vsel %vm213, %v1204, 0
    %v1222 = vsel %vm213, %v1205, 0
    %v1225 = vsel %vm213, %v1206, 0
    %v1228 = vsel %vm213, %v1207, 0
    %v1231 = vsel %vm213, %v1208, 0
    %v1234 = vsel %vm213, %v1209, 0
    %v1237 = vsel %vm213, %v1210, 0
    %1239 = vmatprep.subr.mxu0 0.0
    %1240 = vmatpush1.msra.mxu0 %v49
    %1241 = vmatprep.subr.mxu0 0.0
    %1242 = vmatpush1.msra.mxu0 %v50
    %1243 = vmatprep.subr.mxu0 0.0
    %1244 = vmatpush1.msra.mxu0 %v51
    %1245 = vmatprep.subr.mxu0 0.0
    %1246 = vmatpush1.msra.mxu0 %v52
    %1247 = vmatprep.subr.mxu0 0.0
    %1248 = vmatpush1.msra.mxu0 0.0
    %1249 = vmatprep.subr.mxu0 0.0
    %1250 = vmatpush1.msra.mxu0 0.0
    %1251 = vmatprep.subr.mxu0 0.0
    %1252 = vmatpush1.msra.mxu0 0.0
    %1253 = vmatprep.subr.mxu0 0.0
    %1254 = vmatpush1.msra.mxu0 0.0
    %1255 = vmatprep.subr.mxu0 0.0
    %1256 = vmatpush1.msra.mxu0 0.0
    %1257 = vmatprep.subr.mxu0 0.0
    %1258 = vmatpush1.msra.mxu0 0.0
    %1259 = vmatprep.subr.mxu0 0.0
    %1260 = vmatpush1.msra.mxu0 0.0
    %1261 = vmatprep.subr.mxu0 0.0
    %1262 = vmatpush1.msra.mxu0 0.0
    %1263 = vmatprep.subr.mxu0 0.0
    %1264 = vmatpush1.msra.mxu0 0.0
    %1265 = vmatprep.subr.mxu0 0.0
    %1266 = vmatpush1.msra.mxu0 0.0
    %1267 = vmatprep.subr.mxu0 0.0
    %1268 = vmatpush1.msra.mxu0 0.0
    %1269 = vmatprep.subr.mxu0 0.0
    %1270 = vmatpush1.msra.mxu0 0.0
    %1271 = vmatprep.subr.mxu0 0.0
    %1272 = vmatpush1.msra.mxu0 0.0
    %1273 = vmatprep.subr.mxu0 0.0
    %1274 = vmatpush1.msra.mxu0 0.0
    %1275 = vmatprep.subr.mxu0 0.0
    %1276 = vmatpush1.msra.mxu0 0.0
    %1277 = vmatprep.subr.mxu0 0.0
    %1278 = vmatpush1.msra.mxu0 0.0
    %1279 = vmatprep.subr.mxu0 0.0
    %1280 = vmatpush1.msra.mxu0 0.0
    %1281 = vmatprep.subr.mxu0 0.0
    %1282 = vmatpush1.msra.mxu0 0.0
    %1283 = vmatprep.subr.mxu0 0.0
    %1284 = vmatpush1.msra.mxu0 0.0
    %1285 = vmatprep.subr.mxu0 0.0
    %1286 = vmatpush1.msra.mxu0 0.0
    %1287 = vmatprep.subr.mxu0 0.0
    %1288 = vmatpush1.msra.mxu0 0.0
    %1289 = vmatprep.subr.mxu0 0.0
    %1290 = vmatpush1.msra.mxu0 0.0
    %1291 = vmatprep.subr.mxu0 0.0
    %1292 = vmatpush1.msra.mxu0 0.0
    %1293 = vmatprep.subr.mxu0 0.0
    %1294 = vmatpush1.msra.mxu0 0.0
    %1295 = vmatprep.subr.mxu0 0.0
    %1296 = vmatpush1.msra.mxu0 0.0
    %1297 = vmatprep.subr.mxu0 0.0
    %1298 = vmatpush1.msra.mxu0 0.0
    %1299 = vmatprep.subr.mxu0 0.0
    %1300 = vmatpush1.msra.mxu0 0.0
    %1301 = vmatprep.subr.mxu0 0.0
    %1302 = vmatpush1.msra.mxu0 0.0
    %1303 = vmatprep.mubr.f32.mxu0 0.0
    %1304 = vmatmul.mubr.f32.gmra.mrb[0].mxu0 %v1216
    %v1305 = vpop.f32.mrb[0].mxu0
    %v1306 = vadd.f32 %v1214, %v1305
    %v1307 = vpop.f32.mrb[0].mxu0
    %1308 = vmatprep.mubr.f32.mxu0 0.0
    %1309 = vmatmul.mubr.f32.gmra.mrb[0].mxu0 %v1219
    %v1310 = vpop.f32.mrb[0].mxu0
    %v1311 = vadd.f32 %v1214, %v1310
    %v1312 = vpop.f32.mrb[0].mxu0
    %1313 = vmatprep.mubr.f32.mxu0 0.0
    %1314 = vmatmul.mubr.f32.gmra.mrb[0].mxu0 %v1222
    %v1315 = vpop.f32.mrb[0].mxu0
    %v1316 = vadd.f32 %v1214, %v1315
    %v1317 = vpop.f32.mrb[0].mxu0
    %1318 = vmatprep.mubr.f32.mxu0 0.0
    %1319 = vmatmul.mubr.f32.gmra.mrb[0].mxu0 %v1225
    %v1320 = vpop.f32.mrb[0].mxu0
    %v1321 = vadd.f32 %v1214, %v1320
    %v1322 = vpop.f32.mrb[0].mxu0
    %1323 = vmatprep.mubr.f32.mxu0 0.0
    %1324 = vmatmul.mubr.f32.gmra.mrb[0].mxu0 %v1228
    %v1325 = vpop.f32.mrb[0].mxu0
    %v1326 = vadd.f32 %v1214, %v1325
    %v1327 = vpop.f32.mrb[0].mxu0
    %1328 = vmatprep.mubr.f32.mxu0 0.0
    %1329 = vmatmul.mubr.f32.gmra.mrb[0].mxu0 %v1231
    %v1330 = vpop.f32.mrb[0].mxu0
    %v1331 = vadd.f32 %v1214, %v1330
    %v1332 = vpop.f32.mrb[0].mxu0
    %1333 = vmatprep.mubr.f32.mxu0 0.0
    %1334 = vmatmul.mubr.f32.gmra.mrb[0].mxu0 %v1234
    %v1335 = vpop.f32.mrb[0].mxu0
    %v1336 = vadd.f32 %v1214, %v1335
    %v1337 = vpop.f32.mrb[0].mxu0
    %1338 = vmatprep.mubr.f32.mxu0 0.0
    %1339 = vmatmul.mubr.f32.gmra.mrb[0].mxu0 %v1237
    %v1340 = vpop.f32.mrb[0].mxu0
    %v1341 = vadd.f32 %v1214, %v1340
    %v1342 = vpop.f32.mrb[0].mxu0
    %1343 = vdwg.mxu0
    %v1344 = vcombine.low %v1306, %v1316
    %v1345 = vcombine.high %v1306, %v1316
    %v1347 = vunpack.c.l.s4 1983009808
    %v1348 = vunpack.c.0.s8 %v1347
    %v1349 = vlaneseq
    %v1350 = vshrl.u32 %v1349, 7
    %v1351 = vsub.s32 %v1348, %v1350
    %v1352 = vrot.slane %v1344, %v1351
    %v1354 = vunpack.c.l.s4 1983009808
    %v1355 = vunpack.c.0.s8 %v1354
    %v1356 = vlaneseq
    %v1357 = vshrl.u32 %v1356, 7
    %v1358 = vsub.s32 %v1355, %v1357
    %v1359 = vrot.slane %v1345, %v1358
    %v1360 = vcombine.low %v1311, %v1321
    %v1361 = vcombine.high %v1311, %v1321
    %v1363 = vunpack.c.l.s4 1983009808
    %v1364 = vunpack.c.0.s8 %v1363
    %v1365 = vlaneseq
    %v1366 = vshrl.u32 %v1365, 7
    %v1367 = vsub.s32 %v1364, %v1366
    %v1368 = vrot.slane %v1360, %v1367
    %v1370 = vunpack.c.l.s4 1983009808
    %v1371 = vunpack.c.0.s8 %v1370
    %v1372 = vlaneseq
    %v1373 = vshrl.u32 %v1372, 7
    %v1374 = vsub.s32 %v1371, %v1373
    %v1375 = vrot.slane %v1361, %v1374
    %v1376 = vcombine.low %v1326, %v1336
    %v1377 = vcombine.high %v1326, %v1336
    %v1379 = vunpack.c.l.s4 1983009808
    %v1380 = vunpack.c.0.s8 %v1379
    %v1381 = vlaneseq
    %v1382 = vshrl.u32 %v1381, 7
    %v1383 = vsub.s32 %v1380, %v1382
    %v1384 = vrot.slane %v1376, %v1383
    %v1386 = vunpack.c.l.s4 1983009808
    %v1387 = vunpack.c.0.s8 %v1386
    %v1388 = vlaneseq
    %v1389 = vshrl.u32 %v1388, 7
    %v1390 = vsub.s32 %v1387, %v1389
    %v1391 = vrot.slane %v1377, %v1390
    %v1392 = vcombine.low %v1331, %v1341
    %v1393 = vcombine.high %v1331, %v1341
    %v1395 = vunpack.c.l.s4 1983009808
    %v1396 = vunpack.c.0.s8 %v1395
    %v1397 = vlaneseq
    %v1398 = vshrl.u32 %v1397, 7
    %v1399 = vsub.s32 %v1396, %v1398
    %v1400 = vrot.slane %v1392, %v1399
    %v1402 = vunpack.c.l.s4 1983009808
    %v1403 = vunpack.c.0.s8 %v1402
    %v1404 = vlaneseq
    %v1405 = vshrl.u32 %v1404, 7
    %v1406 = vsub.s32 %v1403, %v1405
    %v1407 = vrot.slane %v1393, %v1406
    %v1408 = vcombine.low %v1352, %v1368
    %v1409 = vcombine.high %v1352, %v1368
    %v1411 = vunpack.c.l.s4 1934713408
    %v1412 = vunpack.c.0.s8 %v1411
    %v1413 = vlaneseq
    %v1414 = vshrl.u32 %v1413, 7
    %v1415 = vsub.s32 %v1412, %v1414
    %v1416 = vrot.slane %v1408, %v1415
    %v1418 = vunpack.c.l.s4 1934713408
    %v1419 = vunpack.c.0.s8 %v1418
    %v1420 = vlaneseq
    %v1421 = vshrl.u32 %v1420, 7
    %v1422 = vsub.s32 %v1419, %v1421
    %v1423 = vrot.slane %v1409, %v1422
    %v1424 = vcombine.low %v1359, %v1375
    %v1425 = vcombine.high %v1359, %v1375
    %v1427 = vunpack.c.l.s4 1934713408
    %v1428 = vunpack.c.0.s8 %v1427
    %v1429 = vlaneseq
    %v1430 = vshrl.u32 %v1429, 7
    %v1431 = vsub.s32 %v1428, %v1430
    %v1432 = vrot.slane %v1424, %v1431
    %v1434 = vunpack.c.l.s4 1934713408
    %v1435 = vunpack.c.0.s8 %v1434
    %v1436 = vlaneseq
    %v1437 = vshrl.u32 %v1436, 7
    %v1438 = vsub.s32 %v1435, %v1437
    %v1439 = vrot.slane %v1425, %v1438
    %v1440 = vcombine.low %v1384, %v1400
    %v1441 = vcombine.high %v1384, %v1400
    %v1443 = vunpack.c.l.s4 1934713408
    %v1444 = vunpack.c.0.s8 %v1443
    %v1445 = vlaneseq
    %v1446 = vshrl.u32 %v1445, 7
    %v1447 = vsub.s32 %v1444, %v1446
    %v1448 = vrot.slane %v1440, %v1447
    %v1450 = vunpack.c.l.s4 1934713408
    %v1451 = vunpack.c.0.s8 %v1450
    %v1452 = vlaneseq
    %v1453 = vshrl.u32 %v1452, 7
    %v1454 = vsub.s32 %v1451, %v1453
    %v1455 = vrot.slane %v1441, %v1454
    %v1456 = vcombine.low %v1391, %v1407
    %v1457 = vcombine.high %v1391, %v1407
    %v1459 = vunpack.c.l.s4 1934713408
    %v1460 = vunpack.c.0.s8 %v1459
    %v1461 = vlaneseq
    %v1462 = vshrl.u32 %v1461, 7
    %v1463 = vsub.s32 %v1460, %v1462
    %v1464 = vrot.slane %v1456, %v1463
    %v1466 = vunpack.c.l.s4 1934713408
    %v1467 = vunpack.c.0.s8 %v1466
    %v1468 = vlaneseq
    %v1469 = vshrl.u32 %v1468, 7
    %v1470 = vsub.s32 %v1467, %v1469
    %v1471 = vrot.slane %v1457, %v1470
    %v1472 = vcombine.low %v1416, %v1448
    %v1473 = vcombine.high %v1416, %v1448
    %v1474 = vcombine.low %v1423, %v1455
    %v1475 = vcombine.high %v1423, %v1455
    %v1476 = vcombine.low %v1432, %v1464
    %v1477 = vcombine.high %v1432, %v1464
    %v1478 = vcombine.low %v1439, %v1471
    %v1479 = vcombine.high %v1439, %v1471
    %1481 = vrot.lane.b32.xlu0 %v1472, 96
    %v1482 = vpop.permute.xlu0 %1481
    %v1483 = vsel %vm213, %v1472, 0
    %v1485 = vsel %vm213, %v1482, 0
    %1487 = vmatprep.subr.mxu0 0.0
    %1488 = vmatpush1.xpose.msra.mxu0 %v1485
    %1489 = vmatprep.subr.mxu0 0.0
    %1490 = vmatpush1.xpose.msra.mxu0 0.0
    %1491 = vmatprep.subr.mxu0 0.0
    %1492 = vmatpush1.xpose.msra.mxu0 0.0
    %1493 = vmatprep.subr.mxu0 0.0
    %1494 = vmatpush1.xpose.msra.mxu0 0.0
    %1495 = vmatprep.subr.mxu0 0.0
    %1496 = vmatpush1.xpose.msra.mxu0 0.0
    %1497 = vmatprep.subr.mxu0 0.0
    %1498 = vmatpush1.xpose.msra.mxu0 0.0
    %1499 = vmatprep.subr.mxu0 0.0
    %1500 = vmatpush1.xpose.msra.mxu0 0.0
    %1501 = vmatprep.subr.mxu0 0.0
    %1502 = vmatpush1.xpose.msra.mxu0 0.0
    %1503 = vmatprep.subr.mxu0 0.0
    %1504 = vmatpush1.xpose.msra.mxu0 0.0
    %1505 = vmatprep.subr.mxu0 0.0
    %1506 = vmatpush1.xpose.msra.mxu0 0.0
    %1507 = vmatprep.subr.mxu0 0.0
    %1508 = vmatpush1.xpose.msra.mxu0 0.0
    %1509 = vmatprep.subr.mxu0 0.0
    %1510 = vmatpush1.xpose.msra.mxu0 0.0
    %1511 = vmatprep.subr.mxu0 0.0
    %1512 = vmatpush1.xpose.msra.mxu0 0.0
    %1513 = vmatprep.subr.mxu0 0.0
    %1514 = vmatpush1.xpose.msra.mxu0 0.0
    %1515 = vmatprep.subr.mxu0 0.0
    %1516 = vmatpush1.xpose.msra.mxu0 0.0
    %1517 = vmatprep.subr.mxu0 0.0
    %1518 = vmatpush1.xpose.msra.mxu0 0.0
    %1519 = vmatprep.subr.mxu0 0.0
    %1520 = vmatpush1.xpose.msra.mxu0 0.0
    %1521 = vmatprep.subr.mxu0 0.0
    %1522 = vmatpush1.xpose.msra.mxu0 0.0
    %1523 = vmatprep.subr.mxu0 0.0
    %1524 = vmatpush1.xpose.msra.mxu0 0.0
    %1525 = vmatprep.subr.mxu0 0.0
    %1526 = vmatpush1.xpose.msra.mxu0 0.0
    %1527 = vmatprep.subr.mxu0 0.0
    %1528 = vmatpush1.xpose.msra.mxu0 0.0
    %1529 = vmatprep.subr.mxu0 0.0
    %1530 = vmatpush1.xpose.msra.mxu0 0.0
    %1531 = vmatprep.subr.mxu0 0.0
    %1532 = vmatpush1.xpose.msra.mxu0 0.0
    %1533 = vmatprep.subr.mxu0 0.0
    %1534 = vmatpush1.xpose.msra.mxu0 0.0
    %1535 = vmatprep.subr.mxu0 0.0
    %1536 = vmatpush1.xpose.msra.mxu0 0.0
    %1537 = vmatprep.subr.mxu0 0.0
    %1538 = vmatpush1.xpose.msra.mxu0 0.0
    %1539 = vmatprep.subr.mxu0 0.0
    %1540 = vmatpush1.xpose.msra.mxu0 0.0
    %1541 = vmatprep.subr.mxu0 0.0
    %1542 = vmatpush1.xpose.msra.mxu0 0.0
    %1543 = vmatprep.subr.mxu0 0.0
    %1544 = vmatpush1.xpose.msra.mxu0 0.0
    %1545 = vmatprep.subr.mxu0 0.0
    %1546 = vmatpush1.xpose.msra.mxu0 0.0
    %1547 = vmatprep.subr.mxu0 0.0
    %1548 = vmatpush1.xpose.msra.mxu0 0.0
    %1549 = vmatprep.subr.mxu0 0.0
    %1550 = vmatpush1.xpose.msra.mxu0 0.0
    %1551 = vmatprep.mubr.f32.mxu0 0.0
    %1552 = vmatmul.mubr.f32.gmra.mrb[0].mxu0 %v1483
    %v1553 = vpop.f32.mrb[0].mxu0
    %v1554 = vadd.f32 0.0, %v1553
    %v1555 = vpop.f32.mrb[0].mxu0
    %1556 = vdwg.mxu0
    %1558 = vrot.lane.b32.xlu0 %v1473, 96
    %v1559 = vpop.permute.xlu0 %1558
    %v1560 = vsel %vm213, %v1473, 0
    %v1562 = vsel %vm213, %v1559, 0
    %1564 = vmatprep.subr.mxu0 0.0
    %1565 = vmatpush1.xpose.msra.mxu0 %v1562
    %1566 = vmatprep.subr.mxu0 0.0
    %1567 = vmatpush1.xpose.msra.mxu0 0.0
    %1568 = vmatprep.subr.mxu0 0.0
    %1569 = vmatpush1.xpose.msra.mxu0 0.0
    %1570 = vmatprep.subr.mxu0 0.0
    %1571 = vmatpush1.xpose.msra.mxu0 0.0
    %1572 = vmatprep.subr.mxu0 0.0
    %1573 = vmatpush1.xpose.msra.mxu0 0.0
    %1574 = vmatprep.subr.mxu0 0.0
    %1575 = vmatpush1.xpose.msra.mxu0 0.0
    %1576 = vmatprep.subr.mxu0 0.0
    %1577 = vmatpush1.xpose.msra.mxu0 0.0
    %1578 = vmatprep.subr.mxu0 0.0
    %1579 = vmatpush1.xpose.msra.mxu0 0.0
    %1580 = vmatprep.subr.mxu0 0.0
    %1581 = vmatpush1.xpose.msra.mxu0 0.0
    %1582 = vmatprep.subr.mxu0 0.0
    %1583 = vmatpush1.xpose.msra.mxu0 0.0
    %1584 = vmatprep.subr.mxu0 0.0
    %1585 = vmatpush1.xpose.msra.mxu0 0.0
    %1586 = vmatprep.subr.mxu0 0.0
    %1587 = vmatpush1.xpose.msra.mxu0 0.0
    %1588 = vmatprep.subr.mxu0 0.0
    %1589 = vmatpush1.xpose.msra.mxu0 0.0
    %1590 = vmatprep.subr.mxu0 0.0
    %1591 = vmatpush1.xpose.msra.mxu0 0.0
    %1592 = vmatprep.subr.mxu0 0.0
    %1593 = vmatpush1.xpose.msra.mxu0 0.0
    %1594 = vmatprep.subr.mxu0 0.0
    %1595 = vmatpush1.xpose.msra.mxu0 0.0
    %1596 = vmatprep.subr.mxu0 0.0
    %1597 = vmatpush1.xpose.msra.mxu0 0.0
    %1598 = vmatprep.subr.mxu0 0.0
    %1599 = vmatpush1.xpose.msra.mxu0 0.0
    %1600 = vmatprep.subr.mxu0 0.0
    %1601 = vmatpush1.xpose.msra.mxu0 0.0
    %1602 = vmatprep.subr.mxu0 0.0
    %1603 = vmatpush1.xpose.msra.mxu0 0.0
    %1604 = vmatprep.subr.mxu0 0.0
    %1605 = vmatpush1.xpose.msra.mxu0 0.0
    %1606 = vmatprep.subr.mxu0 0.0
    %1607 = vmatpush1.xpose.msra.mxu0 0.0
    %1608 = vmatprep.subr.mxu0 0.0
    %1609 = vmatpush1.xpose.msra.mxu0 0.0
    %1610 = vmatprep.subr.mxu0 0.0
    %1611 = vmatpush1.xpose.msra.mxu0 0.0
    %1612 = vmatprep.subr.mxu0 0.0
    %1613 = vmatpush1.xpose.msra.mxu0 0.0
    %1614 = vmatprep.subr.mxu0 0.0
    %1615 = vmatpush1.xpose.msra.mxu0 0.0
    %1616 = vmatprep.subr.mxu0 0.0
    %1617 = vmatpush1.xpose.msra.mxu0 0.0
    %1618 = vmatprep.subr.mxu0 0.0
    %1619 = vmatpush1.xpose.msra.mxu0 0.0
    %1620 = vmatprep.subr.mxu0 0.0
    %1621 = vmatpush1.xpose.msra.mxu0 0.0
    %1622 = vmatprep.subr.mxu0 0.0
    %1623 = vmatpush1.xpose.msra.mxu0 0.0
    %1624 = vmatprep.subr.mxu0 0.0
    %1625 = vmatpush1.xpose.msra.mxu0 0.0
    %1626 = vmatprep.subr.mxu0 0.0
    %1627 = vmatpush1.xpose.msra.mxu0 0.0
    %1628 = vmatprep.mubr.f32.mxu0 0.0
    %1629 = vmatmul.mubr.f32.gmra.mrb[0].mxu0 %v1560
    %v1630 = vpop.f32.mrb[0].mxu0
    %v1631 = vadd.f32 0.0, %v1630
    %v1632 = vpop.f32.mrb[0].mxu0
    %1633 = vdwg.mxu0
    %1635 = vrot.lane.b32.xlu0 %v1474, 96
    %v1636 = vpop.permute.xlu0 %1635
    %v1637 = vsel %vm213, %v1474, 0
    %v1639 = vsel %vm213, %v1636, 0
    %1641 = vmatprep.subr.mxu0 0.0
    %1642 = vmatpush1.xpose.msra.mxu0 %v1639
    %1643 = vmatprep.subr.mxu0 0.0
    %1644 = vmatpush1.xpose.msra.mxu0 0.0
    %1645 = vmatprep.subr.mxu0 0.0
    %1646 = vmatpush1.xpose.msra.mxu0 0.0
    %1647 = vmatprep.subr.mxu0 0.0
    %1648 = vmatpush1.xpose.msra.mxu0 0.0
    %1649 = vmatprep.subr.mxu0 0.0
    %1650 = vmatpush1.xpose.msra.mxu0 0.0
    %1651 = vmatprep.subr.mxu0 0.0
    %1652 = vmatpush1.xpose.msra.mxu0 0.0
    %1653 = vmatprep.subr.mxu0 0.0
    %1654 = vmatpush1.xpose.msra.mxu0 0.0
    %1655 = vmatprep.subr.mxu0 0.0
    %1656 = vmatpush1.xpose.msra.mxu0 0.0
    %1657 = vmatprep.subr.mxu0 0.0
    %1658 = vmatpush1.xpose.msra.mxu0 0.0
    %1659 = vmatprep.subr.mxu0 0.0
    %1660 = vmatpush1.xpose.msra.mxu0 0.0
    %1661 = vmatprep.subr.mxu0 0.0
    %1662 = vmatpush1.xpose.msra.mxu0 0.0
    %1663 = vmatprep.subr.mxu0 0.0
    %1664 = vmatpush1.xpose.msra.mxu0 0.0
    %1665 = vmatprep.subr.mxu0 0.0
    %1666 = vmatpush1.xpose.msra.mxu0 0.0
    %1667 = vmatprep.subr.mxu0 0.0
    %1668 = vmatpush1.xpose.msra.mxu0 0.0
    %1669 = vmatprep.subr.mxu0 0.0
    %1670 = vmatpush1.xpose.msra.mxu0 0.0
    %1671 = vmatprep.subr.mxu0 0.0
    %1672 = vmatpush1.xpose.msra.mxu0 0.0
    %1673 = vmatprep.subr.mxu0 0.0
    %1674 = vmatpush1.xpose.msra.mxu0 0.0
    %1675 = vmatprep.subr.mxu0 0.0
    %1676 = vmatpush1.xpose.msra.mxu0 0.0
    %1677 = vmatprep.subr.mxu0 0.0
    %1678 = vmatpush1.xpose.msra.mxu0 0.0
    %1679 = vmatprep.subr.mxu0 0.0
    %1680 = vmatpush1.xpose.msra.mxu0 0.0
    %1681 = vmatprep.subr.mxu0 0.0
    %1682 = vmatpush1.xpose.msra.mxu0 0.0
    %1683 = vmatprep.subr.mxu0 0.0
    %1684 = vmatpush1.xpose.msra.mxu0 0.0
    %1685 = vmatprep.subr.mxu0 0.0
    %1686 = vmatpush1.xpose.msra.mxu0 0.0
    %1687 = vmatprep.subr.mxu0 0.0
    %1688 = vmatpush1.xpose.msra.mxu0 0.0
    %1689 = vmatprep.subr.mxu0 0.0
    %1690 = vmatpush1.xpose.msra.mxu0 0.0
    %1691 = vmatprep.subr.mxu0 0.0
    %1692 = vmatpush1.xpose.msra.mxu0 0.0
    %1693 = vmatprep.subr.mxu0 0.0
    %1694 = vmatpush1.xpose.msra.mxu0 0.0
    %1695 = vmatprep.subr.mxu0 0.0
    %1696 = vmatpush1.xpose.msra.mxu0 0.0
    %1697 = vmatprep.subr.mxu0 0.0
    %1698 = vmatpush1.xpose.msra.mxu0 0.0
    %1699 = vmatprep.subr.mxu0 0.0
    %1700 = vmatpush1.xpose.msra.mxu0 0.0
    %1701 = vmatprep.subr.mxu0 0.0
    %1702 = vmatpush1.xpose.msra.mxu0 0.0
    %1703 = vmatprep.subr.mxu0 0.0
    %1704 = vmatpush1.xpose.msra.mxu0 0.0
    %1705 = vmatprep.mubr.f32.mxu0 0.0
    %1706 = vmatmul.mubr.f32.gmra.mrb[0].mxu0 %v1637
    %v1707 = vpop.f32.mrb[0].mxu0
    %v1708 = vadd.f32 0.0, %v1707
    %v1709 = vpop.f32.mrb[0].mxu0
    %1710 = vdwg.mxu0
    %1712 = vrot.lane.b32.xlu0 %v1475, 96
    %v1713 = vpop.permute.xlu0 %1712
    %v1714 = vsel %vm213, %v1475, 0
    %v1716 = vsel %vm213, %v1713, 0
    %1718 = vmatprep.subr.mxu0 0.0
    %1719 = vmatpush1.xpose.msra.mxu0 %v1716
    %1720 = vmatprep.subr.mxu0 0.0
    %1721 = vmatpush1.xpose.msra.mxu0 0.0
    %1722 = vmatprep.subr.mxu0 0.0
    %1723 = vmatpush1.xpose.msra.mxu0 0.0
    %1724 = vmatprep.subr.mxu0 0.0
    %1725 = vmatpush1.xpose.msra.mxu0 0.0
    %1726 = vmatprep.subr.mxu0 0.0
    %1727 = vmatpush1.xpose.msra.mxu0 0.0
    %1728 = vmatprep.subr.mxu0 0.0
    %1729 = vmatpush1.xpose.msra.mxu0 0.0
    %1730 = vmatprep.subr.mxu0 0.0
    %1731 = vmatpush1.xpose.msra.mxu0 0.0
    %1732 = vmatprep.subr.mxu0 0.0
    %1733 = vmatpush1.xpose.msra.mxu0 0.0
    %1734 = vmatprep.subr.mxu0 0.0
    %1735 = vmatpush1.xpose.msra.mxu0 0.0
    %1736 = vmatprep.subr.mxu0 0.0
    %1737 = vmatpush1.xpose.msra.mxu0 0.0
    %1738 = vmatprep.subr.mxu0 0.0
    %1739 = vmatpush1.xpose.msra.mxu0 0.0
    %1740 = vmatprep.subr.mxu0 0.0
    %1741 = vmatpush1.xpose.msra.mxu0 0.0
    %1742 = vmatprep.subr.mxu0 0.0
    %1743 = vmatpush1.xpose.msra.mxu0 0.0
    %1744 = vmatprep.subr.mxu0 0.0
    %1745 = vmatpush1.xpose.msra.mxu0 0.0
    %1746 = vmatprep.subr.mxu0 0.0
    %1747 = vmatpush1.xpose.msra.mxu0 0.0
    %1748 = vmatprep.subr.mxu0 0.0
    %1749 = vmatpush1.xpose.msra.mxu0 0.0
    %1750 = vmatprep.subr.mxu0 0.0
    %1751 = vmatpush1.xpose.msra.mxu0 0.0
    %1752 = vmatprep.subr.mxu0 0.0
    %1753 = vmatpush1.xpose.msra.mxu0 0.0
    %1754 = vmatprep.subr.mxu0 0.0
    %1755 = vmatpush1.xpose.msra.mxu0 0.0
    %1756 = vmatprep.subr.mxu0 0.0
    %1757 = vmatpush1.xpose.msra.mxu0 0.0
    %1758 = vmatprep.subr.mxu0 0.0
    %1759 = vmatpush1.xpose.msra.mxu0 0.0
    %1760 = vmatprep.subr.mxu0 0.0
    %1761 = vmatpush1.xpose.msra.mxu0 0.0
    %1762 = vmatprep.subr.mxu0 0.0
    %1763 = vmatpush1.xpose.msra.mxu0 0.0
    %1764 = vmatprep.subr.mxu0 0.0
    %1765 = vmatpush1.xpose.msra.mxu0 0.0
    %1766 = vmatprep.subr.mxu0 0.0
    %1767 = vmatpush1.xpose.msra.mxu0 0.0
    %1768 = vmatprep.subr.mxu0 0.0
    %1769 = vmatpush1.xpose.msra.mxu0 0.0
    %1770 = vmatprep.subr.mxu0 0.0
    %1771 = vmatpush1.xpose.msra.mxu0 0.0
    %1772 = vmatprep.subr.mxu0 0.0
    %1773 = vmatpush1.xpose.msra.mxu0 0.0
    %1774 = vmatprep.subr.mxu0 0.0
    %1775 = vmatpush1.xpose.msra.mxu0 0.0
    %1776 = vmatprep.subr.mxu0 0.0
    %1777 = vmatpush1.xpose.msra.mxu0 0.0
    %1778 = vmatprep.subr.mxu0 0.0
    %1779 = vmatpush1.xpose.msra.mxu0 0.0
    %1780 = vmatprep.subr.mxu0 0.0
    %1781 = vmatpush1.xpose.msra.mxu0 0.0
    %1782 = vmatprep.mubr.f32.mxu0 0.0
    %1783 = vmatmul.mubr.f32.gmra.mrb[0].mxu0 %v1714
    %v1784 = vpop.f32.mrb[0].mxu0
    %v1785 = vadd.f32 0.0, %v1784
    %v1786 = vpop.f32.mrb[0].mxu0
    %1787 = vdwg.mxu0
    %1789 = vrot.lane.b32.xlu0 %v1476, 96
    %v1790 = vpop.permute.xlu0 %1789
    %v1791 = vsel %vm213, %v1476, 0
    %v1793 = vsel %vm213, %v1790, 0
    %1795 = vmatprep.subr.mxu0 0.0
    %1796 = vmatpush1.xpose.msra.mxu0 %v1793
    %1797 = vmatprep.subr.mxu0 0.0
    %1798 = vmatpush1.xpose.msra.mxu0 0.0
    %1799 = vmatprep.subr.mxu0 0.0
    %1800 = vmatpush1.xpose.msra.mxu0 0.0
    %1801 = vmatprep.subr.mxu0 0.0
    %1802 = vmatpush1.xpose.msra.mxu0 0.0
    %1803 = vmatprep.subr.mxu0 0.0
    %1804 = vmatpush1.xpose.msra.mxu0 0.0
    %1805 = vmatprep.subr.mxu0 0.0
    %1806 = vmatpush1.xpose.msra.mxu0 0.0
    %1807 = vmatprep.subr.mxu0 0.0
    %1808 = vmatpush1.xpose.msra.mxu0 0.0
    %1809 = vmatprep.subr.mxu0 0.0
    %1810 = vmatpush1.xpose.msra.mxu0 0.0
    %1811 = vmatprep.subr.mxu0 0.0
    %1812 = vmatpush1.xpose.msra.mxu0 0.0
    %1813 = vmatprep.subr.mxu0 0.0
    %1814 = vmatpush1.xpose.msra.mxu0 0.0
    %1815 = vmatprep.subr.mxu0 0.0
    %1816 = vmatpush1.xpose.msra.mxu0 0.0
    %1817 = vmatprep.subr.mxu0 0.0
    %1818 = vmatpush1.xpose.msra.mxu0 0.0
    %1819 = vmatprep.subr.mxu0 0.0
    %1820 = vmatpush1.xpose.msra.mxu0 0.0
    %1821 = vmatprep.subr.mxu0 0.0
    %1822 = vmatpush1.xpose.msra.mxu0 0.0
    %1823 = vmatprep.subr.mxu0 0.0
    %1824 = vmatpush1.xpose.msra.mxu0 0.0
    %1825 = vmatprep.subr.mxu0 0.0
    %1826 = vmatpush1.xpose.msra.mxu0 0.0
    %1827 = vmatprep.subr.mxu0 0.0
    %1828 = vmatpush1.xpose.msra.mxu0 0.0
    %1829 = vmatprep.subr.mxu0 0.0
    %1830 = vmatpush1.xpose.msra.mxu0 0.0
    %1831 = vmatprep.subr.mxu0 0.0
    %1832 = vmatpush1.xpose.msra.mxu0 0.0
    %1833 = vmatprep.subr.mxu0 0.0
    %1834 = vmatpush1.xpose.msra.mxu0 0.0
    %1835 = vmatprep.subr.mxu0 0.0
    %1836 = vmatpush1.xpose.msra.mxu0 0.0
    %1837 = vmatprep.subr.mxu0 0.0
    %1838 = vmatpush1.xpose.msra.mxu0 0.0
    %1839 = vmatprep.subr.mxu0 0.0
    %1840 = vmatpush1.xpose.msra.mxu0 0.0
    %1841 = vmatprep.subr.mxu0 0.0
    %1842 = vmatpush1.xpose.msra.mxu0 0.0
    %1843 = vmatprep.subr.mxu0 0.0
    %1844 = vmatpush1.xpose.msra.mxu0 0.0
    %1845 = vmatprep.subr.mxu0 0.0
    %1846 = vmatpush1.xpose.msra.mxu0 0.0
    %1847 = vmatprep.subr.mxu0 0.0
    %1848 = vmatpush1.xpose.msra.mxu0 0.0
    %1849 = vmatprep.subr.mxu0 0.0
    %1850 = vmatpush1.xpose.msra.mxu0 0.0
    %1851 = vmatprep.subr.mxu0 0.0
    %1852 = vmatpush1.xpose.msra.mxu0 0.0
    %1853 = vmatprep.subr.mxu0 0.0
    %1854 = vmatpush1.xpose.msra.mxu0 0.0
    %1855 = vmatprep.subr.mxu0 0.0
    %1856 = vmatpush1.xpose.msra.mxu0 0.0
    %1857 = vmatprep.subr.mxu0 0.0
    %1858 = vmatpush1.xpose.msra.mxu0 0.0
    %1859 = vmatprep.mubr.f32.mxu0 0.0
    %1860 = vmatmul.mubr.f32.gmra.mrb[0].mxu0 %v1791
    %v1861 = vpop.f32.mrb[0].mxu0
    %v1862 = vadd.f32 0.0, %v1861
    %v1863 = vpop.f32.mrb[0].mxu0
    %1864 = vdwg.mxu0
    %1866 = vrot.lane.b32.xlu0 %v1477, 96
    %v1867 = vpop.permute.xlu0 %1866
    %v1868 = vsel %vm213, %v1477, 0
    %v1870 = vsel %vm213, %v1867, 0
    %1872 = vmatprep.subr.mxu0 0.0
    %1873 = vmatpush1.xpose.msra.mxu0 %v1870
    %1874 = vmatprep.subr.mxu0 0.0
    %1875 = vmatpush1.xpose.msra.mxu0 0.0
    %1876 = vmatprep.subr.mxu0 0.0
    %1877 = vmatpush1.xpose.msra.mxu0 0.0
    %1878 = vmatprep.subr.mxu0 0.0
    %1879 = vmatpush1.xpose.msra.mxu0 0.0
    %1880 = vmatprep.subr.mxu0 0.0
    %1881 = vmatpush1.xpose.msra.mxu0 0.0
    %1882 = vmatprep.subr.mxu0 0.0
    %1883 = vmatpush1.xpose.msra.mxu0 0.0
    %1884 = vmatprep.subr.mxu0 0.0
    %1885 = vmatpush1.xpose.msra.mxu0 0.0
    %1886 = vmatprep.subr.mxu0 0.0
    %1887 = vmatpush1.xpose.msra.mxu0 0.0
    %1888 = vmatprep.subr.mxu0 0.0
    %1889 = vmatpush1.xpose.msra.mxu0 0.0
    %1890 = vmatprep.subr.mxu0 0.0
    %1891 = vmatpush1.xpose.msra.mxu0 0.0
    %1892 = vmatprep.subr.mxu0 0.0
    %1893 = vmatpush1.xpose.msra.mxu0 0.0
    %1894 = vmatprep.subr.mxu0 0.0
    %1895 = vmatpush1.xpose.msra.mxu0 0.0
    %1896 = vmatprep.subr.mxu0 0.0
    %1897 = vmatpush1.xpose.msra.mxu0 0.0
    %1898 = vmatprep.subr.mxu0 0.0
    %1899 = vmatpush1.xpose.msra.mxu0 0.0
    %1900 = vmatprep.subr.mxu0 0.0
    %1901 = vmatpush1.xpose.msra.mxu0 0.0
    %1902 = vmatprep.subr.mxu0 0.0
    %1903 = vmatpush1.xpose.msra.mxu0 0.0
    %1904 = vmatprep.subr.mxu0 0.0
    %1905 = vmatpush1.xpose.msra.mxu0 0.0
    %1906 = vmatprep.subr.mxu0 0.0
    %1907 = vmatpush1.xpose.msra.mxu0 0.0
    %1908 = vmatprep.subr.mxu0 0.0
    %1909 = vmatpush1.xpose.msra.mxu0 0.0
    %1910 = vmatprep.subr.mxu0 0.0
    %1911 = vmatpush1.xpose.msra.mxu0 0.0
    %1912 = vmatprep.subr.mxu0 0.0
    %1913 = vmatpush1.xpose.msra.mxu0 0.0
    %1914 = vmatprep.subr.mxu0 0.0
    %1915 = vmatpush1.xpose.msra.mxu0 0.0
    %1916 = vmatprep.subr.mxu0 0.0
    %1917 = vmatpush1.xpose.msra.mxu0 0.0
    %1918 = vmatprep.subr.mxu0 0.0
    %1919 = vmatpush1.xpose.msra.mxu0 0.0
    %1920 = vmatprep.subr.mxu0 0.0
    %1921 = vmatpush1.xpose.msra.mxu0 0.0
    %1922 = vmatprep.subr.mxu0 0.0
    %1923 = vmatpush1.xpose.msra.mxu0 0.0
    %1924 = vmatprep.subr.mxu0 0.0
    %1925 = vmatpush1.xpose.msra.mxu0 0.0
    %1926 = vmatprep.subr.mxu0 0.0
    %1927 = vmatpush1.xpose.msra.mxu0 0.0
    %1928 = vmatprep.subr.mxu0 0.0
    %1929 = vmatpush1.xpose.msra.mxu0 0.0
    %1930 = vmatprep.subr.mxu0 0.0
    %1931 = vmatpush1.xpose.msra.mxu0 0.0
    %1932 = vmatprep.subr.mxu0 0.0
    %1933 = vmatpush1.xpose.msra.mxu0 0.0
    %1934 = vmatprep.subr.mxu0 0.0
    %1935 = vmatpush1.xpose.msra.mxu0 0.0
    %1936 = vmatprep.mubr.f32.mxu0 0.0
    %1937 = vmatmul.mubr.f32.gmra.mrb[0].mxu0 %v1868
    %v1938 = vpop.f32.mrb[0].mxu0
    %v1939 = vadd.f32 0.0, %v1938
    %v1940 = vpop.f32.mrb[0].mxu0
    %1941 = vdwg.mxu0
    %1943 = vrot.lane.b32.xlu0 %v1478, 96
    %v1944 = vpop.permute.xlu0 %1943
    %v1945 = vsel %vm213, %v1478, 0
    %v1947 = vsel %vm213, %v1944, 0
    %1949 = vmatprep.subr.mxu0 0.0
    %1950 = vmatpush1.xpose.msra.mxu0 %v1947
    %1951 = vmatprep.subr.mxu0 0.0
    %1952 = vmatpush1.xpose.msra.mxu0 0.0
    %1953 = vmatprep.subr.mxu0 0.0
    %1954 = vmatpush1.xpose.msra.mxu0 0.0
    %1955 = vmatprep.subr.mxu0 0.0
    %1956 = vmatpush1.xpose.msra.mxu0 0.0
    %1957 = vmatprep.subr.mxu0 0.0
    %1958 = vmatpush1.xpose.msra.mxu0 0.0
    %1959 = vmatprep.subr.mxu0 0.0
    %1960 = vmatpush1.xpose.msra.mxu0 0.0
    %1961 = vmatprep.subr.mxu0 0.0
    %1962 = vmatpush1.xpose.msra.mxu0 0.0
    %1963 = vmatprep.subr.mxu0 0.0
    %1964 = vmatpush1.xpose.msra.mxu0 0.0
    %1965 = vmatprep.subr.mxu0 0.0
    %1966 = vmatpush1.xpose.msra.mxu0 0.0
    %1967 = vmatprep.subr.mxu0 0.0
    %1968 = vmatpush1.xpose.msra.mxu0 0.0
    %1969 = vmatprep.subr.mxu0 0.0
    %1970 = vmatpush1.xpose.msra.mxu0 0.0
    %1971 = vmatprep.subr.mxu0 0.0
    %1972 = vmatpush1.xpose.msra.mxu0 0.0
    %1973 = vmatprep.subr.mxu0 0.0
    %1974 = vmatpush1.xpose.msra.mxu0 0.0
    %1975 = vmatprep.subr.mxu0 0.0
    %1976 = vmatpush1.xpose.msra.mxu0 0.0
    %1977 = vmatprep.subr.mxu0 0.0
    %1978 = vmatpush1.xpose.msra.mxu0 0.0
    %1979 = vmatprep.subr.mxu0 0.0
    %1980 = vmatpush1.xpose.msra.mxu0 0.0
    %1981 = vmatprep.subr.mxu0 0.0
    %1982 = vmatpush1.xpose.msra.mxu0 0.0
    %1983 = vmatprep.subr.mxu0 0.0
    %1984 = vmatpush1.xpose.msra.mxu0 0.0
    %1985 = vmatprep.subr.mxu0 0.0
    %1986 = vmatpush1.xpose.msra.mxu0 0.0
    %1987 = vmatprep.subr.mxu0 0.0
    %1988 = vmatpush1.xpose.msra.mxu0 0.0
    %1989 = vmatprep.subr.mxu0 0.0
    %1990 = vmatpush1.xpose.msra.mxu0 0.0
    %1991 = vmatprep.subr.mxu0 0.0
    %1992 = vmatpush1.xpose.msra.mxu0 0.0
    %1993 = vmatprep.subr.mxu0 0.0
    %1994 = vmatpush1.xpose.msra.mxu0 0.0
    %1995 = vmatprep.subr.mxu0 0.0
    %1996 = vmatpush1.xpose.msra.mxu0 0.0
    %1997 = vmatprep.subr.mxu0 0.0
    %1998 = vmatpush1.xpose.msra.mxu0 0.0
    %1999 = vmatprep.subr.mxu0 0.0
    %2000 = vmatpush1.xpose.msra.mxu0 0.0
    %2001 = vmatprep.subr.mxu0 0.0
    %2002 = vmatpush1.xpose.msra.mxu0 0.0
    %2003 = vmatprep.subr.mxu0 0.0
    %2004 = vmatpush1.xpose.msra.mxu0 0.0
    %2005 = vmatprep.subr.mxu0 0.0
    %2006 = vmatpush1.xpose.msra.mxu0 0.0
    %2007 = vmatprep.subr.mxu0 0.0
    %2008 = vmatpush1.xpose.msra.mxu0 0.0
    %2009 = vmatprep.subr.mxu0 0.0
    %2010 = vmatpush1.xpose.msra.mxu0 0.0
    %2011 = vmatprep.subr.mxu0 0.0
    %2012 = vmatpush1.xpose.msra.mxu0 0.0
    %2013 = vmatprep.mubr.f32.mxu0 0.0
    %2014 = vmatmul.mubr.f32.gmra.mrb[0].mxu0 %v1945
    %v2015 = vpop.f32.mrb[0].mxu0
    %v2016 = vadd.f32 0.0, %v2015
    %v2017 = vpop.f32.mrb[0].mxu0
    %2018 = vdwg.mxu0
    %2020 = vrot.lane.b32.xlu0 %v1479, 96
    %v2021 = vpop.permute.xlu0 %2020
    %v2022 = vsel %vm213, %v1479, 0
    %v2024 = vsel %vm213, %v2021, 0
    %2026 = vmatprep.subr.mxu0 0.0
    %2027 = vmatpush1.xpose.msra.mxu0 %v2024
    %2028 = vmatprep.subr.mxu0 0.0
    %2029 = vmatpush1.xpose.msra.mxu0 0.0
    %2030 = vmatprep.subr.mxu0 0.0
    %2031 = vmatpush1.xpose.msra.mxu0 0.0
    %2032 = vmatprep.subr.mxu0 0.0
    %2033 = vmatpush1.xpose.msra.mxu0 0.0
    %2034 = vmatprep.subr.mxu0 0.0
    %2035 = vmatpush1.xpose.msra.mxu0 0.0
    %2036 = vmatprep.subr.mxu0 0.0
    %2037 = vmatpush1.xpose.msra.mxu0 0.0
    %2038 = vmatprep.subr.mxu0 0.0
    %2039 = vmatpush1.xpose.msra.mxu0 0.0
    %2040 = vmatprep.subr.mxu0 0.0
    %2041 = vmatpush1.xpose.msra.mxu0 0.0
    %2042 = vmatprep.subr.mxu0 0.0
    %2043 = vmatpush1.xpose.msra.mxu0 0.0
    %2044 = vmatprep.subr.mxu0 0.0
    %2045 = vmatpush1.xpose.msra.mxu0 0.0
    %2046 = vmatprep.subr.mxu0 0.0
    %2047 = vmatpush1.xpose.msra.mxu0 0.0
    %2048 = vmatprep.subr.mxu0 0.0
    %2049 = vmatpush1.xpose.msra.mxu0 0.0
    %2050 = vmatprep.subr.mxu0 0.0
    %2051 = vmatpush1.xpose.msra.mxu0 0.0
    %2052 = vmatprep.subr.mxu0 0.0
    %2053 = vmatpush1.xpose.msra.mxu0 0.0
    %2054 = vmatprep.subr.mxu0 0.0
    %2055 = vmatpush1.xpose.msra.mxu0 0.0
    %2056 = vmatprep.subr.mxu0 0.0
    %2057 = vmatpush1.xpose.msra.mxu0 0.0
    %2058 = vmatprep.subr.mxu0 0.0
    %2059 = vmatpush1.xpose.msra.mxu0 0.0
    %2060 = vmatprep.subr.mxu0 0.0
    %2061 = vmatpush1.xpose.msra.mxu0 0.0
    %2062 = vmatprep.subr.mxu0 0.0
    %2063 = vmatpush1.xpose.msra.mxu0 0.0
    %2064 = vmatprep.subr.mxu0 0.0
    %2065 = vmatpush1.xpose.msra.mxu0 0.0
    %2066 = vmatprep.subr.mxu0 0.0
    %2067 = vmatpush1.xpose.msra.mxu0 0.0
    %2068 = vmatprep.subr.mxu0 0.0
    %2069 = vmatpush1.xpose.msra.mxu0 0.0
    %2070 = vmatprep.subr.mxu0 0.0
    %2071 = vmatpush1.xpose.msra.mxu0 0.0
    %2072 = vmatprep.subr.mxu0 0.0
    %2073 = vmatpush1.xpose.msra.mxu0 0.0
    %2074 = vmatprep.subr.mxu0 0.0
    %2075 = vmatpush1.xpose.msra.mxu0 0.0
    %2076 = vmatprep.subr.mxu0 0.0
    %2077 = vmatpush1.xpose.msra.mxu0 0.0
    %2078 = vmatprep.subr.mxu0 0.0
    %2079 = vmatpush1.xpose.msra.mxu0 0.0
    %2080 = vmatprep.subr.mxu0 0.0
    %2081 = vmatpush1.xpose.msra.mxu0 0.0
    %2082 = vmatprep.subr.mxu0 0.0
    %2083 = vmatpush1.xpose.msra.mxu0 0.0
    %2084 = vmatprep.subr.mxu0 0.0
    %2085 = vmatpush1.xpose.msra.mxu0 0.0
    %2086 = vmatprep.subr.mxu0 0.0
    %2087 = vmatpush1.xpose.msra.mxu0 0.0
    %2088 = vmatprep.subr.mxu0 0.0
    %2089 = vmatpush1.xpose.msra.mxu0 0.0
    %2090 = vmatprep.mubr.f32.mxu0 0.0
    %2091 = vmatmul.mubr.f32.gmra.mrb[0].mxu0 %v2022
    %v2092 = vpop.f32.mrb[0].mxu0
    %v2093 = vadd.f32 0.0, %v2092
    %v2094 = vpop.f32.mrb[0].mxu0
    %2095 = vdwg.mxu0
    %v2096 = vmul.f32 %v1554, 0.17677669
    %v2097 = vmul.f32 %v1631, 0.17677669
    %v2098 = vmul.f32 %v1708, 0.17677669
    %v2099 = vmul.f32 %v1785, 0.17677669
    %v2100 = vmul.f32 %v1862, 0.17677669
    %v2101 = vmul.f32 %v1939, 0.17677669
    %v2102 = vmul.f32 %v2016, 0.17677669
    %v2103 = vmul.f32 %v2093, 0.17677669
    %vm2104 = vcmask 64512
    %v2105 = vsel %vm2104, %v2096, -inf
    %2106 = vmax.xlane.f32.xlu0 %v2105
    %v2107 = vpop.xlane.xlu0 %2106
    %v2108 = vsel %vm2104, %v2097, -inf
    %2109 = vmax.xlane.f32.xlu0 %v2108
    %v2110 = vpop.xlane.xlu0 %2109
    %v2111 = vsel %vm2104, %v2098, -inf
    %2112 = vmax.xlane.f32.xlu0 %v2111
    %v2113 = vpop.xlane.xlu0 %2112
    %v2114 = vsel %vm2104, %v2099, -inf
    %2115 = vmax.xlane.f32.xlu0 %v2114
    %v2116 = vpop.xlane.xlu0 %2115
    %v2117 = vsel %vm2104, %v2100, -inf
    %2118 = vmax.xlane.f32.xlu0 %v2117
    %v2119 = vpop.xlane.xlu0 %2118
    %v2120 = vsel %vm2104, %v2101, -inf
    %2121 = vmax.xlane.f32.xlu0 %v2120
    %v2122 = vpop.xlane.xlu0 %2121
    %v2123 = vsel %vm2104, %v2102, -inf
    %2124 = vmax.xlane.f32.xlu0 %v2123
    %v2125 = vpop.xlane.xlu0 %2124
    %v2126 = vsel %vm2104, %v2103, -inf
    %2127 = vmax.xlane.f32.xlu0 %v2126
    %v2128 = vpop.xlane.xlu0 %2127
    %v2129 = vsub.f32 %v2096, %v2107
    %v2130 = vsub.f32 %v2097, %v2110
    %v2131 = vsub.f32 %v2098, %v2113
    %v2132 = vsub.f32 %v2099, %v2116
    %v2133 = vsub.f32 %v2100, %v2119
    %v2134 = vsub.f32 %v2101, %v2122
    %v2135 = vsub.f32 %v2102, %v2125
    %v2136 = vsub.f32 %v2103, %v2128
    %v2137 = vmul.f32 %v2129, 1.442695
    %v2138 = vpow.pop %v2137
    %v2139 = vmul.f32 %v2130, 1.442695
    %v2140 = vpow.pop %v2139
    %v2141 = vmul.f32 %v2131, 1.442695
    %v2142 = vpow.pop %v2141
    %v2143 = vmul.f32 %v2132, 1.442695
    %v2144 = vpow.pop %v2143
    %v2145 = vmul.f32 %v2133, 1.442695
    %v2146 = vpow.pop %v2145
    %v2147 = vmul.f32 %v2134, 1.442695
    %v2148 = vpow.pop %v2147
    %v2149 = vmul.f32 %v2135, 1.442695
    %v2150 = vpow.pop %v2149
    %v2151 = vmul.f32 %v2136, 1.442695
    %v2152 = vpow.pop %v2151
    %v2153 = vsel %vm2104, %v2138, 0.0
    %2154 = vadd.xlane.f32.xlu0 %v2153
    %v2155 = vpop.xlane.xlu0 %2154
    %v2156 = vsel %vm2104, %v2140, 0.0
    %2157 = vadd.xlane.f32.xlu0 %v2156
    %v2158 = vpop.xlane.xlu0 %2157
    %v2159 = vsel %vm2104, %v2142, 0.0
    %2160 = vadd.xlane.f32.xlu0 %v2159
    %v2161 = vpop.xlane.xlu0 %2160
    %v2162 = vsel %vm2104, %v2144, 0.0
    %2163 = vadd.xlane.f32.xlu0 %v2162
    %v2164 = vpop.xlane.xlu0 %2163
    %v2165 = vsel %vm2104, %v2146, 0.0
    %2166 = vadd.xlane.f32.xlu0 %v2165
    %v2167 = vpop.xlane.xlu0 %2166
    %v2168 = vsel %vm2104, %v2148, 0.0
    %2169 = vadd.xlane.f32.xlu0 %v2168
    %v2170 = vpop.xlane.xlu0 %2169
    %v2171 = vsel %vm2104, %v2150, 0.0
    %2172 = vadd.xlane.f32.xlu0 %v2171
    %v2173 = vpop.xlane.xlu0 %2172
    %v2174 = vsel %vm2104, %v2152, 0.0
    %2175 = vadd.xlane.f32.xlu0 %v2174
    %v2176 = vpop.xlane.xlu0 %2175
    %v2177 = vrcp.pop %v2155
    %v2178 = vmul.f32 %v2138, %v2177
    %v2179 = vrcp.pop %v2158
    %v2180 = vmul.f32 %v2140, %v2179
    %v2181 = vrcp.pop %v2161
    %v2182 = vmul.f32 %v2142, %v2181
    %v2183 = vrcp.pop %v2164
    %v2184 = vmul.f32 %v2144, %v2183
    %v2185 = vrcp.pop %v2167
    %v2186 = vmul.f32 %v2146, %v2185
    %v2187 = vrcp.pop %v2170
    %v2188 = vmul.f32 %v2148, %v2187
    %v2189 = vrcp.pop %v2173
    %v2190 = vmul.f32 %v2150, %v2189
    %v2191 = vrcp.pop %v2176
    %v2192 = vmul.f32 %v2152, %v2191
    %2193 = vst.msk [vmem:[%s5] sm:$0xff] %vm2104, %v2178
    %2194 = vst.msk [vmem:[%s5 + $0x8] sm:$0xff] %vm2104, %v2180
    %2195 = vst.msk [vmem:[%s5 + $0x10] sm:$0xff] %vm2104, %v2182
    %2196 = vst.msk [vmem:[%s5 + $0x18] sm:$0xff] %vm2104, %v2184
    %2197 = vst.msk [vmem:[%s5 + $0x20] sm:$0xff] %vm2104, %v2186
    %2198 = vst.msk [vmem:[%s5 + $0x28] sm:$0xff] %vm2104, %v2188
    %2199 = vst.msk [vmem:[%s5 + $0x30] sm:$0xff] %vm2104, %v2190
    %2200 = vst.msk [vmem:[%s5 + $0x38] sm:$0xff] %vm2104, %v2192
    %2201 = vrot.lane.b32.xlu0 %v1472, 64
    %v2202 = vpop.permute.xlu0 %2201
    %v2205 = vsel %vm2104, %v2178, 0
    %2207 = vmatprep.subr.mxu0 0.0
    %2208 = vmatpush1.msra.mxu0 %v2202
    %2209 = vmatprep.subr.mxu0 0.0
    %2210 = vmatpush1.msra.mxu0 0.0
    %2211 = vmatprep.subr.mxu0 0.0
    %2212 = vmatpush1.msra.mxu0 0.0
    %2213 = vmatprep.subr.mxu0 0.0
    %2214 = vmatpush1.msra.mxu0 0.0
    %2215 = vmatprep.subr.mxu0 0.0
    %2216 = vmatpush1.msra.mxu0 0.0
    %2217 = vmatprep.subr.mxu0 0.0
    %2218 = vmatpush1.msra.mxu0 0.0
    %2219 = vmatprep.subr.mxu0 0.0
    %2220 = vmatpush1.msra.mxu0 0.0
    %2221 = vmatprep.subr.mxu0 0.0
    %2222 = vmatpush1.msra.mxu0 0.0
    %2223 = vmatprep.subr.mxu0 0.0
    %2224 = vmatpush1.msra.mxu0 0.0
    %2225 = vmatprep.subr.mxu0 0.0
    %2226 = vmatpush1.msra.mxu0 0.0
    %2227 = vmatprep.subr.mxu0 0.0
    %2228 = vmatpush1.msra.mxu0 0.0
    %2229 = vmatprep.subr.mxu0 0.0
    %2230 = vmatpush1.msra.mxu0 0.0
    %2231 = vmatprep.subr.mxu0 0.0
    %2232 = vmatpush1.msra.mxu0 0.0
    %2233 = vmatprep.subr.mxu0 0.0
    %2234 = vmatpush1.msra.mxu0 0.0
    %2235 = vmatprep.subr.mxu0 0.0
    %2236 = vmatpush1.msra.mxu0 0.0
    %2237 = vmatprep.subr.mxu0 0.0
    %2238 = vmatpush1.msra.mxu0 0.0
    %2239 = vmatprep.subr.mxu0 0.0
    %2240 = vmatpush1.msra.mxu0 0.0
    %2241 = vmatprep.subr.mxu0 0.0
    %2242 = vmatpush1.msra.mxu0 0.0
    %2243 = vmatprep.subr.mxu0 0.0
    %2244 = vmatpush1.msra.mxu0 0.0
    %2245 = vmatprep.subr.mxu0 0.0
    %2246 = vmatpush1.msra.mxu0 0.0
    %2247 = vmatprep.subr.mxu0 0.0
    %2248 = vmatpush1.msra.mxu0 0.0
    %2249 = vmatprep.subr.mxu0 0.0
    %2250 = vmatpush1.msra.mxu0 0.0
    %2251 = vmatprep.subr.mxu0 0.0
    %2252 = vmatpush1.msra.mxu0 0.0
    %2253 = vmatprep.subr.mxu0 0.0
    %2254 = vmatpush1.msra.mxu0 0.0
    %2255 = vmatprep.subr.mxu0 0.0
    %2256 = vmatpush1.msra.mxu0 0.0
    %2257 = vmatprep.subr.mxu0 0.0
    %2258 = vmatpush1.msra.mxu0 0.0
    %2259 = vmatprep.subr.mxu0 0.0
    %2260 = vmatpush1.msra.mxu0 0.0
    %2261 = vmatprep.subr.mxu0 0.0
    %2262 = vmatpush1.msra.mxu0 0.0
    %2263 = vmatprep.subr.mxu0 0.0
    %2264 = vmatpush1.msra.mxu0 0.0
    %2265 = vmatprep.subr.mxu0 0.0
    %2266 = vmatpush1.msra.mxu0 0.0
    %2267 = vmatprep.subr.mxu0 0.0
    %2268 = vmatpush1.msra.mxu0 0.0
    %2269 = vmatprep.subr.mxu0 0.0
    %2270 = vmatpush1.msra.mxu0 0.0
    %2271 = vmatprep.mubr.f32.mxu0 0.0
    %2272 = vmatmul.mubr.f32.gmra.mrb[0].mxu0 %v2205
    %v2273 = vpop.f32.mrb[0].mxu0
    %v2274 = vadd.f32 0.0, %v2273
    %v2275 = vpop.f32.mrb[0].mxu0
    %2276 = vdwg.mxu0
    %2277 = vrot.lane.b32.xlu0 %v1473, 64
    %v2278 = vpop.permute.xlu0 %2277
    %v2281 = vsel %vm2104, %v2180, 0
    %2283 = vmatprep.subr.mxu0 0.0
    %2284 = vmatpush1.msra.mxu0 %v2278
    %2285 = vmatprep.subr.mxu0 0.0
    %2286 = vmatpush1.msra.mxu0 0.0
    %2287 = vmatprep.subr.mxu0 0.0
    %2288 = vmatpush1.msra.mxu0 0.0
    %2289 = vmatprep.subr.mxu0 0.0
    %2290 = vmatpush1.msra.mxu0 0.0
    %2291 = vmatprep.subr.mxu0 0.0
    %2292 = vmatpush1.msra.mxu0 0.0
    %2293 = vmatprep.subr.mxu0 0.0
    %2294 = vmatpush1.msra.mxu0 0.0
    %2295 = vmatprep.subr.mxu0 0.0
    %2296 = vmatpush1.msra.mxu0 0.0
    %2297 = vmatprep.subr.mxu0 0.0
    %2298 = vmatpush1.msra.mxu0 0.0
    %2299 = vmatprep.subr.mxu0 0.0
    %2300 = vmatpush1.msra.mxu0 0.0
    %2301 = vmatprep.subr.mxu0 0.0
    %2302 = vmatpush1.msra.mxu0 0.0
    %2303 = vmatprep.subr.mxu0 0.0
    %2304 = vmatpush1.msra.mxu0 0.0
    %2305 = vmatprep.subr.mxu0 0.0
    %2306 = vmatpush1.msra.mxu0 0.0
    %2307 = vmatprep.subr.mxu0 0.0
    %2308 = vmatpush1.msra.mxu0 0.0
    %2309 = vmatprep.subr.mxu0 0.0
    %2310 = vmatpush1.msra.mxu0 0.0
    %2311 = vmatprep.subr.mxu0 0.0
    %2312 = vmatpush1.msra.mxu0 0.0
    %2313 = vmatprep.subr.mxu0 0.0
    %2314 = vmatpush1.msra.mxu0 0.0
    %2315 = vmatprep.subr.mxu0 0.0
    %2316 = vmatpush1.msra.mxu0 0.0
    %2317 = vmatprep.subr.mxu0 0.0
    %2318 = vmatpush1.msra.mxu0 0.0
    %2319 = vmatprep.subr.mxu0 0.0
    %2320 = vmatpush1.msra.mxu0 0.0
    %2321 = vmatprep.subr.mxu0 0.0
    %2322 = vmatpush1.msra.mxu0 0.0
    %2323 = vmatprep.subr.mxu0 0.0
    %2324 = vmatpush1.msra.mxu0 0.0
    %2325 = vmatprep.subr.mxu0 0.0
    %2326 = vmatpush1.msra.mxu0 0.0
    %2327 = vmatprep.subr.mxu0 0.0
    %2328 = vmatpush1.msra.mxu0 0.0
    %2329 = vmatprep.subr.mxu0 0.0
    %2330 = vmatpush1.msra.mxu0 0.0
    %2331 = vmatprep.subr.mxu0 0.0
    %2332 = vmatpush1.msra.mxu0 0.0
    %2333 = vmatprep.subr.mxu0 0.0
    %2334 = vmatpush1.msra.mxu0 0.0
    %2335 = vmatprep.subr.mxu0 0.0
    %2336 = vmatpush1.msra.mxu0 0.0
    %2337 = vmatprep.subr.mxu0 0.0
    %2338 = vmatpush1.msra.mxu0 0.0
    %2339 = vmatprep.subr.mxu0 0.0
    %2340 = vmatpush1.msra.mxu0 0.0
    %2341 = vmatprep.subr.mxu0 0.0
    %2342 = vmatpush1.msra.mxu0 0.0
    %2343 = vmatprep.subr.mxu0 0.0
    %2344 = vmatpush1.msra.mxu0 0.0
    %2345 = vmatprep.subr.mxu0 0.0
    %2346 = vmatpush1.msra.mxu0 0.0
    %2347 = vmatprep.mubr.f32.mxu0 0.0
    %2348 = vmatmul.mubr.f32.gmra.mrb[0].mxu0 %v2281
    %v2349 = vpop.f32.mrb[0].mxu0
    %v2350 = vadd.f32 0.0, %v2349
    %v2351 = vpop.f32.mrb[0].mxu0
    %2352 = vdwg.mxu0
    %2353 = vrot.lane.b32.xlu0 %v1474, 64
    %v2354 = vpop.permute.xlu0 %2353
    %v2357 = vsel %vm2104, %v2182, 0
    %2359 = vmatprep.subr.mxu0 0.0
    %2360 = vmatpush1.msra.mxu0 %v2354
    %2361 = vmatprep.subr.mxu0 0.0
    %2362 = vmatpush1.msra.mxu0 0.0
    %2363 = vmatprep.subr.mxu0 0.0
    %2364 = vmatpush1.msra.mxu0 0.0
    %2365 = vmatprep.subr.mxu0 0.0
    %2366 = vmatpush1.msra.mxu0 0.0
    %2367 = vmatprep.subr.mxu0 0.0
    %2368 = vmatpush1.msra.mxu0 0.0
    %2369 = vmatprep.subr.mxu0 0.0
    %2370 = vmatpush1.msra.mxu0 0.0
    %2371 = vmatprep.subr.mxu0 0.0
    %2372 = vmatpush1.msra.mxu0 0.0
    %2373 = vmatprep.subr.mxu0 0.0
    %2374 = vmatpush1.msra.mxu0 0.0
    %2375 = vmatprep.subr.mxu0 0.0
    %2376 = vmatpush1.msra.mxu0 0.0
    %2377 = vmatprep.subr.mxu0 0.0
    %2378 = vmatpush1.msra.mxu0 0.0
    %2379 = vmatprep.subr.mxu0 0.0
    %2380 = vmatpush1.msra.mxu0 0.0
    %2381 = vmatprep.subr.mxu0 0.0
    %2382 = vmatpush1.msra.mxu0 0.0
    %2383 = vmatprep.subr.mxu0 0.0
    %2384 = vmatpush1.msra.mxu0 0.0
    %2385 = vmatprep.subr.mxu0 0.0
    %2386 = vmatpush1.msra.mxu0 0.0
    %2387 = vmatprep.subr.mxu0 0.0
    %2388 = vmatpush1.msra.mxu0 0.0
    %2389 = vmatprep.subr.mxu0 0.0
    %2390 = vmatpush1.msra.mxu0 0.0
    %2391 = vmatprep.subr.mxu0 0.0
    %2392 = vmatpush1.msra.mxu0 0.0
    %2393 = vmatprep.subr.mxu0 0.0
    %2394 = vmatpush1.msra.mxu0 0.0
    %2395 = vmatprep.subr.mxu0 0.0
    %2396 = vmatpush1.msra.mxu0 0.0
    %2397 = vmatprep.subr.mxu0 0.0
    %2398 = vmatpush1.msra.mxu0 0.0
    %2399 = vmatprep.subr.mxu0 0.0
    %2400 = vmatpush1.msra.mxu0 0.0
    %2401 = vmatprep.subr.mxu0 0.0
    %2402 = vmatpush1.msra.mxu0 0.0
    %2403 = vmatprep.subr.mxu0 0.0
    %2404 = vmatpush1.msra.mxu0 0.0
    %2405 = vmatprep.subr.mxu0 0.0
    %2406 = vmatpush1.msra.mxu0 0.0
    %2407 = vmatprep.subr.mxu0 0.0
    %2408 = vmatpush1.msra.mxu0 0.0
    %2409 = vmatprep.subr.mxu0 0.0
    %2410 = vmatpush1.msra.mxu0 0.0
    %2411 = vmatprep.subr.mxu0 0.0
    %2412 = vmatpush1.msra.mxu0 0.0
    %2413 = vmatprep.subr.mxu0 0.0
    %2414 = vmatpush1.msra.mxu0 0.0
    %2415 = vmatprep.subr.mxu0 0.0
    %2416 = vmatpush1.msra.mxu0 0.0
    %2417 = vmatprep.subr.mxu0 0.0
    %2418 = vmatpush1.msra.mxu0 0.0
    %2419 = vmatprep.subr.mxu0 0.0
    %2420 = vmatpush1.msra.mxu0 0.0
    %2421 = vmatprep.subr.mxu0 0.0
    %2422 = vmatpush1.msra.mxu0 0.0
    %2423 = vmatprep.mubr.f32.mxu0 0.0
    %2424 = vmatmul.mubr.f32.gmra.mrb[0].mxu0 %v2357
    %v2425 = vpop.f32.mrb[0].mxu0
    %v2426 = vadd.f32 0.0, %v2425
    %v2427 = vpop.f32.mrb[0].mxu0
    %2428 = vdwg.mxu0
    %2429 = vrot.lane.b32.xlu0 %v1475, 64
    %v2430 = vpop.permute.xlu0 %2429
    %v2433 = vsel %vm2104, %v2184, 0
    %2435 = vmatprep.subr.mxu0 0.0
    %2436 = vmatpush1.msra.mxu0 %v2430
    %2437 = vmatprep.subr.mxu0 0.0
    %2438 = vmatpush1.msra.mxu0 0.0
    %2439 = vmatprep.subr.mxu0 0.0
    %2440 = vmatpush1.msra.mxu0 0.0
    %2441 = vmatprep.subr.mxu0 0.0
    %2442 = vmatpush1.msra.mxu0 0.0
    %2443 = vmatprep.subr.mxu0 0.0
    %2444 = vmatpush1.msra.mxu0 0.0
    %2445 = vmatprep.subr.mxu0 0.0
    %2446 = vmatpush1.msra.mxu0 0.0
    %2447 = vmatprep.subr.mxu0 0.0
    %2448 = vmatpush1.msra.mxu0 0.0
    %2449 = vmatprep.subr.mxu0 0.0
    %2450 = vmatpush1.msra.mxu0 0.0
    %2451 = vmatprep.subr.mxu0 0.0
    %2452 = vmatpush1.msra.mxu0 0.0
    %2453 = vmatprep.subr.mxu0 0.0
    %2454 = vmatpush1.msra.mxu0 0.0
    %2455 = vmatprep.subr.mxu0 0.0
    %2456 = vmatpush1.msra.mxu0 0.0
    %2457 = vmatprep.subr.mxu0 0.0
    %2458 = vmatpush1.msra.mxu0 0.0
    %2459 = vmatprep.subr.mxu0 0.0
    %2460 = vmatpush1.msra.mxu0 0.0
    %2461 = vmatprep.subr.mxu0 0.0
    %2462 = vmatpush1.msra.mxu0 0.0
    %2463 = vmatprep.subr.mxu0 0.0
    %2464 = vmatpush1.msra.mxu0 0.0
    %2465 = vmatprep.subr.mxu0 0.0
    %2466 = vmatpush1.msra.mxu0 0.0
    %2467 = vmatprep.subr.mxu0 0.0
    %2468 = vmatpush1.msra.mxu0 0.0
    %2469 = vmatprep.subr.mxu0 0.0
    %2470 = vmatpush1.msra.mxu0 0.0
    %2471 = vmatprep.subr.mxu0 0.0
    %2472 = vmatpush1.msra.mxu0 0.0
    %2473 = vmatprep.subr.mxu0 0.0
    %2474 = vmatpush1.msra.mxu0 0.0
    %2475 = vmatprep.subr.mxu0 0.0
    %2476 = vmatpush1.msra.mxu0 0.0
    %2477 = vmatprep.subr.mxu0 0.0
    %2478 = vmatpush1.msra.mxu0 0.0
    %2479 = vmatprep.subr.mxu0 0.0
    %2480 = vmatpush1.msra.mxu0 0.0
    %2481 = vmatprep.subr.mxu0 0.0
    %2482 = vmatpush1.msra.mxu0 0.0
    %2483 = vmatprep.subr.mxu0 0.0
    %2484 = vmatpush1.msra.mxu0 0.0
    %2485 = vmatprep.subr.mxu0 0.0
    %2486 = vmatpush1.msra.mxu0 0.0
    %2487 = vmatprep.subr.mxu0 0.0
    %2488 = vmatpush1.msra.mxu0 0.0
    %2489 = vmatprep.subr.mxu0 0.0
    %2490 = vmatpush1.msra.mxu0 0.0
    %2491 = vmatprep.subr.mxu0 0.0
    %2492 = vmatpush1.msra.mxu0 0.0
    %2493 = vmatprep.subr.mxu0 0.0
    %2494 = vmatpush1.msra.mxu0 0.0
    %2495 = vmatprep.subr.mxu0 0.0
    %2496 = vmatpush1.msra.mxu0 0.0
    %2497 = vmatprep.subr.mxu0 0.0
    %2498 = vmatpush1.msra.mxu0 0.0
    %2499 = vmatprep.mubr.f32.mxu0 0.0
    %2500 = vmatmul.mubr.f32.gmra.mrb[0].mxu0 %v2433
    %v2501 = vpop.f32.mrb[0].mxu0
    %v2502 = vadd.f32 0.0, %v2501
    %v2503 = vpop.f32.mrb[0].mxu0
    %2504 = vdwg.mxu0
    %2505 = vrot.lane.b32.xlu0 %v1476, 64
    %v2506 = vpop.permute.xlu0 %2505
    %v2509 = vsel %vm2104, %v2186, 0
    %2511 = vmatprep.subr.mxu0 0.0
    %2512 = vmatpush1.msra.mxu0 %v2506
    %2513 = vmatprep.subr.mxu0 0.0
    %2514 = vmatpush1.msra.mxu0 0.0
    %2515 = vmatprep.subr.mxu0 0.0
    %2516 = vmatpush1.msra.mxu0 0.0
    %2517 = vmatprep.subr.mxu0 0.0
    %2518 = vmatpush1.msra.mxu0 0.0
    %2519 = vmatprep.subr.mxu0 0.0
    %2520 = vmatpush1.msra.mxu0 0.0
    %2521 = vmatprep.subr.mxu0 0.0
    %2522 = vmatpush1.msra.mxu0 0.0
    %2523 = vmatprep.subr.mxu0 0.0
    %2524 = vmatpush1.msra.mxu0 0.0
    %2525 = vmatprep.subr.mxu0 0.0
    %2526 = vmatpush1.msra.mxu0 0.0
    %2527 = vmatprep.subr.mxu0 0.0
    %2528 = vmatpush1.msra.mxu0 0.0
    %2529 = vmatprep.subr.mxu0 0.0
    %2530 = vmatpush1.msra.mxu0 0.0
    %2531 = vmatprep.subr.mxu0 0.0
    %2532 = vmatpush1.msra.mxu0 0.0
    %2533 = vmatprep.subr.mxu0 0.0
    %2534 = vmatpush1.msra.mxu0 0.0
    %2535 = vmatprep.subr.mxu0 0.0
    %2536 = vmatpush1.msra.mxu0 0.0
    %2537 = vmatprep.subr.mxu0 0.0
    %2538 = vmatpush1.msra.mxu0 0.0
    %2539 = vmatprep.subr.mxu0 0.0
    %2540 = vmatpush1.msra.mxu0 0.0
    %2541 = vmatprep.subr.mxu0 0.0
    %2542 = vmatpush1.msra.mxu0 0.0
    %2543 = vmatprep.subr.mxu0 0.0
    %2544 = vmatpush1.msra.mxu0 0.0
    %2545 = vmatprep.subr.mxu0 0.0
    %2546 = vmatpush1.msra.mxu0 0.0
    %2547 = vmatprep.subr.mxu0 0.0
    %2548 = vmatpush1.msra.mxu0 0.0
    %2549 = vmatprep.subr.mxu0 0.0
    %2550 = vmatpush1.msra.mxu0 0.0
    %2551 = vmatprep.subr.mxu0 0.0
    %2552 = vmatpush1.msra.mxu0 0.0
    %2553 = vmatprep.subr.mxu0 0.0
    %2554 = vmatpush1.msra.mxu0 0.0
    %2555 = vmatprep.subr.mxu0 0.0
    %2556 = vmatpush1.msra.mxu0 0.0
    %2557 = vmatprep.subr.mxu0 0.0
    %2558 = vmatpush1.msra.mxu0 0.0
    %2559 = vmatprep.subr.mxu0 0.0
    %2560 = vmatpush1.msra.mxu0 0.0
    %2561 = vmatprep.subr.mxu0 0.0
    %2562 = vmatpush1.msra.mxu0 0.0
    %2563 = vmatprep.subr.mxu0 0.0
    %2564 = vmatpush1.msra.mxu0 0.0
    %2565 = vmatprep.subr.mxu0 0.0
    %2566 = vmatpush1.msra.mxu0 0.0
    %2567 = vmatprep.subr.mxu0 0.0
    %2568 = vmatpush1.msra.mxu0 0.0
    %2569 = vmatprep.subr.mxu0 0.0
    %2570 = vmatpush1.msra.mxu0 0.0
    %2571 = vmatprep.subr.mxu0 0.0
    %2572 = vmatpush1.msra.mxu0 0.0
    %2573 = vmatprep.subr.mxu0 0.0
    %2574 = vmatpush1.msra.mxu0 0.0
    %2575 = vmatprep.mubr.f32.mxu0 0.0
    %2576 = vmatmul.mubr.f32.gmra.mrb[0].mxu0 %v2509
    %v2577 = vpop.f32.mrb[0].mxu0
    %v2578 = vadd.f32 0.0, %v2577
    %v2579 = vpop.f32.mrb[0].mxu0
    %2580 = vdwg.mxu0
    %2581 = vrot.lane.b32.xlu0 %v1477, 64
    %v2582 = vpop.permute.xlu0 %2581
    %v2585 = vsel %vm2104, %v2188, 0
    %2587 = vmatprep.subr.mxu0 0.0
    %2588 = vmatpush1.msra.mxu0 %v2582
    %2589 = vmatprep.subr.mxu0 0.0
    %2590 = vmatpush1.msra.mxu0 0.0
    %2591 = vmatprep.subr.mxu0 0.0
    %2592 = vmatpush1.msra.mxu0 0.0
    %2593 = vmatprep.subr.mxu0 0.0
    %2594 = vmatpush1.msra.mxu0 0.0
    %2595 = vmatprep.subr.mxu0 0.0
    %2596 = vmatpush1.msra.mxu0 0.0
    %2597 = vmatprep.subr.mxu0 0.0
    %2598 = vmatpush1.msra.mxu0 0.0
    %2599 = vmatprep.subr.mxu0 0.0
    %2600 = vmatpush1.msra.mxu0 0.0
    %2601 = vmatprep.subr.mxu0 0.0
    %2602 = vmatpush1.msra.mxu0 0.0
    %2603 = vmatprep.subr.mxu0 0.0
    %2604 = vmatpush1.msra.mxu0 0.0
    %2605 = vmatprep.subr.mxu0 0.0
    %2606 = vmatpush1.msra.mxu0 0.0
    %2607 = vmatprep.subr.mxu0 0.0
    %2608 = vmatpush1.msra.mxu0 0.0
    %2609 = vmatprep.subr.mxu0 0.0
    %2610 = vmatpush1.msra.mxu0 0.0
    %2611 = vmatprep.subr.mxu0 0.0
    %2612 = vmatpush1.msra.mxu0 0.0
    %2613 = vmatprep.subr.mxu0 0.0
    %2614 = vmatpush1.msra.mxu0 0.0
    %2615 = vmatprep.subr.mxu0 0.0
    %2616 = vmatpush1.msra.mxu0 0.0
    %2617 = vmatprep.subr.mxu0 0.0
    %2618 = vmatpush1.msra.mxu0 0.0
    %2619 = vmatprep.subr.mxu0 0.0
    %2620 = vmatpush1.msra.mxu0 0.0
    %2621 = vmatprep.subr.mxu0 0.0
    %2622 = vmatpush1.msra.mxu0 0.0
    %2623 = vmatprep.subr.mxu0 0.0
    %2624 = vmatpush1.msra.mxu0 0.0
    %2625 = vmatprep.subr.mxu0 0.0
    %2626 = vmatpush1.msra.mxu0 0.0
    %2627 = vmatprep.subr.mxu0 0.0
    %2628 = vmatpush1.msra.mxu0 0.0
    %2629 = vmatprep.subr.mxu0 0.0
    %2630 = vmatpush1.msra.mxu0 0.0
    %2631 = vmatprep.subr.mxu0 0.0
    %2632 = vmatpush1.msra.mxu0 0.0
    %2633 = vmatprep.subr.mxu0 0.0
    %2634 = vmatpush1.msra.mxu0 0.0
    %2635 = vmatprep.subr.mxu0 0.0
    %2636 = vmatpush1.msra.mxu0 0.0
    %2637 = vmatprep.subr.mxu0 0.0
    %2638 = vmatpush1.msra.mxu0 0.0
    %2639 = vmatprep.subr.mxu0 0.0
    %2640 = vmatpush1.msra.mxu0 0.0
    %2641 = vmatprep.subr.mxu0 0.0
    %2642 = vmatpush1.msra.mxu0 0.0
    %2643 = vmatprep.subr.mxu0 0.0
    %2644 = vmatpush1.msra.mxu0 0.0
    %2645 = vmatprep.subr.mxu0 0.0
    %2646 = vmatpush1.msra.mxu0 0.0
    %2647 = vmatprep.subr.mxu0 0.0
    %2648 = vmatpush1.msra.mxu0 0.0
    %2649 = vmatprep.subr.mxu0 0.0
    %2650 = vmatpush1.msra.mxu0 0.0
    %2651 = vmatprep.mubr.f32.mxu0 0.0
    %2652 = vmatmul.mubr.f32.gmra.mrb[0].mxu0 %v2585
    %v2653 = vpop.f32.mrb[0].mxu0
    %v2654 = vadd.f32 0.0, %v2653
    %v2655 = vpop.f32.mrb[0].mxu0
    %2656 = vdwg.mxu0
    %2657 = vrot.lane.b32.xlu0 %v1478, 64
    %v2658 = vpop.permute.xlu0 %2657
    %v2661 = vsel %vm2104, %v2190, 0
    %2663 = vmatprep.subr.mxu0 0.0
    %2664 = vmatpush1.msra.mxu0 %v2658
    %2665 = vmatprep.subr.mxu0 0.0
    %2666 = vmatpush1.msra.mxu0 0.0
    %2667 = vmatprep.subr.mxu0 0.0
    %2668 = vmatpush1.msra.mxu0 0.0
    %2669 = vmatprep.subr.mxu0 0.0
    %2670 = vmatpush1.msra.mxu0 0.0
    %2671 = vmatprep.subr.mxu0 0.0
    %2672 = vmatpush1.msra.mxu0 0.0
    %2673 = vmatprep.subr.mxu0 0.0
    %2674 = vmatpush1.msra.mxu0 0.0
    %2675 = vmatprep.subr.mxu0 0.0
    %2676 = vmatpush1.msra.mxu0 0.0
    %2677 = vmatprep.subr.mxu0 0.0
    %2678 = vmatpush1.msra.mxu0 0.0
    %2679 = vmatprep.subr.mxu0 0.0
    %2680 = vmatpush1.msra.mxu0 0.0
    %2681 = vmatprep.subr.mxu0 0.0
    %2682 = vmatpush1.msra.mxu0 0.0
    %2683 = vmatprep.subr.mxu0 0.0
    %2684 = vmatpush1.msra.mxu0 0.0
    %2685 = vmatprep.subr.mxu0 0.0
    %2686 = vmatpush1.msra.mxu0 0.0
    %2687 = vmatprep.subr.mxu0 0.0
    %2688 = vmatpush1.msra.mxu0 0.0
    %2689 = vmatprep.subr.mxu0 0.0
    %2690 = vmatpush1.msra.mxu0 0.0
    %2691 = vmatprep.subr.mxu0 0.0
    %2692 = vmatpush1.msra.mxu0 0.0
    %2693 = vmatprep.subr.mxu0 0.0
    %2694 = vmatpush1.msra.mxu0 0.0
    %2695 = vmatprep.subr.mxu0 0.0
    %2696 = vmatpush1.msra.mxu0 0.0
    %2697 = vmatprep.subr.mxu0 0.0
    %2698 = vmatpush1.msra.mxu0 0.0
    %2699 = vmatprep.subr.mxu0 0.0
    %2700 = vmatpush1.msra.mxu0 0.0
    %2701 = vmatprep.subr.mxu0 0.0
    %2702 = vmatpush1.msra.mxu0 0.0
    %2703 = vmatprep.subr.mxu0 0.0
    %2704 = vmatpush1.msra.mxu0 0.0
    %2705 = vmatprep.subr.mxu0 0.0
    %2706 = vmatpush1.msra.mxu0 0.0
    %2707 = vmatprep.subr.mxu0 0.0
    %2708 = vmatpush1.msra.mxu0 0.0
    %2709 = vmatprep.subr.mxu0 0.0
    %2710 = vmatpush1.msra.mxu0 0.0
    %2711 = vmatprep.subr.mxu0 0.0
    %2712 = vmatpush1.msra.mxu0 0.0
    %2713 = vmatprep.subr.mxu0 0.0
    %2714 = vmatpush1.msra.mxu0 0.0
    %2715 = vmatprep.subr.mxu0 0.0
    %2716 = vmatpush1.msra.mxu0 0.0
    %2717 = vmatprep.subr.mxu0 0.0
    %2718 = vmatpush1.msra.mxu0 0.0
    %2719 = vmatprep.subr.mxu0 0.0
    %2720 = vmatpush1.msra.mxu0 0.0
    %2721 = vmatprep.subr.mxu0 0.0
    %2722 = vmatpush1.msra.mxu0 0.0
    %2723 = vmatprep.subr.mxu0 0.0
    %2724 = vmatpush1.msra.mxu0 0.0
    %2725 = vmatprep.subr.mxu0 0.0
    %2726 = vmatpush1.msra.mxu0 0.0
    %2727 = vmatprep.mubr.f32.mxu0 0.0
    %2728 = vmatmul.mubr.f32.gmra.mrb[0].mxu0 %v2661
    %v2729 = vpop.f32.mrb[0].mxu0
    %v2730 = vadd.f32 0.0, %v2729
    %v2731 = vpop.f32.mrb[0].mxu0
    %2732 = vdwg.mxu0
    %2733 = vrot.lane.b32.xlu0 %v1479, 64
    %v2734 = vpop.permute.xlu0 %2733
    %v2737 = vsel %vm2104, %v2192, 0
    %2739 = vmatprep.subr.mxu0 0.0
    %2740 = vmatpush1.msra.mxu0 %v2734
    %2741 = vmatprep.subr.mxu0 0.0
    %2742 = vmatpush1.msra.mxu0 0.0
    %2743 = vmatprep.subr.mxu0 0.0
    %2744 = vmatpush1.msra.mxu0 0.0
    %2745 = vmatprep.subr.mxu0 0.0
    %2746 = vmatpush1.msra.mxu0 0.0
    %2747 = vmatprep.subr.mxu0 0.0
    %2748 = vmatpush1.msra.mxu0 0.0
    %2749 = vmatprep.subr.mxu0 0.0
    %2750 = vmatpush1.msra.mxu0 0.0
    %2751 = vmatprep.subr.mxu0 0.0
    %2752 = vmatpush1.msra.mxu0 0.0
    %2753 = vmatprep.subr.mxu0 0.0
    %2754 = vmatpush1.msra.mxu0 0.0
    %2755 = vmatprep.subr.mxu0 0.0
    %2756 = vmatpush1.msra.mxu0 0.0
    %2757 = vmatprep.subr.mxu0 0.0
    %2758 = vmatpush1.msra.mxu0 0.0
    %2759 = vmatprep.subr.mxu0 0.0
    %2760 = vmatpush1.msra.mxu0 0.0
    %2761 = vmatprep.subr.mxu0 0.0
    %2762 = vmatpush1.msra.mxu0 0.0
    %2763 = vmatprep.subr.mxu0 0.0
    %2764 = vmatpush1.msra.mxu0 0.0
    %2765 = vmatprep.subr.mxu0 0.0
    %2766 = vmatpush1.msra.mxu0 0.0
    %2767 = vmatprep.subr.mxu0 0.0
    %2768 = vmatpush1.msra.mxu0 0.0
    %2769 = vmatprep.subr.mxu0 0.0
    %2770 = vmatpush1.msra.mxu0 0.0
    %2771 = vmatprep.subr.mxu0 0.0
    %2772 = vmatpush1.msra.mxu0 0.0
    %2773 = vmatprep.subr.mxu0 0.0
    %2774 = vmatpush1.msra.mxu0 0.0
    %2775 = vmatprep.subr.mxu0 0.0
    %2776 = vmatpush1.msra.mxu0 0.0
    %2777 = vmatprep.subr.mxu0 0.0
    %2778 = vmatpush1.msra.mxu0 0.0
    %2779 = vmatprep.subr.mxu0 0.0
    %2780 = vmatpush1.msra.mxu0 0.0
    %2781 = vmatprep.subr.mxu0 0.0
    %2782 = vmatpush1.msra.mxu0 0.0
    %2783 = vmatprep.subr.mxu0 0.0
    %2784 = vmatpush1.msra.mxu0 0.0
    %2785 = vmatprep.subr.mxu0 0.0
    %2786 = vmatpush1.msra.mxu0 0.0
    %2787 = vmatprep.subr.mxu0 0.0
    %2788 = vmatpush1.msra.mxu0 0.0
    %2789 = vmatprep.subr.mxu0 0.0
    %2790 = vmatpush1.msra.mxu0 0.0
    %2791 = vmatprep.subr.mxu0 0.0
    %2792 = vmatpush1.msra.mxu0 0.0
    %2793 = vmatprep.subr.mxu0 0.0
    %2794 = vmatpush1.msra.mxu0 0.0
    %2795 = vmatprep.subr.mxu0 0.0
    %2796 = vmatpush1.msra.mxu0 0.0
    %2797 = vmatprep.subr.mxu0 0.0
    %2798 = vmatpush1.msra.mxu0 0.0
    %2799 = vmatprep.subr.mxu0 0.0
    %2800 = vmatpush1.msra.mxu0 0.0
    %2801 = vmatprep.subr.mxu0 0.0
    %2802 = vmatpush1.msra.mxu0 0.0
    %2803 = vmatprep.mubr.f32.mxu0 0.0
    %2804 = vmatmul.mubr.f32.gmra.mrb[0].mxu0 %v2737
    %v2805 = vpop.f32.mrb[0].mxu0
    %v2806 = vadd.f32 0.0, %v2805
    %v2807 = vpop.f32.mrb[0].mxu0
    %2808 = vdwg.mxu0
    %v2809 = vlaneseq
    %v2810 = vshrl.u32 %v2809, 7
    %v2811 = vsub.s32 4, %v2810
    %v2812 = vrot.slane %v58, %v2811
    %v2821 = vrot.slane %v2274, 7
    %v2822 = vrot.slane %v2350, 6
    %vm2823 = vcmask 1041409
    %v2824 = vsel %vm2823, %v2822, %v2821
    %v2825 = vrot.slane %v2426, 5
    %vm2826 = vcmask 1042434
    %v2827 = vsel %vm2826, %v2825, %v2824
    %v2828 = vrot.slane %v2502, 4
    %vm2829 = vcmask 1043459
    %v2830 = vsel %vm2829, %v2828, %v2827
    %v2831 = vrot.slane %v2578, 3
    %vm2832 = vcmask 1044484
    %v2833 = vsel %vm2832, %v2831, %v2830
    %v2834 = vrot.slane %v2654, 2
    %vm2835 = vcmask 1045509
    %v2836 = vsel %vm2835, %v2834, %v2833
    %v2837 = vrot.slane %v2730, 1
    %vm2838 = vcmask 1046534
    %v2839 = vsel %vm2838, %v2837, %v2836
    %vm2840 = vcmask 1047559
    %v2841 = vsel %vm2840, %v2806, %v2839
    %v2842 = vsel %vm213, %v2841, 0
    %2844 = vmatprep.subr.mxu0 0.0
    %2845 = vmatpush1.msra.mxu0 %v54
    %2846 = vmatprep.subr.mxu0 0.0
    %2847 = vmatpush1.msra.mxu0 %v55
    %2848 = vmatprep.subr.mxu0 0.0
    %2849 = vmatpush1.msra.mxu0 %v56
    %2850 = vmatprep.subr.mxu0 0.0
    %2851 = vmatpush1.msra.mxu0 %v57
    %2852 = vmatprep.subr.mxu0 0.0
    %2853 = vmatpush1.msra.mxu0 0.0
    %2854 = vmatprep.subr.mxu0 0.0
    %2855 = vmatpush1.msra.mxu0 0.0
    %2856 = vmatprep.subr.mxu0 0.0
    %2857 = vmatpush1.msra.mxu0 0.0
    %2858 = vmatprep.subr.mxu0 0.0
    %2859 = vmatpush1.msra.mxu0 0.0
    %2860 = vmatprep.subr.mxu0 0.0
    %2861 = vmatpush1.msra.mxu0 0.0
    %2862 = vmatprep.subr.mxu0 0.0
    %2863 = vmatpush1.msra.mxu0 0.0
    %2864 = vmatprep.subr.mxu0 0.0
    %2865 = vmatpush1.msra.mxu0 0.0
    %2866 = vmatprep.subr.mxu0 0.0
    %2867 = vmatpush1.msra.mxu0 0.0
    %2868 = vmatprep.subr.mxu0 0.0
    %2869 = vmatpush1.msra.mxu0 0.0
    %2870 = vmatprep.subr.mxu0 0.0
    %2871 = vmatpush1.msra.mxu0 0.0
    %2872 = vmatprep.subr.mxu0 0.0
    %2873 = vmatpush1.msra.mxu0 0.0
    %2874 = vmatprep.subr.mxu0 0.0
    %2875 = vmatpush1.msra.mxu0 0.0
    %2876 = vmatprep.subr.mxu0 0.0
    %2877 = vmatpush1.msra.mxu0 0.0
    %2878 = vmatprep.subr.mxu0 0.0
    %2879 = vmatpush1.msra.mxu0 0.0
    %2880 = vmatprep.subr.mxu0 0.0
    %2881 = vmatpush1.msra.mxu0 0.0
    %2882 = vmatprep.subr.mxu0 0.0
    %2883 = vmatpush1.msra.mxu0 0.0
    %2884 = vmatprep.subr.mxu0 0.0
    %2885 = vmatpush1.msra.mxu0 0.0
    %2886 = vmatprep.subr.mxu0 0.0
    %2887 = vmatpush1.msra.mxu0 0.0
    %2888 = vmatprep.subr.mxu0 0.0
    %2889 = vmatpush1.msra.mxu0 0.0
    %2890 = vmatprep.subr.mxu0 0.0
    %2891 = vmatpush1.msra.mxu0 0.0
    %2892 = vmatprep.subr.mxu0 0.0
    %2893 = vmatpush1.msra.mxu0 0.0
    %2894 = vmatprep.subr.mxu0 0.0
    %2895 = vmatpush1.msra.mxu0 0.0
    %2896 = vmatprep.subr.mxu0 0.0
    %2897 = vmatpush1.msra.mxu0 0.0
    %2898 = vmatprep.subr.mxu0 0.0
    %2899 = vmatpush1.msra.mxu0 0.0
    %2900 = vmatprep.subr.mxu0 0.0
    %2901 = vmatpush1.msra.mxu0 0.0
    %2902 = vmatprep.subr.mxu0 0.0
    %2903 = vmatpush1.msra.mxu0 0.0
    %2904 = vmatprep.subr.mxu0 0.0
    %2905 = vmatpush1.msra.mxu0 0.0
    %2906 = vmatprep.subr.mxu0 0.0
    %2907 = vmatpush1.msra.mxu0 0.0
    %2908 = vmatprep.mubr.f32.mxu0 0.0
    %2909 = vmatmul.mubr.f32.gmra.mrb[0].mxu0 %v2842
    %v2910 = vpop.f32.mrb[0].mxu0
    %v2911 = vadd.f32 %v2812, %v2910
    %v2912 = vpop.f32.mrb[0].mxu0
    %2913 = vdwg.mxu0
    %v2914 = vlaneseq
    %v2915 = vshrl.u32 %v2914, 7
    %v2916 = vsub.s32 5, %v2915
    %v2917 = vrot.slane %v58, %v2916
    %2922 = vrot.lane.b32.xlu0 %v54, 96
    %v2923 = vpop.permute.xlu0 %2922
    %2924 = vrot.lane.b32.xlu0 %v55, 96
    %v2925 = vpop.permute.xlu0 %2924
    %2926 = vrot.lane.b32.xlu0 %v56, 96
    %v2927 = vpop.permute.xlu0 %2926
    %2928 = vrot.lane.b32.xlu0 %v57, 96
    %v2929 = vpop.permute.xlu0 %2928
    %v2935 = vsel %vm213, %v2911, 0
    %2937 = vmatprep.subr.mxu0 0.0
    %2938 = vmatpush1.msra.mxu0 %v2923
    %2939 = vmatprep.subr.mxu0 0.0
    %2940 = vmatpush1.msra.mxu0 %v2925
    %2941 = vmatprep.subr.mxu0 0.0
    %2942 = vmatpush1.msra.mxu0 %v2927
    %2943 = vmatprep.subr.mxu0 0.0
    %2944 = vmatpush1.msra.mxu0 %v2929
    %2945 = vmatprep.subr.mxu0 0.0
    %2946 = vmatpush1.msra.mxu0 0.0
    %2947 = vmatprep.subr.mxu0 0.0
    %2948 = vmatpush1.msra.mxu0 0.0
    %2949 = vmatprep.subr.mxu0 0.0
    %2950 = vmatpush1.msra.mxu0 0.0
    %2951 = vmatprep.subr.mxu0 0.0
    %2952 = vmatpush1.msra.mxu0 0.0
    %2953 = vmatprep.subr.mxu0 0.0
    %2954 = vmatpush1.msra.mxu0 0.0
    %2955 = vmatprep.subr.mxu0 0.0
    %2956 = vmatpush1.msra.mxu0 0.0
    %2957 = vmatprep.subr.mxu0 0.0
    %2958 = vmatpush1.msra.mxu0 0.0
    %2959 = vmatprep.subr.mxu0 0.0
    %2960 = vmatpush1.msra.mxu0 0.0
    %2961 = vmatprep.subr.mxu0 0.0
    %2962 = vmatpush1.msra.mxu0 0.0
    %2963 = vmatprep.subr.mxu0 0.0
    %2964 = vmatpush1.msra.mxu0 0.0
    %2965 = vmatprep.subr.mxu0 0.0
    %2966 = vmatpush1.msra.mxu0 0.0
    %2967 = vmatprep.subr.mxu0 0.0
    %2968 = vmatpush1.msra.mxu0 0.0
    %2969 = vmatprep.subr.mxu0 0.0
    %2970 = vmatpush1.msra.mxu0 0.0
    %2971 = vmatprep.subr.mxu0 0.0
    %2972 = vmatpush1.msra.mxu0 0.0
    %2973 = vmatprep.subr.mxu0 0.0
    %2974 = vmatpush1.msra.mxu0 0.0
    %2975 = vmatprep.subr.mxu0 0.0
    %2976 = vmatpush1.msra.mxu0 0.0
    %2977 = vmatprep.subr.mxu0 0.0
    %2978 = vmatpush1.msra.mxu0 0.0
    %2979 = vmatprep.subr.mxu0 0.0
    %2980 = vmatpush1.msra.mxu0 0.0
    %2981 = vmatprep.subr.mxu0 0.0
    %2982 = vmatpush1.msra.mxu0 0.0
    %2983 = vmatprep.subr.mxu0 0.0
    %2984 = vmatpush1.msra.mxu0 0.0
    %2985 = vmatprep.subr.mxu0 0.0
    %2986 = vmatpush1.msra.mxu0 0.0
    %2987 = vmatprep.subr.mxu0 0.0
    %2988 = vmatpush1.msra.mxu0 0.0
    %2989 = vmatprep.subr.mxu0 0.0
    %2990 = vmatpush1.msra.mxu0 0.0
    %2991 = vmatprep.subr.mxu0 0.0
    %2992 = vmatpush1.msra.mxu0 0.0
    %2993 = vmatprep.subr.mxu0 0.0
    %2994 = vmatpush1.msra.mxu0 0.0
    %2995 = vmatprep.subr.mxu0 0.0
    %2996 = vmatpush1.msra.mxu0 0.0
    %2997 = vmatprep.subr.mxu0 0.0
    %2998 = vmatpush1.msra.mxu0 0.0
    %2999 = vmatprep.subr.mxu0 0.0
    %3000 = vmatpush1.msra.mxu0 0.0
    %3001 = vmatprep.mubr.f32.mxu0 0.0
    %3002 = vmatmul.mubr.f32.gmra.mrb[0].mxu0 %v2935
    %v3003 = vpop.f32.mrb[0].mxu0
    %v3004 = vadd.f32 %v2917, %v3003
    %v3005 = vpop.f32.mrb[0].mxu0
    %3006 = vdwg.mxu0
    %v3007 = vmax.f32 %v3004, 0.0
    %v3008 = vlaneseq
    %v3009 = vshrl.u32 %v3008, 7
    %v3010 = vsub.s32 6, %v3009
    %v3011 = vrot.slane %v58, %v3010
    %3012 = vrot.lane.b32.xlu0 %v54, 80
    %v3013 = vpop.permute.xlu0 %3012
    %3014 = vrot.lane.b32.xlu0 %v55, 80
    %v3015 = vpop.permute.xlu0 %3014
    %vm3018 = vcmask 130048
    %v3020 = vsel %vm3018, %v3007, 0
    %3022 = vmatprep.subr.mxu0 0.0
    %3023 = vmatpush1.msra.mxu0 %v3013
    %3024 = vmatprep.subr.mxu0 0.0
    %3025 = vmatpush1.msra.mxu0 %v3015
    %3026 = vmatprep.subr.mxu0 0.0
    %3027 = vmatpush1.msra.mxu0 0.0
    %3028 = vmatprep.subr.mxu0 0.0
    %3029 = vmatpush1.msra.mxu0 0.0
    %3030 = vmatprep.subr.mxu0 0.0
    %3031 = vmatpush1.msra.mxu0 0.0
    %3032 = vmatprep.subr.mxu0 0.0
    %3033 = vmatpush1.msra.mxu0 0.0
    %3034 = vmatprep.subr.mxu0 0.0
    %3035 = vmatpush1.msra.mxu0 0.0
    %3036 = vmatprep.subr.mxu0 0.0
    %3037 = vmatpush1.msra.mxu0 0.0
    %3038 = vmatprep.subr.mxu0 0.0
    %3039 = vmatpush1.msra.mxu0 0.0
    %3040 = vmatprep.subr.mxu0 0.0
    %3041 = vmatpush1.msra.mxu0 0.0
    %3042 = vmatprep.subr.mxu0 0.0
    %3043 = vmatpush1.msra.mxu0 0.0
    %3044 = vmatprep.subr.mxu0 0.0
    %3045 = vmatpush1.msra.mxu0 0.0
    %3046 = vmatprep.subr.mxu0 0.0
    %3047 = vmatpush1.msra.mxu0 0.0
    %3048 = vmatprep.subr.mxu0 0.0
    %3049 = vmatpush1.msra.mxu0 0.0
    %3050 = vmatprep.subr.mxu0 0.0
    %3051 = vmatpush1.msra.mxu0 0.0
    %3052 = vmatprep.subr.mxu0 0.0
    %3053 = vmatpush1.msra.mxu0 0.0
    %3054 = vmatprep.subr.mxu0 0.0
    %3055 = vmatpush1.msra.mxu0 0.0
    %3056 = vmatprep.subr.mxu0 0.0
    %3057 = vmatpush1.msra.mxu0 0.0
    %3058 = vmatprep.subr.mxu0 0.0
    %3059 = vmatpush1.msra.mxu0 0.0
    %3060 = vmatprep.subr.mxu0 0.0
    %3061 = vmatpush1.msra.mxu0 0.0
    %3062 = vmatprep.subr.mxu0 0.0
    %3063 = vmatpush1.msra.mxu0 0.0
    %3064 = vmatprep.subr.mxu0 0.0
    %3065 = vmatpush1.msra.mxu0 0.0
    %3066 = vmatprep.subr.mxu0 0.0
    %3067 = vmatpush1.msra.mxu0 0.0
    %3068 = vmatprep.subr.mxu0 0.0
    %3069 = vmatpush1.msra.mxu0 0.0
    %3070 = vmatprep.subr.mxu0 0.0
    %3071 = vmatpush1.msra.mxu0 0.0
    %3072 = vmatprep.subr.mxu0 0.0
    %3073 = vmatpush1.msra.mxu0 0.0
    %3074 = vmatprep.subr.mxu0 0.0
    %3075 = vmatpush1.msra.mxu0 0.0
    %3076 = vmatprep.subr.mxu0 0.0
    %3077 = vmatpush1.msra.mxu0 0.0
    %3078 = vmatprep.subr.mxu0 0.0
    %3079 = vmatpush1.msra.mxu0 0.0
    %3080 = vmatprep.subr.mxu0 0.0
    %3081 = vmatpush1.msra.mxu0 0.0
    %3082 = vmatprep.subr.mxu0 0.0
    %3083 = vmatpush1.msra.mxu0 0.0
    %3084 = vmatprep.subr.mxu0 0.0
    %3085 = vmatpush1.msra.mxu0 0.0
    %3086 = vmatprep.mubr.f32.mxu0 0.0
    %3087 = vmatmul.mubr.f32.gmra.mrb[0].mxu0 %v3020
    %v3088 = vpop.f32.mrb[0].mxu0
    %v3089 = vadd.f32 %v3011, %v3088
    %v3090 = vpop.f32.mrb[0].mxu0
    %3091 = vdwg.mxu0
    %s3092 = sld [smem:[#allocation4]]
    %s3093 = smax.f32 %s3092, 0.1
    %v3094 = vstv %s3093
    %v3095 = vrcp.pop %v3094
    %v3096 = vmul.f32 %v3089, %v3095
    %vm3097 = vcmask 23552
    %v3098 = vsel %vm3097, %v3096, -inf
    %3099 = vmax.xlane.f32.xlu0 %v3098
    %v3100 = vpop.xlane.xlu0 %3099
    %v3101 = vsub.f32 %v3096, %v3100
    %v3102 = vmul.f32 %v3101, 1.442695
    %v3103 = vpow.pop %v3102
    %v3104 = vsel %vm3097, %v3103, 0.0
    %3105 = vadd.xlane.f32.xlu0 %v3104
    %v3106 = vpop.xlane.xlu0 %3105
    %v3107 = vrcp.pop %v3106
    %v3108 = vmul.f32 %v3103, %v3107
    %v3109 = vlog2.pop %v3106
    %v3110 = vmul.f32 %v3109, 0.6931472
    %v3111 = vsub.f32 %v3101, %v3110
    %v3112 = vmul.f32 %v3108, %v3111
    %v3113 = vsel %vm3097, %v3112, 0.0
    %3114 = vadd.xlane.f32.xlu0 %v3113
    %v3115 = vpop.xlane.xlu0 %3114
    %v3116 = vsub.f32 0.0, %v3115
    %3118 = vrot.lane.b32.xlu0 %v3089, 3
    %v3119 = vpop.permute.xlu0 %3118
    %3122 = vrot.lane.b32.xlu0 %v3111, 6
    %v3123 = vpop.permute.xlu0 %3122
    %3125 = vrot.lane.b32.xlu0 %v3089, 7
    %v3126 = vpop.permute.xlu0 %3125
    %v3128 = vsel %vm3097, %v3108, %v3119
    %vm3129 = vcmask 48128
    %v3130 = vsel %vm3129, %v3128, %v3123
    %vm3131 = vcmask 72704
    %v3132 = vsel %vm3131, %v3130, %v3116
    %vm3133 = vcmask 80896
    %v3134 = vsel %vm3133, %v3132, %v3126
    %vm3135 = vcmask 89088
    %3136 = vst.msk [vmem:[#allocation8] sm:$0xff] %vm3135, %v3134
    // Predicated region
    $region22: #{tpu_custom_call.1} parent=1 // pred_check
      _
    $region23: #{tpu_custom_call.1} parent=1 // pred_check_branch
      %3138 = sbr.rel (0) target = $region25
    $region24: #{tpu_custom_call.1} parent=1 // pred_region
      %s3140 = ssub.s32 128, 128
      %3141 = vsyncadd [#allocation7], %s3140
      %s3143 = sshll.u32 [#allocation8], 4
      %s3144 = int_to_ptr.vmem [resolvable:$true] %s3143
      %3146 = dma.vmem_to_hbm [thread:$0]  %s3144, 128, %s4, [#allocation7]
    $region25: #{tpu_custom_call.1} parent=1 // pred_fallthru
      _
    // Predicated region
    $region26: #{tpu_custom_call.1} parent=1 // pred_check
      _
    $region27: #{tpu_custom_call.1} parent=1 // pred_check_branch
      %3148 = sbr.rel (0) target = $region29
    $region28: #{tpu_custom_call.1} parent=1 // pred_region
      _
    $region29: #{tpu_custom_call.1} parent=1 // pred_fallthru
      _
    // Predicated region
    $region30: #{tpu_custom_call.1} parent=1 // pred_check
      _
    $region31: #{tpu_custom_call.1} parent=1 // pred_check_branch
      %3150 = sbr.rel (0) target = $region33
    $region32: #{tpu_custom_call.1} parent=1 // pred_region
      %3151 = dma.done [#allocation7], 128
    $region33: #{tpu_custom_call.1} parent=1 // pred_fallthru
      _
    // Predicated region
    $region34: #{tpu_custom_call.1} parent=1 // pred_check
      _
    $region35: #{tpu_custom_call.1} parent=1 // pred_check_branch
      %3153 = sbr.rel (0) target = $region37
    $region36: #{tpu_custom_call.1} parent=1 // pred_region
      _
    $region37: #{tpu_custom_call.1} parent=1 // pred_fallthru
      _
    %3154 = vsyncpa [#allocation6], 1
    %3155 = vsyncpa [#allocation7], 1

</llo_original>
